<compile_context>
chip_gen: v6e
topology: v6e:2x2x1
jax: 0.10.0
libtpu: 0.0.40
codegen_flags: <defaults>
</compile_context>

<pallas_src>
import math
from functools import partial

import jax
import jax.numpy as jnp
from jax.experimental import pallas as pl
from jax.experimental.pallas import tpu as pltpu

# ----------------------- model hyper-parameters (small) ---------------------
VOCAB = 100
MAX_POS = 64
HIDDEN = 32
NUM_HEADS = 4
FFN = 64
NUM_LAYERS = 2
LN_EPS = 1e-12

assert HIDDEN % NUM_HEADS == 0


# ------------------------------- kernel helpers -----------------------------
def _layer_norm(x, g, b, eps=LN_EPS):
    mu = jnp.mean(x, axis=-1, keepdims=True)
    var = jnp.mean((x - mu) ** 2, axis=-1, keepdims=True)
    return (x - mu) * jax.lax.rsqrt(var + eps) * g + b


def _gelu(x):
    c = math.sqrt(2.0 / math.pi)
    return 0.5 * x * (1.0 + jnp.tanh(c * (x + 0.044715 * x * x * x)))


# ------------------------------ Pallas kernel -------------------------------
def encoder_stack_kernel(
    x_ref, neg_ref,
    wqkv_ref, bqkv_ref, wo_ref, vecs_ref, w1_ref, b1_ref, w2_ref,
    out_ref,
    *, num_heads, num_layers,
):
    """Full encoder stack for one chunk.

    x_ref:    (B, S, H)   fp32 embeddings (already embedding-LayerNorm'ed)
    neg_ref:  (B, S)      fp32 additive key mask (0 or -1e9)
    wqkv_ref: (L, H, 3H)  fused Q/K/V projection weights
    bqkv_ref: (L, 1, 3H)
    wo_ref:   (L, H, H)
    vecs_ref: (L, 6, H)   rows = [bo, ln1_g, ln1_b, b2, ln2_g, ln2_b]
    w1_ref:   (L, H, F),  b1_ref: (L, 1, F),  w2_ref: (L, F, H)
    out_ref:  (B, H)      [CLS] (position 0) row of the last hidden state
    """
    B, S, H = x_ref.shape
    hd = H // num_heads
    scale = 1.0 / math.sqrt(hd)

    neg = neg_ref[...]                                   # (B, S)
    # Position-wise ops are done on a lane-aligned (B*S, H) slab
    # (S is a multiple of the fp32 sublane tile -> layout-preserving reshape).
    x = x_ref[...].reshape(B * S, H)

    for li in range(num_layers):                         # static unroll
        # ---- fused QKV projection: one (B*S, H) @ (H, 3H) matmul ----
        qkv = jnp.dot(x, wqkv_ref[li],
                      preferred_element_type=jnp.float32) + bqkv_ref[li]

        vec = vecs_ref[li]                               # (6, H)
        bo, ln1g, ln1b = vec[0:1], vec[1:2], vec[2:3]
        b2, ln2g, ln2b = vec[3:4], vec[4:5], vec[5:6]
        wo = wo_ref[li]                                  # (H, H)

        # ---- self-attention: heads statically unrolled, contractions
        #      batched over all sequences in the chunk ----
        attn = jnp.zeros((B * S, H), jnp.float32)
        for h in range(num_heads):
            qh = qkv[:, h * hd:(h + 1) * hd].reshape(B, S, hd)
            kh = qkv[:, H + h * hd:H + (h + 1) * hd].reshape(B, S, hd)
            vh = qkv[:, 2 * H + h * hd:2 * H + (h + 1) * hd].reshape(B, S, hd)

            s = jnp.einsum('bqd,bkd->bqk', qh, kh,
                           preferred_element_type=jnp.float32) * scale
            s = s + neg[:, None, :]                      # mask keys
            s = s - jnp.max(s, axis=-1, keepdims=True)
            p = jnp.exp(s)
            p = p * pl.reciprocal(jnp.sum(p, axis=-1, keepdims=True),
                                  approx=True)
            ctx = jnp.einsum('bqk,bkd->bqd', p, vh,
                             preferred_element_type=jnp.float32)  # (B,S,hd)
            # fold the head directly into the output projection
            # (no concatenate of head contexts)
            attn = attn + jnp.dot(ctx.reshape(B * S, hd),
                                  wo[h * hd:(h + 1) * hd, :],
                                  preferred_element_type=jnp.float32)
        attn = attn + bo

        h1 = _layer_norm(x + attn, ln1g, ln1b)

        # ---- feed-forward ----
        ff = _gelu(jnp.dot(h1, w1_ref[li],
                           preferred_element_type=jnp.float32) + b1_ref[li])
        ff = jnp.dot(ff, w2_ref[li],
                     preferred_element_type=jnp.float32) + b2
        x = _layer_norm(h1 + ff, ln2g, ln2b)

    # [CLS] (position 0) of the last hidden state -> (B, H)
    out_ref[...] = x.reshape(B, S, H)[:, 0, :]


# ------------------------------ pallas wrapper -------------------------------
def _full_spec(shape):
    nd = len(shape)
    return pl.BlockSpec(shape, lambda i, _nd=nd: (0,) * _nd)


def _cost_estimate(B, S):
    H, F, L, NH = HIDDEN, FFN, NUM_LAYERS, NUM_HEADS
    flops = L * (2 * B * S * H * 3 * H          # fused QKV
                 + 2 * 2 * B * S * S * H        # scores + context (all heads)
                 + 2 * B * S * H * H            # output projection
                 + 2 * 2 * B * S * H * F)       # FFN up + down
    transcendentals = L * (B * NH * S * S + B * S * F)   # exp + tanh
    weight_bytes = 4 * L * (H * 3 * H + 3 * H + H * H + 6 * H
                            + H * F + F + F * H)
    bytes_accessed = 4 * (B * S * H + B * S + B * H) + weight_bytes
    return pl.CostEstimate(flops=flops, transcendentals=transcendentals,
                           bytes_accessed=bytes_accessed)


def encoder_pallas(x, negmask, params):
    """x: (B, S, H) fp32, negmask: (B, S) fp32 additive key mask -> (B, H)."""
    B, S, H = x.shape
    weight_names = ("wqkv", "bqkv", "wo", "vecs", "w1", "b1", "w2")
    weights = [params[n] for n in weight_names]

    in_specs = ([pl.BlockSpec((B, S, H), lambda i: (0, 0, 0)),
                 pl.BlockSpec((B, S), lambda i: (0, 0))]
                + [_full_spec(w.shape) for w in weights])
    out_spec = pl.BlockSpec((B, H), lambda i: (0, 0))

    return pl.pallas_call(
        partial(encoder_stack_kernel,
                num_heads=NUM_HEADS, num_layers=NUM_LAYERS),
        out_shape=jax.ShapeDtypeStruct((B, H), jnp.float32),
        grid_spec=pltpu.PrefetchScalarGridSpec(
            num_scalar_prefetch=0,
            grid=(1,),                       # whole chunk in one grid step
            in_specs=in_specs,
            out_specs=out_spec),
        compiler_params=pltpu.CompilerParams(
            dimension_semantics=("arbitrary",)),
        cost_estimate=_cost_estimate(B, S),
    )(x, negmask, *weights)


# --------------------------- parameter construction -------------------------
def init_params(key):
    def normal(k, shape, std=0.02):
        return (std * jax.random.normal(k, shape)).astype(jnp.float32)

    keys = jax.random.split(key, 3 + NUM_LAYERS)
    H, F = HIDDEN, FFN
    wqkv, bqkv, wo, vecs, w1, b1, w2 = [], [], [], [], [], [], []
    for li in range(NUM_LAYERS):
        lk = jax.random.split(keys[3 + li], 6)
        wq = normal(lk[0], (H, H))
        wk = normal(lk[1], (H, H))
        wv = normal(lk[2], (H, H))
        wqkv.append(jnp.concatenate([wq, wk, wv], axis=1))        # (H, 3H)
        bqkv.append(jnp.zeros((1, 3 * H), jnp.float32))
        wo.append(normal(lk[3], (H, H)))
        # packed per-layer (1,H) vectors: bo, ln1_g, ln1_b, b2, ln2_g, ln2_b
        vecs.append(jnp.stack([jnp.zeros((H,)), jnp.ones((H,)), jnp.zeros((H,)),
                               jnp.zeros((H,)), jnp.ones((H,)), jnp.zeros((H,))]
                              ).astype(jnp.float32))
        w1.append(normal(lk[4], (H, F)))
        b1.append(jnp.zeros((1, F), jnp.float32))
        w2.append(normal(lk[5], (F, H)))

    return {
        "word_emb": normal(keys[0], (VOCAB, H)),
        "pos_emb": normal(keys[1], (MAX_POS, H)),
        "type_emb": normal(keys[2], (1, H)),
        "emb_ln_g": jnp.ones((H,), jnp.float32),
        "emb_ln_b": jnp.zeros((H,), jnp.float32),
        "wqkv": jnp.stack(wqkv), "bqkv": jnp.stack(bqkv), "wo": jnp.stack(wo),
        "vecs": jnp.stack(vecs), "w1": jnp.stack(w1), "b1": jnp.stack(b1),
        "w2": jnp.stack(w2),
    }


# ------------------------------ forward (glue) -------------------------------
def encoder_forward(params, input_ids, attention_mask):
    """input_ids: (B, S) int32, attention_mask: (B, S) {0,1} -> (B, H) CLS."""
    B, S = input_ids.shape
    # embedding lookup + embedding LayerNorm (gather glue, not the hot path)
    x = (params["word_emb"][input_ids]
         + params["pos_emb"][:S][None, :, :]
         + params["type_emb"][0][None, None, :])
    mu = jnp.mean(x, axis=-1, keepdims=True)
    var = jnp.mean((x - mu) ** 2, axis=-1, keepdims=True)
    x = ((x - mu) * jax.lax.rsqrt(var + LN_EPS)
         * params["emb_ln_g"] + params["emb_ln_b"]).astype(jnp.float32)

    # additive attention mask over keys
    negmask = (1.0 - attention_mask.astype(jnp.float32)) * -1e9      # (B, S)

    return encoder_pallas(x, negmask, params)


_encoder_forward_jit = jax.jit(encoder_forward)


def transformer_model_forward(params, input_ids, attention_mask):
    """Mirrors TransformerModel.forward: truncate to 512 and chunk by 40."""
    max_len = 512
    input_ids = input_ids[:, :max_len]
    attention_mask = attention_mask[:, :max_len]
    n = input_ids.shape[0]
    if n <= 40:
        return _encoder_forward_jit(params, input_ids, attention_mask)
    outs = []
    for k in range(0, n, 40):
        outs.append(_encoder_forward_jit(params, input_ids[k:k + 40],
                                         attention_mask[k:k + 40]))
    return jnp.concatenate(outs, axis=0)


# ----------------------------------- main ------------------------------------
if __name__ == "__main__":
    key = jax.random.PRNGKey(0)
    pkey, ikey = jax.random.split(key)
    params = init_params(pkey)

    B, S = 2, 8
    input_ids = jax.random.randint(ikey, (B, S), 0, VOCAB, dtype=jnp.int32)
    # second "sentence" is padded (last 3 tokens masked out)
    attention_mask = jnp.array(
        [[1] * S, [1] * (S - 3) + [0] * 3], dtype=jnp.int32)

    embeddings = transformer_model_forward(params, input_ids, attention_mask)
    embeddings = jax.block_until_ready(embeddings)

    assert embeddings.shape == (B, HIDDEN)
    assert embeddings.dtype == jnp.float32
    print("KERNEL_OK")
</pallas_src>

<mosaic_0001>
module attributes {stable_mosaic.version = 11 : i64} {
  func.func @encoder_stack_kernel(%arg0: i32, %arg1: memref<2x8x32xf32, #tpu.memory_space<vmem>>, %arg2: memref<2x8xf32, #tpu.memory_space<vmem>>, %arg3: memref<2x32x96xf32, #tpu.memory_space<vmem>>, %arg4: memref<2x1x96xf32, #tpu.memory_space<vmem>>, %arg5: memref<2x32x32xf32, #tpu.memory_space<vmem>>, %arg6: memref<2x6x32xf32, #tpu.memory_space<vmem>>, %arg7: memref<2x32x64xf32, #tpu.memory_space<vmem>>, %arg8: memref<2x1x64xf32, #tpu.memory_space<vmem>>, %arg9: memref<2x64x32xf32, #tpu.memory_space<vmem>>, %arg10: memref<2x32xf32, #tpu.memory_space<vmem>>) attributes {dimension_semantics = [#tpu.dimension_semantics<arbitrary>], iteration_bounds = array<i64: 1>, scalar_prefetch = 0 : i64, scratch_operands = 0 : i64, tpu.core_type = #tpu.core_type<tc>, window_params = [{pipeline_mode = #tpu.pipeline_mode<synchronous>, transform_indices = @transform_0, window_bounds = array<i64: 2, 8, 32>}, {pipeline_mode = #tpu.pipeline_mode<synchronous>, transform_indices = @transform_1, window_bounds = array<i64: 2, 8>}, {pipeline_mode = #tpu.pipeline_mode<synchronous>, transform_indices = @transform_2, window_bounds = array<i64: 2, 32, 96>}, {pipeline_mode = #tpu.pipeline_mode<synchronous>, transform_indices = @transform_3, window_bounds = array<i64: 2, 1, 96>}, {pipeline_mode = #tpu.pipeline_mode<synchronous>, transform_indices = @transform_4, window_bounds = array<i64: 2, 32, 32>}, {pipeline_mode = #tpu.pipeline_mode<synchronous>, transform_indices = @transform_5, window_bounds = array<i64: 2, 6, 32>}, {pipeline_mode = #tpu.pipeline_mode<synchronous>, transform_indices = @transform_6, window_bounds = array<i64: 2, 32, 64>}, {pipeline_mode = #tpu.pipeline_mode<synchronous>, transform_indices = @transform_7, window_bounds = array<i64: 2, 1, 64>}, {pipeline_mode = #tpu.pipeline_mode<synchronous>, transform_indices = @transform_8, window_bounds = array<i64: 2, 64, 32>}, {pipeline_mode = #tpu.pipeline_mode<synchronous>, transform_indices = @transform_9, window_bounds = array<i64: 2, 32>}]} {
    %c0 = arith.constant 0 : index
    %c0_0 = arith.constant 0 : index
    %0 = vector.load %arg2[%c0, %c0_0] : memref<2x8xf32, #tpu.memory_space<vmem>>, vector<2x8xf32>
    %c0_1 = arith.constant 0 : index
    %c0_2 = arith.constant 0 : index
    %c0_3 = arith.constant 0 : index
    %1 = vector.load %arg1[%c0_1, %c0_2, %c0_3] : memref<2x8x32xf32, #tpu.memory_space<vmem>>, vector<2x8x32xf32>
    %2 = vector.shape_cast %1 : vector<2x8x32xf32> to vector<16x32xf32>
    %c0_4 = arith.constant 0 : index
    %c0_5 = arith.constant 0 : index
    %c0_6 = arith.constant 0 : index
    %3 = vector.load %arg3[%c0_4, %c0_5, %c0_6] : memref<2x32x96xf32, #tpu.memory_space<vmem>>, vector<1x32x96xf32>
    %4 = vector.shape_cast %3 : vector<1x32x96xf32> to vector<32x96xf32>
    %cst = arith.constant dense<0.000000e+00> : vector<16x96xf32>
    %5 = tpu.matmul %2, %4, %cst {dimension_numbers = #tpu.dot_dimension_numbers<[1], [0], [0], [1], [0, 0, 1, 1], [], []>} : vector<16x32xf32>, vector<32x96xf32>, vector<16x96xf32> -> vector<16x96xf32>
    %c0_7 = arith.constant 0 : index
    %c0_8 = arith.constant 0 : index
    %c0_9 = arith.constant 0 : index
    %6 = vector.load %arg4[%c0_7, %c0_8, %c0_9] : memref<2x1x96xf32, #tpu.memory_space<vmem>>, vector<1x1x96xf32>
    %7 = vector.shape_cast %6 : vector<1x1x96xf32> to vector<1x96xf32>
    %8 = vector.broadcast %7 : vector<1x96xf32> to vector<16x96xf32>
    %9 = arith.addf %5, %8 : vector<16x96xf32>
    %c0_10 = arith.constant 0 : index
    %c0_11 = arith.constant 0 : index
    %c0_12 = arith.constant 0 : index
    %10 = vector.load %arg6[%c0_10, %c0_11, %c0_12] : memref<2x6x32xf32, #tpu.memory_space<vmem>>, vector<1x6x32xf32>
    %11 = vector.shape_cast %10 : vector<1x6x32xf32> to vector<6x32xf32>
    %12 = vector.extract_strided_slice %11 {offsets = [0, 0], sizes = [1, 32], strides = [1, 1]} : vector<6x32xf32> to vector<1x32xf32>
    %13 = vector.extract_strided_slice %11 {offsets = [1, 0], sizes = [1, 32], strides = [1, 1]} : vector<6x32xf32> to vector<1x32xf32>
    %14 = vector.extract_strided_slice %11 {offsets = [2, 0], sizes = [1, 32], strides = [1, 1]} : vector<6x32xf32> to vector<1x32xf32>
    %15 = vector.extract_strided_slice %11 {offsets = [3, 0], sizes = [1, 32], strides = [1, 1]} : vector<6x32xf32> to vector<1x32xf32>
    %16 = vector.extract_strided_slice %11 {offsets = [4, 0], sizes = [1, 32], strides = [1, 1]} : vector<6x32xf32> to vector<1x32xf32>
    %17 = vector.extract_strided_slice %11 {offsets = [5, 0], sizes = [1, 32], strides = [1, 1]} : vector<6x32xf32> to vector<1x32xf32>
    %c0_13 = arith.constant 0 : index
    %c0_14 = arith.constant 0 : index
    %c0_15 = arith.constant 0 : index
    %18 = vector.load %arg5[%c0_13, %c0_14, %c0_15] : memref<2x32x32xf32, #tpu.memory_space<vmem>>, vector<1x32x32xf32>
    %19 = vector.shape_cast %18 : vector<1x32x32xf32> to vector<32x32xf32>
    %cst_16 = arith.constant 0.000000e+00 : f32
    %20 = vector.broadcast %cst_16 : f32 to vector<16x32xf32>
    %21 = vector.extract_strided_slice %9 {offsets = [0, 0], sizes = [16, 8], strides = [1, 1]} : vector<16x96xf32> to vector<16x8xf32>
    %22 = vector.shape_cast %21 : vector<16x8xf32> to vector<2x8x8xf32>
    %23 = vector.extract_strided_slice %9 {offsets = [0, 32], sizes = [16, 8], strides = [1, 1]} : vector<16x96xf32> to vector<16x8xf32>
    %24 = vector.shape_cast %23 : vector<16x8xf32> to vector<2x8x8xf32>
    %25 = vector.extract_strided_slice %9 {offsets = [0, 64], sizes = [16, 8], strides = [1, 1]} : vector<16x96xf32> to vector<16x8xf32>
    %26 = vector.shape_cast %25 : vector<16x8xf32> to vector<2x8x8xf32>
    "tpu.trace_start"() <{level = 10 : i32, message = "bqd,bkd->bqk"}> : () -> ()
    %cst_17 = arith.constant dense<0.000000e+00> : vector<2x8x8xf32>
    %27 = tpu.matmul %22, %24, %cst_17 {dimension_numbers = #tpu.dot_dimension_numbers<[2], [2], [1], [1], [0, 0, 0, 1, 1, 1], [0], [0]>} : vector<2x8x8xf32>, vector<2x8x8xf32>, vector<2x8x8xf32> -> vector<2x8x8xf32>
    "tpu.trace_stop"() : () -> ()
    %cst_18 = arith.constant 0.353553385 : f32
    %28 = vector.broadcast %cst_18 : f32 to vector<2x8x8xf32>
    %29 = arith.mulf %27, %28 : vector<2x8x8xf32>
    %30 = vector.shape_cast %0 : vector<2x8xf32> to vector<2x1x8xf32>
    %31 = vector.broadcast %30 : vector<2x1x8xf32> to vector<2x8x8xf32>
    %32 = arith.addf %29, %31 : vector<2x8x8xf32>
    %cst_19 = arith.constant dense<0xFF800000> : vector<2x8xf32>
    %33 = vector.multi_reduction <maximumf>, %32, %cst_19 [2] : vector<2x8x8xf32> to vector<2x8xf32>
    %34 = vector.shape_cast %33 : vector<2x8xf32> to vector<2x8x1xf32>
    %35 = vector.broadcast %34 : vector<2x8x1xf32> to vector<2x8x8xf32>
    %36 = arith.subf %32, %35 : vector<2x8x8xf32>
    %37 = math.exp %36 : vector<2x8x8xf32>
    %cst_20 = arith.constant dense<0.000000e+00> : vector<2x8xf32>
    %38 = vector.multi_reduction <add>, %37, %cst_20 [2] : vector<2x8x8xf32> to vector<2x8xf32>
    %39 = vector.shape_cast %38 : vector<2x8xf32> to vector<2x8x1xf32>
    %40 = tpu.reciprocal %39 {approx = true} : vector<2x8x1xf32> -> vector<2x8x1xf32>
    %41 = vector.broadcast %40 : vector<2x8x1xf32> to vector<2x8x8xf32>
    %42 = arith.mulf %37, %41 : vector<2x8x8xf32>
    "tpu.trace_start"() <{level = 10 : i32, message = "bqk,bkd->bqd"}> : () -> ()
    %cst_21 = arith.constant dense<0.000000e+00> : vector<2x8x8xf32>
    %43 = tpu.matmul %42, %26, %cst_21 {dimension_numbers = #tpu.dot_dimension_numbers<[2], [1], [1], [2], [0, 0, 0, 1, 1, 2], [0], [0]>} : vector<2x8x8xf32>, vector<2x8x8xf32>, vector<2x8x8xf32> -> vector<2x8x8xf32>
    "tpu.trace_stop"() : () -> ()
    %44 = vector.shape_cast %43 : vector<2x8x8xf32> to vector<16x8xf32>
    %45 = vector.extract_strided_slice %19 {offsets = [0, 0], sizes = [8, 32], strides = [1, 1]} : vector<32x32xf32> to vector<8x32xf32>
    %cst_22 = arith.constant dense<0.000000e+00> : vector<16x32xf32>
    %46 = tpu.matmul %44, %45, %cst_22 {dimension_numbers = #tpu.dot_dimension_numbers<[1], [0], [0], [1], [0, 0, 1, 1], [], []>} : vector<16x8xf32>, vector<8x32xf32>, vector<16x32xf32> -> vector<16x32xf32>
    %47 = arith.addf %20, %46 : vector<16x32xf32>
    %48 = vector.extract_strided_slice %9 {offsets = [0, 8], sizes = [16, 8], strides = [1, 1]} : vector<16x96xf32> to vector<16x8xf32>
    %49 = vector.shape_cast %48 : vector<16x8xf32> to vector<2x8x8xf32>
    %50 = vector.extract_strided_slice %9 {offsets = [0, 40], sizes = [16, 8], strides = [1, 1]} : vector<16x96xf32> to vector<16x8xf32>
    %51 = vector.shape_cast %50 : vector<16x8xf32> to vector<2x8x8xf32>
    %52 = vector.extract_strided_slice %9 {offsets = [0, 72], sizes = [16, 8], strides = [1, 1]} : vector<16x96xf32> to vector<16x8xf32>
    %53 = vector.shape_cast %52 : vector<16x8xf32> to vector<2x8x8xf32>
    "tpu.trace_start"() <{level = 10 : i32, message = "bqd,bkd->bqk"}> : () -> ()
    %cst_23 = arith.constant dense<0.000000e+00> : vector<2x8x8xf32>
    %54 = tpu.matmul %49, %51, %cst_23 {dimension_numbers = #tpu.dot_dimension_numbers<[2], [2], [1], [1], [0, 0, 0, 1, 1, 1], [0], [0]>} : vector<2x8x8xf32>, vector<2x8x8xf32>, vector<2x8x8xf32> -> vector<2x8x8xf32>
    "tpu.trace_stop"() : () -> ()
    %cst_24 = arith.constant 0.353553385 : f32
    %55 = vector.broadcast %cst_24 : f32 to vector<2x8x8xf32>
    %56 = arith.mulf %54, %55 : vector<2x8x8xf32>
    %57 = vector.shape_cast %0 : vector<2x8xf32> to vector<2x1x8xf32>
    %58 = vector.broadcast %57 : vector<2x1x8xf32> to vector<2x8x8xf32>
    %59 = arith.addf %56, %58 : vector<2x8x8xf32>
    %cst_25 = arith.constant dense<0xFF800000> : vector<2x8xf32>
    %60 = vector.multi_reduction <maximumf>, %59, %cst_25 [2] : vector<2x8x8xf32> to vector<2x8xf32>
    %61 = vector.shape_cast %60 : vector<2x8xf32> to vector<2x8x1xf32>
    %62 = vector.broadcast %61 : vector<2x8x1xf32> to vector<2x8x8xf32>
    %63 = arith.subf %59, %62 : vector<2x8x8xf32>
    %64 = math.exp %63 : vector<2x8x8xf32>
    %cst_26 = arith.constant dense<0.000000e+00> : vector<2x8xf32>
    %65 = vector.multi_reduction <add>, %64, %cst_26 [2] : vector<2x8x8xf32> to vector<2x8xf32>
    %66 = vector.shape_cast %65 : vector<2x8xf32> to vector<2x8x1xf32>
    %67 = tpu.reciprocal %66 {approx = true} : vector<2x8x1xf32> -> vector<2x8x1xf32>
    %68 = vector.broadcast %67 : vector<2x8x1xf32> to vector<2x8x8xf32>
    %69 = arith.mulf %64, %68 : vector<2x8x8xf32>
    "tpu.trace_start"() <{level = 10 : i32, message = "bqk,bkd->bqd"}> : () -> ()
    %cst_27 = arith.constant dense<0.000000e+00> : vector<2x8x8xf32>
    %70 = tpu.matmul %69, %53, %cst_27 {dimension_numbers = #tpu.dot_dimension_numbers<[2], [1], [1], [2], [0, 0, 0, 1, 1, 2], [0], [0]>} : vector<2x8x8xf32>, vector<2x8x8xf32>, vector<2x8x8xf32> -> vector<2x8x8xf32>
    "tpu.trace_stop"() : () -> ()
    %71 = vector.shape_cast %70 : vector<2x8x8xf32> to vector<16x8xf32>
    %72 = vector.extract_strided_slice %19 {offsets = [8, 0], sizes = [8, 32], strides = [1, 1]} : vector<32x32xf32> to vector<8x32xf32>
    %cst_28 = arith.constant dense<0.000000e+00> : vector<16x32xf32>
    %73 = tpu.matmul %71, %72, %cst_28 {dimension_numbers = #tpu.dot_dimension_numbers<[1], [0], [0], [1], [0, 0, 1, 1], [], []>} : vector<16x8xf32>, vector<8x32xf32>, vector<16x32xf32> -> vector<16x32xf32>
    %74 = arith.addf %47, %73 : vector<16x32xf32>
    %75 = vector.extract_strided_slice %9 {offsets = [0, 16], sizes = [16, 8], strides = [1, 1]} : vector<16x96xf32> to vector<16x8xf32>
    %76 = vector.shape_cast %75 : vector<16x8xf32> to vector<2x8x8xf32>
    %77 = vector.extract_strided_slice %9 {offsets = [0, 48], sizes = [16, 8], strides = [1, 1]} : vector<16x96xf32> to vector<16x8xf32>
    %78 = vector.shape_cast %77 : vector<16x8xf32> to vector<2x8x8xf32>
    %79 = vector.extract_strided_slice %9 {offsets = [0, 80], sizes = [16, 8], strides = [1, 1]} : vector<16x96xf32> to vector<16x8xf32>
    %80 = vector.shape_cast %79 : vector<16x8xf32> to vector<2x8x8xf32>
    "tpu.trace_start"() <{level = 10 : i32, message = "bqd,bkd->bqk"}> : () -> ()
    %cst_29 = arith.constant dense<0.000000e+00> : vector<2x8x8xf32>
    %81 = tpu.matmul %76, %78, %cst_29 {dimension_numbers = #tpu.dot_dimension_numbers<[2], [2], [1], [1], [0, 0, 0, 1, 1, 1], [0], [0]>} : vector<2x8x8xf32>, vector<2x8x8xf32>, vector<2x8x8xf32> -> vector<2x8x8xf32>
    "tpu.trace_stop"() : () -> ()
    %cst_30 = arith.constant 0.353553385 : f32
    %82 = vector.broadcast %cst_30 : f32 to vector<2x8x8xf32>
    %83 = arith.mulf %81, %82 : vector<2x8x8xf32>
    %84 = vector.shape_cast %0 : vector<2x8xf32> to vector<2x1x8xf32>
    %85 = vector.broadcast %84 : vector<2x1x8xf32> to vector<2x8x8xf32>
    %86 = arith.addf %83, %85 : vector<2x8x8xf32>
    %cst_31 = arith.constant dense<0xFF800000> : vector<2x8xf32>
    %87 = vector.multi_reduction <maximumf>, %86, %cst_31 [2] : vector<2x8x8xf32> to vector<2x8xf32>
    %88 = vector.shape_cast %87 : vector<2x8xf32> to vector<2x8x1xf32>
    %89 = vector.broadcast %88 : vector<2x8x1xf32> to vector<2x8x8xf32>
    %90 = arith.subf %86, %89 : vector<2x8x8xf32>
    %91 = math.exp %90 : vector<2x8x8xf32>
    %cst_32 = arith.constant dense<0.000000e+00> : vector<2x8xf32>
    %92 = vector.multi_reduction <add>, %91, %cst_32 [2] : vector<2x8x8xf32> to vector<2x8xf32>
    %93 = vector.shape_cast %92 : vector<2x8xf32> to vector<2x8x1xf32>
    %94 = tpu.reciprocal %93 {approx = true} : vector<2x8x1xf32> -> vector<2x8x1xf32>
    %95 = vector.broadcast %94 : vector<2x8x1xf32> to vector<2x8x8xf32>
    %96 = arith.mulf %91, %95 : vector<2x8x8xf32>
    "tpu.trace_start"() <{level = 10 : i32, message = "bqk,bkd->bqd"}> : () -> ()
    %cst_33 = arith.constant dense<0.000000e+00> : vector<2x8x8xf32>
    %97 = tpu.matmul %96, %80, %cst_33 {dimension_numbers = #tpu.dot_dimension_numbers<[2], [1], [1], [2], [0, 0, 0, 1, 1, 2], [0], [0]>} : vector<2x8x8xf32>, vector<2x8x8xf32>, vector<2x8x8xf32> -> vector<2x8x8xf32>
    "tpu.trace_stop"() : () -> ()
    %98 = vector.shape_cast %97 : vector<2x8x8xf32> to vector<16x8xf32>
    %99 = vector.extract_strided_slice %19 {offsets = [16, 0], sizes = [8, 32], strides = [1, 1]} : vector<32x32xf32> to vector<8x32xf32>
    %cst_34 = arith.constant dense<0.000000e+00> : vector<16x32xf32>
    %100 = tpu.matmul %98, %99, %cst_34 {dimension_numbers = #tpu.dot_dimension_numbers<[1], [0], [0], [1], [0, 0, 1, 1], [], []>} : vector<16x8xf32>, vector<8x32xf32>, vector<16x32xf32> -> vector<16x32xf32>
    %101 = arith.addf %74, %100 : vector<16x32xf32>
    %102 = vector.extract_strided_slice %9 {offsets = [0, 24], sizes = [16, 8], strides = [1, 1]} : vector<16x96xf32> to vector<16x8xf32>
    %103 = vector.shape_cast %102 : vector<16x8xf32> to vector<2x8x8xf32>
    %104 = vector.extract_strided_slice %9 {offsets = [0, 56], sizes = [16, 8], strides = [1, 1]} : vector<16x96xf32> to vector<16x8xf32>
    %105 = vector.shape_cast %104 : vector<16x8xf32> to vector<2x8x8xf32>
    %106 = vector.extract_strided_slice %9 {offsets = [0, 88], sizes = [16, 8], strides = [1, 1]} : vector<16x96xf32> to vector<16x8xf32>
    %107 = vector.shape_cast %106 : vector<16x8xf32> to vector<2x8x8xf32>
    "tpu.trace_start"() <{level = 10 : i32, message = "bqd,bkd->bqk"}> : () -> ()
    %cst_35 = arith.constant dense<0.000000e+00> : vector<2x8x8xf32>
    %108 = tpu.matmul %103, %105, %cst_35 {dimension_numbers = #tpu.dot_dimension_numbers<[2], [2], [1], [1], [0, 0, 0, 1, 1, 1], [0], [0]>} : vector<2x8x8xf32>, vector<2x8x8xf32>, vector<2x8x8xf32> -> vector<2x8x8xf32>
    "tpu.trace_stop"() : () -> ()
    %cst_36 = arith.constant 0.353553385 : f32
    %109 = vector.broadcast %cst_36 : f32 to vector<2x8x8xf32>
    %110 = arith.mulf %108, %109 : vector<2x8x8xf32>
    %111 = vector.shape_cast %0 : vector<2x8xf32> to vector<2x1x8xf32>
    %112 = vector.broadcast %111 : vector<2x1x8xf32> to vector<2x8x8xf32>
    %113 = arith.addf %110, %112 : vector<2x8x8xf32>
    %cst_37 = arith.constant dense<0xFF800000> : vector<2x8xf32>
    %114 = vector.multi_reduction <maximumf>, %113, %cst_37 [2] : vector<2x8x8xf32> to vector<2x8xf32>
    %115 = vector.shape_cast %114 : vector<2x8xf32> to vector<2x8x1xf32>
    %116 = vector.broadcast %115 : vector<2x8x1xf32> to vector<2x8x8xf32>
    %117 = arith.subf %113, %116 : vector<2x8x8xf32>
    %118 = math.exp %117 : vector<2x8x8xf32>
    %cst_38 = arith.constant dense<0.000000e+00> : vector<2x8xf32>
    %119 = vector.multi_reduction <add>, %118, %cst_38 [2] : vector<2x8x8xf32> to vector<2x8xf32>
    %120 = vector.shape_cast %119 : vector<2x8xf32> to vector<2x8x1xf32>
    %121 = tpu.reciprocal %120 {approx = true} : vector<2x8x1xf32> -> vector<2x8x1xf32>
    %122 = vector.broadcast %121 : vector<2x8x1xf32> to vector<2x8x8xf32>
    %123 = arith.mulf %118, %122 : vector<2x8x8xf32>
    "tpu.trace_start"() <{level = 10 : i32, message = "bqk,bkd->bqd"}> : () -> ()
    %cst_39 = arith.constant dense<0.000000e+00> : vector<2x8x8xf32>
    %124 = tpu.matmul %123, %107, %cst_39 {dimension_numbers = #tpu.dot_dimension_numbers<[2], [1], [1], [2], [0, 0, 0, 1, 1, 2], [0], [0]>} : vector<2x8x8xf32>, vector<2x8x8xf32>, vector<2x8x8xf32> -> vector<2x8x8xf32>
    "tpu.trace_stop"() : () -> ()
    %125 = vector.shape_cast %124 : vector<2x8x8xf32> to vector<16x8xf32>
    %126 = vector.extract_strided_slice %19 {offsets = [24, 0], sizes = [8, 32], strides = [1, 1]} : vector<32x32xf32> to vector<8x32xf32>
    %cst_40 = arith.constant dense<0.000000e+00> : vector<16x32xf32>
    %127 = tpu.matmul %125, %126, %cst_40 {dimension_numbers = #tpu.dot_dimension_numbers<[1], [0], [0], [1], [0, 0, 1, 1], [], []>} : vector<16x8xf32>, vector<8x32xf32>, vector<16x32xf32> -> vector<16x32xf32>
    %128 = arith.addf %101, %127 : vector<16x32xf32>
    %129 = vector.broadcast %12 : vector<1x32xf32> to vector<16x32xf32>
    %130 = arith.addf %128, %129 : vector<16x32xf32>
    %131 = arith.addf %2, %130 : vector<16x32xf32>
    %cst_41 = arith.constant dense<0.000000e+00> : vector<16xf32>
    %132 = vector.multi_reduction <add>, %131, %cst_41 [1] : vector<16x32xf32> to vector<16xf32>
    %133 = vector.shape_cast %132 : vector<16xf32> to vector<16x1xf32>
    %cst_42 = arith.constant 3.200000e+01 : f32
    %134 = vector.broadcast %cst_42 : f32 to vector<16x1xf32>
    %135 = arith.divf %133, %134 : vector<16x1xf32>
    %136 = vector.broadcast %135 : vector<16x1xf32> to vector<16x32xf32>
    %137 = arith.subf %131, %136 : vector<16x32xf32>
    %138 = arith.mulf %137, %137 : vector<16x32xf32>
    %cst_43 = arith.constant dense<0.000000e+00> : vector<16xf32>
    %139 = vector.multi_reduction <add>, %138, %cst_43 [1] : vector<16x32xf32> to vector<16xf32>
    %140 = vector.shape_cast %139 : vector<16xf32> to vector<16x1xf32>
    %cst_44 = arith.constant 3.200000e+01 : f32
    %141 = vector.broadcast %cst_44 : f32 to vector<16x1xf32>
    %142 = arith.divf %140, %141 : vector<16x1xf32>
    %143 = vector.broadcast %135 : vector<16x1xf32> to vector<16x32xf32>
    %144 = arith.subf %131, %143 : vector<16x32xf32>
    %cst_45 = arith.constant 9.99999996E-13 : f32
    %145 = vector.broadcast %cst_45 : f32 to vector<16x1xf32>
    %146 = arith.addf %142, %145 : vector<16x1xf32>
    %147 = math.rsqrt %146 : vector<16x1xf32>
    %148 = vector.broadcast %147 : vector<16x1xf32> to vector<16x32xf32>
    %149 = arith.mulf %144, %148 : vector<16x32xf32>
    %150 = vector.broadcast %13 : vector<1x32xf32> to vector<16x32xf32>
    %151 = arith.mulf %149, %150 : vector<16x32xf32>
    %152 = vector.broadcast %14 : vector<1x32xf32> to vector<16x32xf32>
    %153 = arith.addf %151, %152 : vector<16x32xf32>
    %c0_46 = arith.constant 0 : index
    %c0_47 = arith.constant 0 : index
    %c0_48 = arith.constant 0 : index
    %154 = vector.load %arg7[%c0_46, %c0_47, %c0_48] : memref<2x32x64xf32, #tpu.memory_space<vmem>>, vector<1x32x64xf32>
    %155 = vector.shape_cast %154 : vector<1x32x64xf32> to vector<32x64xf32>
    %cst_49 = arith.constant dense<0.000000e+00> : vector<16x64xf32>
    %156 = tpu.matmul %153, %155, %cst_49 {dimension_numbers = #tpu.dot_dimension_numbers<[1], [0], [0], [1], [0, 0, 1, 1], [], []>} : vector<16x32xf32>, vector<32x64xf32>, vector<16x64xf32> -> vector<16x64xf32>
    %c0_50 = arith.constant 0 : index
    %c0_51 = arith.constant 0 : index
    %c0_52 = arith.constant 0 : index
    %157 = vector.load %arg8[%c0_50, %c0_51, %c0_52] : memref<2x1x64xf32, #tpu.memory_space<vmem>>, vector<1x1x64xf32>
    %158 = vector.shape_cast %157 : vector<1x1x64xf32> to vector<1x64xf32>
    %159 = vector.broadcast %158 : vector<1x64xf32> to vector<16x64xf32>
    %160 = arith.addf %156, %159 : vector<16x64xf32>
    %cst_53 = arith.constant 5.000000e-01 : f32
    %161 = vector.broadcast %cst_53 : f32 to vector<16x64xf32>
    %162 = arith.mulf %161, %160 : vector<16x64xf32>
    %cst_54 = arith.constant 4.471500e-02 : f32
    %163 = vector.broadcast %cst_54 : f32 to vector<16x64xf32>
    %164 = arith.mulf %163, %160 : vector<16x64xf32>
    %165 = arith.mulf %164, %160 : vector<16x64xf32>
    %166 = arith.mulf %165, %160 : vector<16x64xf32>
    %167 = arith.addf %160, %166 : vector<16x64xf32>
    %cst_55 = arith.constant 0.797884583 : f32
    %168 = vector.broadcast %cst_55 : f32 to vector<16x64xf32>
    %169 = arith.mulf %168, %167 : vector<16x64xf32>
    %170 = math.tanh %169 : vector<16x64xf32>
    %cst_56 = arith.constant 1.000000e+00 : f32
    %171 = vector.broadcast %cst_56 : f32 to vector<16x64xf32>
    %172 = arith.addf %171, %170 : vector<16x64xf32>
    %173 = arith.mulf %162, %172 : vector<16x64xf32>
    %c0_57 = arith.constant 0 : index
    %c0_58 = arith.constant 0 : index
    %c0_59 = arith.constant 0 : index
    %174 = vector.load %arg9[%c0_57, %c0_58, %c0_59] : memref<2x64x32xf32, #tpu.memory_space<vmem>>, vector<1x64x32xf32>
    %175 = vector.shape_cast %174 : vector<1x64x32xf32> to vector<64x32xf32>
    %cst_60 = arith.constant dense<0.000000e+00> : vector<16x32xf32>
    %176 = tpu.matmul %173, %175, %cst_60 {dimension_numbers = #tpu.dot_dimension_numbers<[1], [0], [0], [1], [0, 0, 1, 1], [], []>} : vector<16x64xf32>, vector<64x32xf32>, vector<16x32xf32> -> vector<16x32xf32>
    %177 = vector.broadcast %15 : vector<1x32xf32> to vector<16x32xf32>
    %178 = arith.addf %176, %177 : vector<16x32xf32>
    %179 = arith.addf %153, %178 : vector<16x32xf32>
    %cst_61 = arith.constant dense<0.000000e+00> : vector<16xf32>
    %180 = vector.multi_reduction <add>, %179, %cst_61 [1] : vector<16x32xf32> to vector<16xf32>
    %181 = vector.shape_cast %180 : vector<16xf32> to vector<16x1xf32>
    %cst_62 = arith.constant 3.200000e+01 : f32
    %182 = vector.broadcast %cst_62 : f32 to vector<16x1xf32>
    %183 = arith.divf %181, %182 : vector<16x1xf32>
    %184 = vector.broadcast %183 : vector<16x1xf32> to vector<16x32xf32>
    %185 = arith.subf %179, %184 : vector<16x32xf32>
    %186 = arith.mulf %185, %185 : vector<16x32xf32>
    %cst_63 = arith.constant dense<0.000000e+00> : vector<16xf32>
    %187 = vector.multi_reduction <add>, %186, %cst_63 [1] : vector<16x32xf32> to vector<16xf32>
    %188 = vector.shape_cast %187 : vector<16xf32> to vector<16x1xf32>
    %cst_64 = arith.constant 3.200000e+01 : f32
    %189 = vector.broadcast %cst_64 : f32 to vector<16x1xf32>
    %190 = arith.divf %188, %189 : vector<16x1xf32>
    %191 = vector.broadcast %183 : vector<16x1xf32> to vector<16x32xf32>
    %192 = arith.subf %179, %191 : vector<16x32xf32>
    %cst_65 = arith.constant 9.99999996E-13 : f32
    %193 = vector.broadcast %cst_65 : f32 to vector<16x1xf32>
    %194 = arith.addf %190, %193 : vector<16x1xf32>
    %195 = math.rsqrt %194 : vector<16x1xf32>
    %196 = vector.broadcast %195 : vector<16x1xf32> to vector<16x32xf32>
    %197 = arith.mulf %192, %196 : vector<16x32xf32>
    %198 = vector.broadcast %16 : vector<1x32xf32> to vector<16x32xf32>
    %199 = arith.mulf %197, %198 : vector<16x32xf32>
    %200 = vector.broadcast %17 : vector<1x32xf32> to vector<16x32xf32>
    %201 = arith.addf %199, %200 : vector<16x32xf32>
    %c1 = arith.constant 1 : index
    %c0_66 = arith.constant 0 : index
    %c0_67 = arith.constant 0 : index
    %202 = vector.load %arg3[%c1, %c0_66, %c0_67] : memref<2x32x96xf32, #tpu.memory_space<vmem>>, vector<1x32x96xf32>
    %203 = vector.shape_cast %202 : vector<1x32x96xf32> to vector<32x96xf32>
    %cst_68 = arith.constant dense<0.000000e+00> : vector<16x96xf32>
    %204 = tpu.matmul %201, %203, %cst_68 {dimension_numbers = #tpu.dot_dimension_numbers<[1], [0], [0], [1], [0, 0, 1, 1], [], []>} : vector<16x32xf32>, vector<32x96xf32>, vector<16x96xf32> -> vector<16x96xf32>
    %c1_69 = arith.constant 1 : index
    %c0_70 = arith.constant 0 : index
    %c0_71 = arith.constant 0 : index
    %205 = vector.load %arg4[%c1_69, %c0_70, %c0_71] : memref<2x1x96xf32, #tpu.memory_space<vmem>>, vector<1x1x96xf32>
    %206 = vector.shape_cast %205 : vector<1x1x96xf32> to vector<1x96xf32>
    %207 = vector.broadcast %206 : vector<1x96xf32> to vector<16x96xf32>
    %208 = arith.addf %204, %207 : vector<16x96xf32>
    %c1_72 = arith.constant 1 : index
    %c0_73 = arith.constant 0 : index
    %c0_74 = arith.constant 0 : index
    %209 = vector.load %arg6[%c1_72, %c0_73, %c0_74] : memref<2x6x32xf32, #tpu.memory_space<vmem>>, vector<1x6x32xf32>
    %210 = vector.shape_cast %209 : vector<1x6x32xf32> to vector<6x32xf32>
    %211 = vector.extract_strided_slice %210 {offsets = [0, 0], sizes = [1, 32], strides = [1, 1]} : vector<6x32xf32> to vector<1x32xf32>
    %212 = vector.extract_strided_slice %210 {offsets = [1, 0], sizes = [1, 32], strides = [1, 1]} : vector<6x32xf32> to vector<1x32xf32>
    %213 = vector.extract_strided_slice %210 {offsets = [2, 0], sizes = [1, 32], strides = [1, 1]} : vector<6x32xf32> to vector<1x32xf32>
    %214 = vector.extract_strided_slice %210 {offsets = [3, 0], sizes = [1, 32], strides = [1, 1]} : vector<6x32xf32> to vector<1x32xf32>
    %215 = vector.extract_strided_slice %210 {offsets = [4, 0], sizes = [1, 32], strides = [1, 1]} : vector<6x32xf32> to vector<1x32xf32>
    %216 = vector.extract_strided_slice %210 {offsets = [5, 0], sizes = [1, 32], strides = [1, 1]} : vector<6x32xf32> to vector<1x32xf32>
    %c1_75 = arith.constant 1 : index
    %c0_76 = arith.constant 0 : index
    %c0_77 = arith.constant 0 : index
    %217 = vector.load %arg5[%c1_75, %c0_76, %c0_77] : memref<2x32x32xf32, #tpu.memory_space<vmem>>, vector<1x32x32xf32>
    %218 = vector.shape_cast %217 : vector<1x32x32xf32> to vector<32x32xf32>
    %cst_78 = arith.constant 0.000000e+00 : f32
    %219 = vector.broadcast %cst_78 : f32 to vector<16x32xf32>
    %220 = vector.extract_strided_slice %208 {offsets = [0, 0], sizes = [16, 8], strides = [1, 1]} : vector<16x96xf32> to vector<16x8xf32>
    %221 = vector.shape_cast %220 : vector<16x8xf32> to vector<2x8x8xf32>
    %222 = vector.extract_strided_slice %208 {offsets = [0, 32], sizes = [16, 8], strides = [1, 1]} : vector<16x96xf32> to vector<16x8xf32>
    %223 = vector.shape_cast %222 : vector<16x8xf32> to vector<2x8x8xf32>
    %224 = vector.extract_strided_slice %208 {offsets = [0, 64], sizes = [16, 8], strides = [1, 1]} : vector<16x96xf32> to vector<16x8xf32>
    %225 = vector.shape_cast %224 : vector<16x8xf32> to vector<2x8x8xf32>
    "tpu.trace_start"() <{level = 10 : i32, message = "bqd,bkd->bqk"}> : () -> ()
    %cst_79 = arith.constant dense<0.000000e+00> : vector<2x8x8xf32>
    %226 = tpu.matmul %221, %223, %cst_79 {dimension_numbers = #tpu.dot_dimension_numbers<[2], [2], [1], [1], [0, 0, 0, 1, 1, 1], [0], [0]>} : vector<2x8x8xf32>, vector<2x8x8xf32>, vector<2x8x8xf32> -> vector<2x8x8xf32>
    "tpu.trace_stop"() : () -> ()
    %cst_80 = arith.constant 0.353553385 : f32
    %227 = vector.broadcast %cst_80 : f32 to vector<2x8x8xf32>
    %228 = arith.mulf %226, %227 : vector<2x8x8xf32>
    %229 = vector.shape_cast %0 : vector<2x8xf32> to vector<2x1x8xf32>
    %230 = vector.broadcast %229 : vector<2x1x8xf32> to vector<2x8x8xf32>
    %231 = arith.addf %228, %230 : vector<2x8x8xf32>
    %cst_81 = arith.constant dense<0xFF800000> : vector<2x8xf32>
    %232 = vector.multi_reduction <maximumf>, %231, %cst_81 [2] : vector<2x8x8xf32> to vector<2x8xf32>
    %233 = vector.shape_cast %232 : vector<2x8xf32> to vector<2x8x1xf32>
    %234 = vector.broadcast %233 : vector<2x8x1xf32> to vector<2x8x8xf32>
    %235 = arith.subf %231, %234 : vector<2x8x8xf32>
    %236 = math.exp %235 : vector<2x8x8xf32>
    %cst_82 = arith.constant dense<0.000000e+00> : vector<2x8xf32>
    %237 = vector.multi_reduction <add>, %236, %cst_82 [2] : vector<2x8x8xf32> to vector<2x8xf32>
    %238 = vector.shape_cast %237 : vector<2x8xf32> to vector<2x8x1xf32>
    %239 = tpu.reciprocal %238 {approx = true} : vector<2x8x1xf32> -> vector<2x8x1xf32>
    %240 = vector.broadcast %239 : vector<2x8x1xf32> to vector<2x8x8xf32>
    %241 = arith.mulf %236, %240 : vector<2x8x8xf32>
    "tpu.trace_start"() <{level = 10 : i32, message = "bqk,bkd->bqd"}> : () -> ()
    %cst_83 = arith.constant dense<0.000000e+00> : vector<2x8x8xf32>
    %242 = tpu.matmul %241, %225, %cst_83 {dimension_numbers = #tpu.dot_dimension_numbers<[2], [1], [1], [2], [0, 0, 0, 1, 1, 2], [0], [0]>} : vector<2x8x8xf32>, vector<2x8x8xf32>, vector<2x8x8xf32> -> vector<2x8x8xf32>
    "tpu.trace_stop"() : () -> ()
    %243 = vector.shape_cast %242 : vector<2x8x8xf32> to vector<16x8xf32>
    %244 = vector.extract_strided_slice %218 {offsets = [0, 0], sizes = [8, 32], strides = [1, 1]} : vector<32x32xf32> to vector<8x32xf32>
    %cst_84 = arith.constant dense<0.000000e+00> : vector<16x32xf32>
    %245 = tpu.matmul %243, %244, %cst_84 {dimension_numbers = #tpu.dot_dimension_numbers<[1], [0], [0], [1], [0, 0, 1, 1], [], []>} : vector<16x8xf32>, vector<8x32xf32>, vector<16x32xf32> -> vector<16x32xf32>
    %246 = arith.addf %219, %245 : vector<16x32xf32>
    %247 = vector.extract_strided_slice %208 {offsets = [0, 8], sizes = [16, 8], strides = [1, 1]} : vector<16x96xf32> to vector<16x8xf32>
    %248 = vector.shape_cast %247 : vector<16x8xf32> to vector<2x8x8xf32>
    %249 = vector.extract_strided_slice %208 {offsets = [0, 40], sizes = [16, 8], strides = [1, 1]} : vector<16x96xf32> to vector<16x8xf32>
    %250 = vector.shape_cast %249 : vector<16x8xf32> to vector<2x8x8xf32>
    %251 = vector.extract_strided_slice %208 {offsets = [0, 72], sizes = [16, 8], strides = [1, 1]} : vector<16x96xf32> to vector<16x8xf32>
    %252 = vector.shape_cast %251 : vector<16x8xf32> to vector<2x8x8xf32>
    "tpu.trace_start"() <{level = 10 : i32, message = "bqd,bkd->bqk"}> : () -> ()
    %cst_85 = arith.constant dense<0.000000e+00> : vector<2x8x8xf32>
    %253 = tpu.matmul %248, %250, %cst_85 {dimension_numbers = #tpu.dot_dimension_numbers<[2], [2], [1], [1], [0, 0, 0, 1, 1, 1], [0], [0]>} : vector<2x8x8xf32>, vector<2x8x8xf32>, vector<2x8x8xf32> -> vector<2x8x8xf32>
    "tpu.trace_stop"() : () -> ()
    %cst_86 = arith.constant 0.353553385 : f32
    %254 = vector.broadcast %cst_86 : f32 to vector<2x8x8xf32>
    %255 = arith.mulf %253, %254 : vector<2x8x8xf32>
    %256 = vector.shape_cast %0 : vector<2x8xf32> to vector<2x1x8xf32>
    %257 = vector.broadcast %256 : vector<2x1x8xf32> to vector<2x8x8xf32>
    %258 = arith.addf %255, %257 : vector<2x8x8xf32>
    %cst_87 = arith.constant dense<0xFF800000> : vector<2x8xf32>
    %259 = vector.multi_reduction <maximumf>, %258, %cst_87 [2] : vector<2x8x8xf32> to vector<2x8xf32>
    %260 = vector.shape_cast %259 : vector<2x8xf32> to vector<2x8x1xf32>
    %261 = vector.broadcast %260 : vector<2x8x1xf32> to vector<2x8x8xf32>
    %262 = arith.subf %258, %261 : vector<2x8x8xf32>
    %263 = math.exp %262 : vector<2x8x8xf32>
    %cst_88 = arith.constant dense<0.000000e+00> : vector<2x8xf32>
    %264 = vector.multi_reduction <add>, %263, %cst_88 [2] : vector<2x8x8xf32> to vector<2x8xf32>
    %265 = vector.shape_cast %264 : vector<2x8xf32> to vector<2x8x1xf32>
    %266 = tpu.reciprocal %265 {approx = true} : vector<2x8x1xf32> -> vector<2x8x1xf32>
    %267 = vector.broadcast %266 : vector<2x8x1xf32> to vector<2x8x8xf32>
    %268 = arith.mulf %263, %267 : vector<2x8x8xf32>
    "tpu.trace_start"() <{level = 10 : i32, message = "bqk,bkd->bqd"}> : () -> ()
    %cst_89 = arith.constant dense<0.000000e+00> : vector<2x8x8xf32>
    %269 = tpu.matmul %268, %252, %cst_89 {dimension_numbers = #tpu.dot_dimension_numbers<[2], [1], [1], [2], [0, 0, 0, 1, 1, 2], [0], [0]>} : vector<2x8x8xf32>, vector<2x8x8xf32>, vector<2x8x8xf32> -> vector<2x8x8xf32>
    "tpu.trace_stop"() : () -> ()
    %270 = vector.shape_cast %269 : vector<2x8x8xf32> to vector<16x8xf32>
    %271 = vector.extract_strided_slice %218 {offsets = [8, 0], sizes = [8, 32], strides = [1, 1]} : vector<32x32xf32> to vector<8x32xf32>
    %cst_90 = arith.constant dense<0.000000e+00> : vector<16x32xf32>
    %272 = tpu.matmul %270, %271, %cst_90 {dimension_numbers = #tpu.dot_dimension_numbers<[1], [0], [0], [1], [0, 0, 1, 1], [], []>} : vector<16x8xf32>, vector<8x32xf32>, vector<16x32xf32> -> vector<16x32xf32>
    %273 = arith.addf %246, %272 : vector<16x32xf32>
    %274 = vector.extract_strided_slice %208 {offsets = [0, 16], sizes = [16, 8], strides = [1, 1]} : vector<16x96xf32> to vector<16x8xf32>
    %275 = vector.shape_cast %274 : vector<16x8xf32> to vector<2x8x8xf32>
    %276 = vector.extract_strided_slice %208 {offsets = [0, 48], sizes = [16, 8], strides = [1, 1]} : vector<16x96xf32> to vector<16x8xf32>
    %277 = vector.shape_cast %276 : vector<16x8xf32> to vector<2x8x8xf32>
    %278 = vector.extract_strided_slice %208 {offsets = [0, 80], sizes = [16, 8], strides = [1, 1]} : vector<16x96xf32> to vector<16x8xf32>
    %279 = vector.shape_cast %278 : vector<16x8xf32> to vector<2x8x8xf32>
    "tpu.trace_start"() <{level = 10 : i32, message = "bqd,bkd->bqk"}> : () -> ()
    %cst_91 = arith.constant dense<0.000000e+00> : vector<2x8x8xf32>
    %280 = tpu.matmul %275, %277, %cst_91 {dimension_numbers = #tpu.dot_dimension_numbers<[2], [2], [1], [1], [0, 0, 0, 1, 1, 1], [0], [0]>} : vector<2x8x8xf32>, vector<2x8x8xf32>, vector<2x8x8xf32> -> vector<2x8x8xf32>
    "tpu.trace_stop"() : () -> ()
    %cst_92 = arith.constant 0.353553385 : f32
    %281 = vector.broadcast %cst_92 : f32 to vector<2x8x8xf32>
    %282 = arith.mulf %280, %281 : vector<2x8x8xf32>
    %283 = vector.shape_cast %0 : vector<2x8xf32> to vector<2x1x8xf32>
    %284 = vector.broadcast %283 : vector<2x1x8xf32> to vector<2x8x8xf32>
    %285 = arith.addf %282, %284 : vector<2x8x8xf32>
    %cst_93 = arith.constant dense<0xFF800000> : vector<2x8xf32>
    %286 = vector.multi_reduction <maximumf>, %285, %cst_93 [2] : vector<2x8x8xf32> to vector<2x8xf32>
    %287 = vector.shape_cast %286 : vector<2x8xf32> to vector<2x8x1xf32>
    %288 = vector.broadcast %287 : vector<2x8x1xf32> to vector<2x8x8xf32>
    %289 = arith.subf %285, %288 : vector<2x8x8xf32>
    %290 = math.exp %289 : vector<2x8x8xf32>
    %cst_94 = arith.constant dense<0.000000e+00> : vector<2x8xf32>
    %291 = vector.multi_reduction <add>, %290, %cst_94 [2] : vector<2x8x8xf32> to vector<2x8xf32>
    %292 = vector.shape_cast %291 : vector<2x8xf32> to vector<2x8x1xf32>
    %293 = tpu.reciprocal %292 {approx = true} : vector<2x8x1xf32> -> vector<2x8x1xf32>
    %294 = vector.broadcast %293 : vector<2x8x1xf32> to vector<2x8x8xf32>
    %295 = arith.mulf %290, %294 : vector<2x8x8xf32>
    "tpu.trace_start"() <{level = 10 : i32, message = "bqk,bkd->bqd"}> : () -> ()
    %cst_95 = arith.constant dense<0.000000e+00> : vector<2x8x8xf32>
    %296 = tpu.matmul %295, %279, %cst_95 {dimension_numbers = #tpu.dot_dimension_numbers<[2], [1], [1], [2], [0, 0, 0, 1, 1, 2], [0], [0]>} : vector<2x8x8xf32>, vector<2x8x8xf32>, vector<2x8x8xf32> -> vector<2x8x8xf32>
    "tpu.trace_stop"() : () -> ()
    %297 = vector.shape_cast %296 : vector<2x8x8xf32> to vector<16x8xf32>
    %298 = vector.extract_strided_slice %218 {offsets = [16, 0], sizes = [8, 32], strides = [1, 1]} : vector<32x32xf32> to vector<8x32xf32>
    %cst_96 = arith.constant dense<0.000000e+00> : vector<16x32xf32>
    %299 = tpu.matmul %297, %298, %cst_96 {dimension_numbers = #tpu.dot_dimension_numbers<[1], [0], [0], [1], [0, 0, 1, 1], [], []>} : vector<16x8xf32>, vector<8x32xf32>, vector<16x32xf32> -> vector<16x32xf32>
    %300 = arith.addf %273, %299 : vector<16x32xf32>
    %301 = vector.extract_strided_slice %208 {offsets = [0, 24], sizes = [16, 8], strides = [1, 1]} : vector<16x96xf32> to vector<16x8xf32>
    %302 = vector.shape_cast %301 : vector<16x8xf32> to vector<2x8x8xf32>
    %303 = vector.extract_strided_slice %208 {offsets = [0, 56], sizes = [16, 8], strides = [1, 1]} : vector<16x96xf32> to vector<16x8xf32>
    %304 = vector.shape_cast %303 : vector<16x8xf32> to vector<2x8x8xf32>
    %305 = vector.extract_strided_slice %208 {offsets = [0, 88], sizes = [16, 8], strides = [1, 1]} : vector<16x96xf32> to vector<16x8xf32>
    %306 = vector.shape_cast %305 : vector<16x8xf32> to vector<2x8x8xf32>
    "tpu.trace_start"() <{level = 10 : i32, message = "bqd,bkd->bqk"}> : () -> ()
    %cst_97 = arith.constant dense<0.000000e+00> : vector<2x8x8xf32>
    %307 = tpu.matmul %302, %304, %cst_97 {dimension_numbers = #tpu.dot_dimension_numbers<[2], [2], [1], [1], [0, 0, 0, 1, 1, 1], [0], [0]>} : vector<2x8x8xf32>, vector<2x8x8xf32>, vector<2x8x8xf32> -> vector<2x8x8xf32>
    "tpu.trace_stop"() : () -> ()
    %cst_98 = arith.constant 0.353553385 : f32
    %308 = vector.broadcast %cst_98 : f32 to vector<2x8x8xf32>
    %309 = arith.mulf %307, %308 : vector<2x8x8xf32>
    %310 = vector.shape_cast %0 : vector<2x8xf32> to vector<2x1x8xf32>
    %311 = vector.broadcast %310 : vector<2x1x8xf32> to vector<2x8x8xf32>
    %312 = arith.addf %309, %311 : vector<2x8x8xf32>
    %cst_99 = arith.constant dense<0xFF800000> : vector<2x8xf32>
    %313 = vector.multi_reduction <maximumf>, %312, %cst_99 [2] : vector<2x8x8xf32> to vector<2x8xf32>
    %314 = vector.shape_cast %313 : vector<2x8xf32> to vector<2x8x1xf32>
    %315 = vector.broadcast %314 : vector<2x8x1xf32> to vector<2x8x8xf32>
    %316 = arith.subf %312, %315 : vector<2x8x8xf32>
    %317 = math.exp %316 : vector<2x8x8xf32>
    %cst_100 = arith.constant dense<0.000000e+00> : vector<2x8xf32>
    %318 = vector.multi_reduction <add>, %317, %cst_100 [2] : vector<2x8x8xf32> to vector<2x8xf32>
    %319 = vector.shape_cast %318 : vector<2x8xf32> to vector<2x8x1xf32>
    %320 = tpu.reciprocal %319 {approx = true} : vector<2x8x1xf32> -> vector<2x8x1xf32>
    %321 = vector.broadcast %320 : vector<2x8x1xf32> to vector<2x8x8xf32>
    %322 = arith.mulf %317, %321 : vector<2x8x8xf32>
    "tpu.trace_start"() <{level = 10 : i32, message = "bqk,bkd->bqd"}> : () -> ()
    %cst_101 = arith.constant dense<0.000000e+00> : vector<2x8x8xf32>
    %323 = tpu.matmul %322, %306, %cst_101 {dimension_numbers = #tpu.dot_dimension_numbers<[2], [1], [1], [2], [0, 0, 0, 1, 1, 2], [0], [0]>} : vector<2x8x8xf32>, vector<2x8x8xf32>, vector<2x8x8xf32> -> vector<2x8x8xf32>
    "tpu.trace_stop"() : () -> ()
    %324 = vector.shape_cast %323 : vector<2x8x8xf32> to vector<16x8xf32>
    %325 = vector.extract_strided_slice %218 {offsets = [24, 0], sizes = [8, 32], strides = [1, 1]} : vector<32x32xf32> to vector<8x32xf32>
    %cst_102 = arith.constant dense<0.000000e+00> : vector<16x32xf32>
    %326 = tpu.matmul %324, %325, %cst_102 {dimension_numbers = #tpu.dot_dimension_numbers<[1], [0], [0], [1], [0, 0, 1, 1], [], []>} : vector<16x8xf32>, vector<8x32xf32>, vector<16x32xf32> -> vector<16x32xf32>
    %327 = arith.addf %300, %326 : vector<16x32xf32>
    %328 = vector.broadcast %211 : vector<1x32xf32> to vector<16x32xf32>
    %329 = arith.addf %327, %328 : vector<16x32xf32>
    %330 = arith.addf %201, %329 : vector<16x32xf32>
    %cst_103 = arith.constant dense<0.000000e+00> : vector<16xf32>
    %331 = vector.multi_reduction <add>, %330, %cst_103 [1] : vector<16x32xf32> to vector<16xf32>
    %332 = vector.shape_cast %331 : vector<16xf32> to vector<16x1xf32>
    %cst_104 = arith.constant 3.200000e+01 : f32
    %333 = vector.broadcast %cst_104 : f32 to vector<16x1xf32>
    %334 = arith.divf %332, %333 : vector<16x1xf32>
    %335 = vector.broadcast %334 : vector<16x1xf32> to vector<16x32xf32>
    %336 = arith.subf %330, %335 : vector<16x32xf32>
    %337 = arith.mulf %336, %336 : vector<16x32xf32>
    %cst_105 = arith.constant dense<0.000000e+00> : vector<16xf32>
    %338 = vector.multi_reduction <add>, %337, %cst_105 [1] : vector<16x32xf32> to vector<16xf32>
    %339 = vector.shape_cast %338 : vector<16xf32> to vector<16x1xf32>
    %cst_106 = arith.constant 3.200000e+01 : f32
    %340 = vector.broadcast %cst_106 : f32 to vector<16x1xf32>
    %341 = arith.divf %339, %340 : vector<16x1xf32>
    %342 = vector.broadcast %334 : vector<16x1xf32> to vector<16x32xf32>
    %343 = arith.subf %330, %342 : vector<16x32xf32>
    %cst_107 = arith.constant 9.99999996E-13 : f32
    %344 = vector.broadcast %cst_107 : f32 to vector<16x1xf32>
    %345 = arith.addf %341, %344 : vector<16x1xf32>
    %346 = math.rsqrt %345 : vector<16x1xf32>
    %347 = vector.broadcast %346 : vector<16x1xf32> to vector<16x32xf32>
    %348 = arith.mulf %343, %347 : vector<16x32xf32>
    %349 = vector.broadcast %212 : vector<1x32xf32> to vector<16x32xf32>
    %350 = arith.mulf %348, %349 : vector<16x32xf32>
    %351 = vector.broadcast %213 : vector<1x32xf32> to vector<16x32xf32>
    %352 = arith.addf %350, %351 : vector<16x32xf32>
    %c1_108 = arith.constant 1 : index
    %c0_109 = arith.constant 0 : index
    %c0_110 = arith.constant 0 : index
    %353 = vector.load %arg7[%c1_108, %c0_109, %c0_110] : memref<2x32x64xf32, #tpu.memory_space<vmem>>, vector<1x32x64xf32>
    %354 = vector.shape_cast %353 : vector<1x32x64xf32> to vector<32x64xf32>
    %cst_111 = arith.constant dense<0.000000e+00> : vector<16x64xf32>
    %355 = tpu.matmul %352, %354, %cst_111 {dimension_numbers = #tpu.dot_dimension_numbers<[1], [0], [0], [1], [0, 0, 1, 1], [], []>} : vector<16x32xf32>, vector<32x64xf32>, vector<16x64xf32> -> vector<16x64xf32>
    %c1_112 = arith.constant 1 : index
    %c0_113 = arith.constant 0 : index
    %c0_114 = arith.constant 0 : index
    %356 = vector.load %arg8[%c1_112, %c0_113, %c0_114] : memref<2x1x64xf32, #tpu.memory_space<vmem>>, vector<1x1x64xf32>
    %357 = vector.shape_cast %356 : vector<1x1x64xf32> to vector<1x64xf32>
    %358 = vector.broadcast %357 : vector<1x64xf32> to vector<16x64xf32>
    %359 = arith.addf %355, %358 : vector<16x64xf32>
    %cst_115 = arith.constant 5.000000e-01 : f32
    %360 = vector.broadcast %cst_115 : f32 to vector<16x64xf32>
    %361 = arith.mulf %360, %359 : vector<16x64xf32>
    %cst_116 = arith.constant 4.471500e-02 : f32
    %362 = vector.broadcast %cst_116 : f32 to vector<16x64xf32>
    %363 = arith.mulf %362, %359 : vector<16x64xf32>
    %364 = arith.mulf %363, %359 : vector<16x64xf32>
    %365 = arith.mulf %364, %359 : vector<16x64xf32>
    %366 = arith.addf %359, %365 : vector<16x64xf32>
    %cst_117 = arith.constant 0.797884583 : f32
    %367 = vector.broadcast %cst_117 : f32 to vector<16x64xf32>
    %368 = arith.mulf %367, %366 : vector<16x64xf32>
    %369 = math.tanh %368 : vector<16x64xf32>
    %cst_118 = arith.constant 1.000000e+00 : f32
    %370 = vector.broadcast %cst_118 : f32 to vector<16x64xf32>
    %371 = arith.addf %370, %369 : vector<16x64xf32>
    %372 = arith.mulf %361, %371 : vector<16x64xf32>
    %c1_119 = arith.constant 1 : index
    %c0_120 = arith.constant 0 : index
    %c0_121 = arith.constant 0 : index
    %373 = vector.load %arg9[%c1_119, %c0_120, %c0_121] : memref<2x64x32xf32, #tpu.memory_space<vmem>>, vector<1x64x32xf32>
    %374 = vector.shape_cast %373 : vector<1x64x32xf32> to vector<64x32xf32>
    %cst_122 = arith.constant dense<0.000000e+00> : vector<16x32xf32>
    %375 = tpu.matmul %372, %374, %cst_122 {dimension_numbers = #tpu.dot_dimension_numbers<[1], [0], [0], [1], [0, 0, 1, 1], [], []>} : vector<16x64xf32>, vector<64x32xf32>, vector<16x32xf32> -> vector<16x32xf32>
    %376 = vector.broadcast %214 : vector<1x32xf32> to vector<16x32xf32>
    %377 = arith.addf %375, %376 : vector<16x32xf32>
    %378 = arith.addf %352, %377 : vector<16x32xf32>
    %cst_123 = arith.constant dense<0.000000e+00> : vector<16xf32>
    %379 = vector.multi_reduction <add>, %378, %cst_123 [1] : vector<16x32xf32> to vector<16xf32>
    %380 = vector.shape_cast %379 : vector<16xf32> to vector<16x1xf32>
    %cst_124 = arith.constant 3.200000e+01 : f32
    %381 = vector.broadcast %cst_124 : f32 to vector<16x1xf32>
    %382 = arith.divf %380, %381 : vector<16x1xf32>
    %383 = vector.broadcast %382 : vector<16x1xf32> to vector<16x32xf32>
    %384 = arith.subf %378, %383 : vector<16x32xf32>
    %385 = arith.mulf %384, %384 : vector<16x32xf32>
    %cst_125 = arith.constant dense<0.000000e+00> : vector<16xf32>
    %386 = vector.multi_reduction <add>, %385, %cst_125 [1] : vector<16x32xf32> to vector<16xf32>
    %387 = vector.shape_cast %386 : vector<16xf32> to vector<16x1xf32>
    %cst_126 = arith.constant 3.200000e+01 : f32
    %388 = vector.broadcast %cst_126 : f32 to vector<16x1xf32>
    %389 = arith.divf %387, %388 : vector<16x1xf32>
    %390 = vector.broadcast %382 : vector<16x1xf32> to vector<16x32xf32>
    %391 = arith.subf %378, %390 : vector<16x32xf32>
    %cst_127 = arith.constant 9.99999996E-13 : f32
    %392 = vector.broadcast %cst_127 : f32 to vector<16x1xf32>
    %393 = arith.addf %389, %392 : vector<16x1xf32>
    %394 = math.rsqrt %393 : vector<16x1xf32>
    %395 = vector.broadcast %394 : vector<16x1xf32> to vector<16x32xf32>
    %396 = arith.mulf %391, %395 : vector<16x32xf32>
    %397 = vector.broadcast %215 : vector<1x32xf32> to vector<16x32xf32>
    %398 = arith.mulf %396, %397 : vector<16x32xf32>
    %399 = vector.broadcast %216 : vector<1x32xf32> to vector<16x32xf32>
    %400 = arith.addf %398, %399 : vector<16x32xf32>
    %401 = vector.shape_cast %400 : vector<16x32xf32> to vector<2x8x32xf32>
    %402 = vector.extract_strided_slice %401 {offsets = [0, 0, 0], sizes = [2, 1, 32], strides = [1, 1, 1]} : vector<2x8x32xf32> to vector<2x1x32xf32>
    %403 = vector.shape_cast %402 : vector<2x1x32xf32> to vector<2x32xf32>
    %c0_128 = arith.constant 0 : index
    %c0_129 = arith.constant 0 : index
    %404 = vector.load %arg10[%c0_128, %c0_129] : memref<2x32xf32, #tpu.memory_space<vmem>>, vector<2x32xf32>
    tpu.vector_store %arg10[%c0_128, %c0_129], %403 {strides = array<i32>} : memref<2x32xf32, #tpu.memory_space<vmem>>, vector<2x32xf32>,
    return
  }
  func.func @transform_0(%arg0: i32) -> (i32, i32, i32) {
    %c0_i32 = arith.constant 0 : i32
    %c0_i32_0 = arith.constant 0 : i32
    %c0_i32_1 = arith.constant 0 : i32
    %c0_i32_2 = arith.constant 0 : i32
    return %c0_i32, %c0_i32_0, %c0_i32_1 : i32, i32, i32
  }
  func.func @transform_1(%arg0: i32) -> (i32, i32) {
    %c0_i32 = arith.constant 0 : i32
    %c0_i32_0 = arith.constant 0 : i32
    %c0_i32_1 = arith.constant 0 : i32
    return %c0_i32, %c0_i32_0 : i32, i32
  }
  func.func @transform_2(%arg0: i32) -> (i32, i32, i32) {
    %c0_i32 = arith.constant 0 : i32
    %c0_i32_0 = arith.constant 0 : i32
    %c0_i32_1 = arith.constant 0 : i32
    %c0_i32_2 = arith.constant 0 : i32
    return %c0_i32, %c0_i32_0, %c0_i32_1 : i32, i32, i32
  }
  func.func @transform_3(%arg0: i32) -> (i32, i32, i32) {
    %c0_i32 = arith.constant 0 : i32
    %c0_i32_0 = arith.constant 0 : i32
    %c0_i32_1 = arith.constant 0 : i32
    %c0_i32_2 = arith.constant 0 : i32
    return %c0_i32, %c0_i32_0, %c0_i32_1 : i32, i32, i32
  }
  func.func @transform_4(%arg0: i32) -> (i32, i32, i32) {
    %c0_i32 = arith.constant 0 : i32
    %c0_i32_0 = arith.constant 0 : i32
    %c0_i32_1 = arith.constant 0 : i32
    %c0_i32_2 = arith.constant 0 : i32
    return %c0_i32, %c0_i32_0, %c0_i32_1 : i32, i32, i32
  }
  func.func @transform_5(%arg0: i32) -> (i32, i32, i32) {
    %c0_i32 = arith.constant 0 : i32
    %c0_i32_0 = arith.constant 0 : i32
    %c0_i32_1 = arith.constant 0 : i32
    %c0_i32_2 = arith.constant 0 : i32
    return %c0_i32, %c0_i32_0, %c0_i32_1 : i32, i32, i32
  }
  func.func @transform_6(%arg0: i32) -> (i32, i32, i32) {
    %c0_i32 = arith.constant 0 : i32
    %c0_i32_0 = arith.constant 0 : i32
    %c0_i32_1 = arith.constant 0 : i32
    %c0_i32_2 = arith.constant 0 : i32
    return %c0_i32, %c0_i32_0, %c0_i32_1 : i32, i32, i32
  }
  func.func @transform_7(%arg0: i32) -> (i32, i32, i32) {
    %c0_i32 = arith.constant 0 : i32
    %c0_i32_0 = arith.constant 0 : i32
    %c0_i32_1 = arith.constant 0 : i32
    %c0_i32_2 = arith.constant 0 : i32
    return %c0_i32, %c0_i32_0, %c0_i32_1 : i32, i32, i32
  }
  func.func @transform_8(%arg0: i32) -> (i32, i32, i32) {
    %c0_i32 = arith.constant 0 : i32
    %c0_i32_0 = arith.constant 0 : i32
    %c0_i32_1 = arith.constant 0 : i32
    %c0_i32_2 = arith.constant 0 : i32
    return %c0_i32, %c0_i32_0, %c0_i32_1 : i32, i32, i32
  }
  func.func @transform_9(%arg0: i32) -> (i32, i32) {
    %c0_i32 = arith.constant 0 : i32
    %c0_i32_0 = arith.constant 0 : i32
    %c0_i32_1 = arith.constant 0 : i32
    return %c0_i32, %c0_i32_0 : i32, i32
  }
}

</mosaic_0001>

<llo_original>
// kernel: encoder_forward.1
$region0: #{encoder_forward.1}
  #allocation0 [shape = 'u32[]', space=smem, size = 0x4, offset = 0x4, fixed_abs, tag = 'smem constant byte address 0x4 - core index']
  #allocation1 [shape = 'u32[144,128]{1,0:T(1,128)}', space=vmem, size = 0x12000, scoped, tag = 'internal scratch']
  %s0 = inlined_call_operand.vmem [shape: f32[2,8,32], index: 0, kind: input, shape index: {}]
  %s1 = inlined_call_operand.vmem [shape: f32[2,8], index: 1, kind: input, shape index: {}]
  %s2 = inlined_call_operand.vmem [shape: f32[2,32,96], index: 2, kind: input, shape index: {}]
  %s3 = inlined_call_operand.vmem [shape: f32[2,1,96], index: 3, kind: input, shape index: {}]
  %s4 = inlined_call_operand.vmem [shape: f32[2,32,32], index: 4, kind: input, shape index: {}]
  %s5 = inlined_call_operand.vmem [shape: f32[2,6,32], index: 5, kind: input, shape index: {}]
  %s6 = inlined_call_operand.vmem [shape: f32[2,32,64], index: 6, kind: input, shape index: {}]
  %s7 = inlined_call_operand.vmem [shape: f32[2,1,64], index: 7, kind: input, shape index: {}]
  %s8 = inlined_call_operand.vmem [shape: f32[2,64,32], index: 8, kind: input, shape index: {}]
  %s9 = inlined_call_operand.hbm [shape: f32[2,32], index: 9, kind: output, shape index: {}]
  %s10 = sld [smem:[#allocation0]]
  $region46: #{encoder_forward.1} parent=0
    _
  %s12 = ssub.s32 1, %s10
  %s13 = scalar_select 0, %s12, %s10
  $region1: #{encoder_forward.1} parent=0
    #allocation2 [shape = 'u8[1024]{0}', space=vmem, size = 0x400, scoped, tag = 'output window, operand 0, single buffered']
    #allocation3 [shape = 's32[1]{0}', space=sflag, size = 0x4, scoped, tag = 'scoped memory for encoder_forward.1']
    %14 = vsyncpa [#allocation3], 0
    // Predicated region
    $region2: #{encoder_forward.1} parent=1 // pred_check
      _
    $region3: #{encoder_forward.1} parent=1 // pred_check_branch
      %16 = sbr.rel (0) target = $region5
    $region4: #{encoder_forward.1} parent=1 // pred_region
      _
    $region5: #{encoder_forward.1} parent=1 // pred_fallthru
      _
    // Predicated region
    $region6: #{encoder_forward.1} parent=1 // pred_check
      _
    $region7: #{encoder_forward.1} parent=1 // pred_check_branch
      %18 = sbr.rel (0) target = $region9
    $region8: #{encoder_forward.1} parent=1 // pred_region
      _
    $region9: #{encoder_forward.1} parent=1 // pred_fallthru
      _
    // Predicated region
    $region10: #{encoder_forward.1} parent=1 // pred_check
      _
    $region11: #{encoder_forward.1} parent=1 // pred_check_branch
      %20 = sbr.rel (0) target = $region13
    $region12: #{encoder_forward.1} parent=1 // pred_region
      _
    $region13: #{encoder_forward.1} parent=1 // pred_fallthru
      _
    // Predicated region
    $region14: #{encoder_forward.1} parent=1 // pred_check
      _
    $region15: #{encoder_forward.1} parent=1 // pred_check_branch
      %22 = sbr.rel (0) target = $region17
    $region16: #{encoder_forward.1} parent=1 // pred_region
      _
    $region17: #{encoder_forward.1} parent=1 // pred_fallthru
      _
    // Predicated region
    $region18: #{encoder_forward.1} parent=1 // pred_check
      _
    $region19: #{encoder_forward.1} parent=1 // pred_check_branch
      %24 = sbr.rel (0) target = $region21
    $region20: #{encoder_forward.1} parent=1 // pred_region
      _
    $region21: #{encoder_forward.1} parent=1 // pred_fallthru
      _
    // Predicated region
    $region22: #{encoder_forward.1} parent=1 // pred_check
      _
    $region23: #{encoder_forward.1} parent=1 // pred_check_branch
      %26 = sbr.rel (0) target = $region25
    $region24: #{encoder_forward.1} parent=1 // pred_region
      _
    $region25: #{encoder_forward.1} parent=1 // pred_fallthru
      _
    // Predicated region
    $region26: #{encoder_forward.1} parent=1 // pred_check
      _
    $region27: #{encoder_forward.1} parent=1 // pred_check_branch
      %28 = sbr.rel (0) target = $region29
    $region28: #{encoder_forward.1} parent=1 // pred_region
      _
    $region29: #{encoder_forward.1} parent=1 // pred_fallthru
      _
    // Predicated region
    $region30: #{encoder_forward.1} parent=1 // pred_check
      _
    $region31: #{encoder_forward.1} parent=1 // pred_check_branch
      %30 = sbr.rel (0) target = $region33
    $region32: #{encoder_forward.1} parent=1 // pred_region
      _
    $region33: #{encoder_forward.1} parent=1 // pred_fallthru
      _
    // Predicated region
    $region34: #{encoder_forward.1} parent=1 // pred_check
      _
    $region35: #{encoder_forward.1} parent=1 // pred_check_branch
      %32 = sbr.rel (0) target = $region37
    $region36: #{encoder_forward.1} parent=1 // pred_region
      _
    $region37: #{encoder_forward.1} parent=1 // pred_fallthru
      _
    %v33 = vld [vmem:[%s1] sm:$0x3]
    %v34 = vld [vmem:[%s0] sm:$0xff]
    %v35 = vld [vmem:[%s0 + $0x8] sm:$0xff]
    %v36 = vld [vmem:[%s2] sm:$0xff]
    %v37 = vld [vmem:[%s2 + $0x8] sm:$0xff]
    %v38 = vld [vmem:[%s2 + $0x10] sm:$0xff]
    %v39 = vld [vmem:[%s2 + $0x18] sm:$0xff]
    %v40 = vld [vmem:[%s3] sm:$0x1]
    %v42 = vlaneseq
    %v43 = vshrl.u32 %v42, 7
    %v44 = vsub.s32 0, %v43
    %v45 = vrot.slane %v40, %v44
    %vm47 = vcmask 261120
    %v49 = vsel %vm47, %v34, 0
    %v52 = vsel %vm47, %v35, 0
    %54 = vmatprep.subr.mxu0 0.0
    %55 = vmatpush1.msra.mxu0 0.0
    %56 = vmatprep.subr.mxu0 0.0
    %57 = vmatpush1.msra.mxu0 0.0
    %58 = vmatprep.subr.mxu0 0.0
    %59 = vmatpush1.msra.mxu0 0.0
    %60 = vmatprep.subr.mxu0 0.0
    %61 = vmatpush1.msra.mxu0 0.0
    %62 = vmatprep.subr.mxu0 0.0
    %63 = vmatpush1.msra.mxu0 0.0
    %64 = vmatprep.subr.mxu0 0.0
    %65 = vmatpush1.msra.mxu0 0.0
    %66 = vmatprep.subr.mxu0 0.0
    %67 = vmatpush1.msra.mxu0 0.0
    %68 = vmatprep.subr.mxu0 0.0
    %69 = vmatpush1.msra.mxu0 0.0
    %70 = vmatprep.subr.mxu0 0.0
    %71 = vmatpush1.msra.mxu0 0.0
    %72 = vmatprep.subr.mxu0 0.0
    %73 = vmatpush1.msra.mxu0 0.0
    %74 = vmatprep.subr.mxu0 0.0
    %75 = vmatpush1.msra.mxu0 0.0
    %76 = vmatprep.subr.mxu0 0.0
    %77 = vmatpush1.msra.mxu0 0.0
    %78 = vmatprep.subr.mxu0 0.0
    %79 = vmatpush1.msra.mxu0 %v39
    %80 = vmatprep.subr.mxu0 0.0
    %81 = vmatpush1.msra.mxu0 %v38
    %82 = vmatprep.subr.mxu0 0.0
    %83 = vmatpush1.msra.mxu0 %v37
    %84 = vmatprep.subr.mxu0 0.0
    %85 = vmatpush1.msra.mxu0 %v36
    %86 = vmatprep.subr.mxu0 0.0
    %87 = vmatpush2.msra.mxu0 0.0
    %88 = vmatprep.subr.mxu0 0.0
    %89 = vmatpush2.msra.mxu0 0.0
    %90 = vmatprep.subr.mxu0 0.0
    %91 = vmatpush2.msra.mxu0 0.0
    %92 = vmatprep.subr.mxu0 0.0
    %93 = vmatpush2.msra.mxu0 0.0
    %94 = vmatprep.subr.mxu0 0.0
    %95 = vmatpush2.msra.mxu0 0.0
    %96 = vmatprep.subr.mxu0 0.0
    %97 = vmatpush2.msra.mxu0 0.0
    %98 = vmatprep.subr.mxu0 0.0
    %99 = vmatpush2.msra.mxu0 0.0
    %100 = vmatprep.subr.mxu0 0.0
    %101 = vmatpush2.msra.mxu0 0.0
    %102 = vmatprep.subr.mxu0 0.0
    %103 = vmatpush2.msra.mxu0 0.0
    %104 = vmatprep.subr.mxu0 0.0
    %105 = vmatpush2.msra.mxu0 0.0
    %106 = vmatprep.subr.mxu0 0.0
    %107 = vmatpush2.msra.mxu0 0.0
    %108 = vmatprep.subr.mxu0 0.0
    %109 = vmatpush2.msra.mxu0 0.0
    %110 = vmatprep.subr.mxu0 0.0
    %111 = vmatpush2.msra.mxu0 0.0
    %112 = vmatprep.subr.mxu0 0.0
    %113 = vmatpush2.msra.mxu0 0.0
    %114 = vmatprep.subr.mxu0 0.0
    %115 = vmatpush2.msra.mxu0 0.0
    %116 = vmatprep.subr.mxu0 0.0
    %117 = vmatpush2.msra.mxu0 0.0
    %118 = vmatprep.mubr.f32.mxu0 0.0
    %119 = vmatmul.mubr.f32.gmra.mxu0 %v49
    %v120 = vpop.f32.mrf.mxu0
    %v121 = vadd.f32 %v45, %v120
    %v122 = vpop.f32.mrf.mxu0
    %123 = vmatprep.mubr.f32.mxu0 0.0
    %124 = vmatmul.mubr.f32.gmra.mxu0 %v52
    %v125 = vpop.f32.mrf.mxu0
    %v126 = vadd.f32 %v45, %v125
    %v127 = vpop.f32.mrf.mxu0
    %128 = vdwg.mxu0
    %v129 = vld [vmem:[%s5] sm:$0x3f]
    %v130 = vld [vmem:[%s4] sm:$0xff]
    %v131 = vld [vmem:[%s4 + $0x8] sm:$0xff]
    %v132 = vld [vmem:[%s4 + $0x10] sm:$0xff]
    %v133 = vld [vmem:[%s4 + $0x18] sm:$0xff]
    %135 = vrot.lane.b32.xlu0 %v121, 96
    %v136 = vpop.permute.xlu0 %135
    %vm137 = vcmask 64512
    %v138 = vsel %vm137, %v121, 0
    %v140 = vsel %vm137, %v136, 0
    %142 = vmatprep.subr.mxu0 0.0
    %143 = vmatpush1.xpose.msra.mxu0 0.0
    %144 = vmatprep.subr.mxu0 0.0
    %145 = vmatpush1.xpose.msra.mxu0 0.0
    %146 = vmatprep.subr.mxu0 0.0
    %147 = vmatpush1.xpose.msra.mxu0 0.0
    %148 = vmatprep.subr.mxu0 0.0
    %149 = vmatpush1.xpose.msra.mxu0 0.0
    %150 = vmatprep.subr.mxu0 0.0
    %151 = vmatpush1.xpose.msra.mxu0 0.0
    %152 = vmatprep.subr.mxu0 0.0
    %153 = vmatpush1.xpose.msra.mxu0 0.0
    %154 = vmatprep.subr.mxu0 0.0
    %155 = vmatpush1.xpose.msra.mxu0 0.0
    %156 = vmatprep.subr.mxu0 0.0
    %157 = vmatpush1.xpose.msra.mxu0 0.0
    %158 = vmatprep.subr.mxu0 0.0
    %159 = vmatpush1.xpose.msra.mxu0 0.0
    %160 = vmatprep.subr.mxu0 0.0
    %161 = vmatpush1.xpose.msra.mxu0 0.0
    %162 = vmatprep.subr.mxu0 0.0
    %163 = vmatpush1.xpose.msra.mxu0 0.0
    %164 = vmatprep.subr.mxu0 0.0
    %165 = vmatpush1.xpose.msra.mxu0 0.0
    %166 = vmatprep.subr.mxu0 0.0
    %167 = vmatpush1.xpose.msra.mxu0 0.0
    %168 = vmatprep.subr.mxu0 0.0
    %169 = vmatpush1.xpose.msra.mxu0 0.0
    %170 = vmatprep.subr.mxu0 0.0
    %171 = vmatpush1.xpose.msra.mxu0 0.0
    %172 = vmatprep.subr.mxu0 0.0
    %173 = vmatpush1.xpose.msra.mxu0 %v140
    %174 = vmatprep.subr.mxu0 0.0
    %175 = vmatpush2.xpose.msra.mxu0 0.0
    %176 = vmatprep.subr.mxu0 0.0
    %177 = vmatpush2.xpose.msra.mxu0 0.0
    %178 = vmatprep.subr.mxu0 0.0
    %179 = vmatpush2.xpose.msra.mxu0 0.0
    %180 = vmatprep.subr.mxu0 0.0
    %181 = vmatpush2.xpose.msra.mxu0 0.0
    %182 = vmatprep.subr.mxu0 0.0
    %183 = vmatpush2.xpose.msra.mxu0 0.0
    %184 = vmatprep.subr.mxu0 0.0
    %185 = vmatpush2.xpose.msra.mxu0 0.0
    %186 = vmatprep.subr.mxu0 0.0
    %187 = vmatpush2.xpose.msra.mxu0 0.0
    %188 = vmatprep.subr.mxu0 0.0
    %189 = vmatpush2.xpose.msra.mxu0 0.0
    %190 = vmatprep.subr.mxu0 0.0
    %191 = vmatpush2.xpose.msra.mxu0 0.0
    %192 = vmatprep.subr.mxu0 0.0
    %193 = vmatpush2.xpose.msra.mxu0 0.0
    %194 = vmatprep.subr.mxu0 0.0
    %195 = vmatpush2.xpose.msra.mxu0 0.0
    %196 = vmatprep.subr.mxu0 0.0
    %197 = vmatpush2.xpose.msra.mxu0 0.0
    %198 = vmatprep.subr.mxu0 0.0
    %199 = vmatpush2.xpose.msra.mxu0 0.0
    %200 = vmatprep.subr.mxu0 0.0
    %201 = vmatpush2.xpose.msra.mxu0 0.0
    %202 = vmatprep.subr.mxu0 0.0
    %203 = vmatpush2.xpose.msra.mxu0 0.0
    %204 = vmatprep.subr.mxu0 0.0
    %205 = vmatpush2.xpose.msra.mxu0 0.0
    %206 = vmatprep.mubr.f32.mxu0 0.0
    %207 = vmatmul.mubr.f32.gmra.mxu0 %v138
    %v208 = vpop.f32.mrf.mxu0
    %v209 = vadd.f32 0.0, %v208
    %v210 = vpop.f32.mrf.mxu0
    %211 = vdwg.mxu0
    %213 = vrot.lane.b32.xlu0 %v126, 96
    %v214 = vpop.permute.xlu0 %213
    %v215 = vsel %vm137, %v126, 0
    %v217 = vsel %vm137, %v214, 0
    %219 = vmatprep.subr.mxu0 0.0
    %220 = vmatpush1.xpose.msra.mxu0 0.0
    %221 = vmatprep.subr.mxu0 0.0
    %222 = vmatpush1.xpose.msra.mxu0 0.0
    %223 = vmatprep.subr.mxu0 0.0
    %224 = vmatpush1.xpose.msra.mxu0 0.0
    %225 = vmatprep.subr.mxu0 0.0
    %226 = vmatpush1.xpose.msra.mxu0 0.0
    %227 = vmatprep.subr.mxu0 0.0
    %228 = vmatpush1.xpose.msra.mxu0 0.0
    %229 = vmatprep.subr.mxu0 0.0
    %230 = vmatpush1.xpose.msra.mxu0 0.0
    %231 = vmatprep.subr.mxu0 0.0
    %232 = vmatpush1.xpose.msra.mxu0 0.0
    %233 = vmatprep.subr.mxu0 0.0
    %234 = vmatpush1.xpose.msra.mxu0 0.0
    %235 = vmatprep.subr.mxu0 0.0
    %236 = vmatpush1.xpose.msra.mxu0 0.0
    %237 = vmatprep.subr.mxu0 0.0
    %238 = vmatpush1.xpose.msra.mxu0 0.0
    %239 = vmatprep.subr.mxu0 0.0
    %240 = vmatpush1.xpose.msra.mxu0 0.0
    %241 = vmatprep.subr.mxu0 0.0
    %242 = vmatpush1.xpose.msra.mxu0 0.0
    %243 = vmatprep.subr.mxu0 0.0
    %244 = vmatpush1.xpose.msra.mxu0 0.0
    %245 = vmatprep.subr.mxu0 0.0
    %246 = vmatpush1.xpose.msra.mxu0 0.0
    %247 = vmatprep.subr.mxu0 0.0
    %248 = vmatpush1.xpose.msra.mxu0 0.0
    %249 = vmatprep.subr.mxu0 0.0
    %250 = vmatpush1.xpose.msra.mxu0 %v217
    %251 = vmatprep.subr.mxu0 0.0
    %252 = vmatpush2.xpose.msra.mxu0 0.0
    %253 = vmatprep.subr.mxu0 0.0
    %254 = vmatpush2.xpose.msra.mxu0 0.0
    %255 = vmatprep.subr.mxu0 0.0
    %256 = vmatpush2.xpose.msra.mxu0 0.0
    %257 = vmatprep.subr.mxu0 0.0
    %258 = vmatpush2.xpose.msra.mxu0 0.0
    %259 = vmatprep.subr.mxu0 0.0
    %260 = vmatpush2.xpose.msra.mxu0 0.0
    %261 = vmatprep.subr.mxu0 0.0
    %262 = vmatpush2.xpose.msra.mxu0 0.0
    %263 = vmatprep.subr.mxu0 0.0
    %264 = vmatpush2.xpose.msra.mxu0 0.0
    %265 = vmatprep.subr.mxu0 0.0
    %266 = vmatpush2.xpose.msra.mxu0 0.0
    %267 = vmatprep.subr.mxu0 0.0
    %268 = vmatpush2.xpose.msra.mxu0 0.0
    %269 = vmatprep.subr.mxu0 0.0
    %270 = vmatpush2.xpose.msra.mxu0 0.0
    %271 = vmatprep.subr.mxu0 0.0
    %272 = vmatpush2.xpose.msra.mxu0 0.0
    %273 = vmatprep.subr.mxu0 0.0
    %274 = vmatpush2.xpose.msra.mxu0 0.0
    %275 = vmatprep.subr.mxu0 0.0
    %276 = vmatpush2.xpose.msra.mxu0 0.0
    %277 = vmatprep.subr.mxu0 0.0
    %278 = vmatpush2.xpose.msra.mxu0 0.0
    %279 = vmatprep.subr.mxu0 0.0
    %280 = vmatpush2.xpose.msra.mxu0 0.0
    %281 = vmatprep.subr.mxu0 0.0
    %282 = vmatpush2.xpose.msra.mxu0 0.0
    %283 = vmatprep.mubr.f32.mxu0 0.0
    %284 = vmatmul.mubr.f32.gmra.mxu0 %v215
    %v285 = vpop.f32.mrf.mxu0
    %v286 = vadd.f32 0.0, %v285
    %v287 = vpop.f32.mrf.mxu0
    %288 = vdwg.mxu0
    %v289 = vmul.f32 %v209, 0.35355338
    %v290 = vmul.f32 %v286, 0.35355338
    %v293 = vunpack.c.l.s4 1966171168
    %v294 = vunpack.c.0.s8 %v293
    %v295 = vlaneseq
    %v296 = vshrl.u32 %v295, 7
    %v297 = vsub.s32 %v294, %v296
    %v298 = vrot.slane %v33, %v297
    %v299 = vcombine.high %v298, %v298
    %v301 = vunpack.c.l.s4 1966171168
    %v302 = vunpack.c.0.s8 %v301
    %v303 = vlaneseq
    %v304 = vshrl.u32 %v303, 7
    %v305 = vsub.s32 %v302, %v304
    %v306 = vrot.slane %v298, %v305
    %v308 = vunpack.c.l.s4 1966171168
    %v309 = vunpack.c.0.s8 %v308
    %v310 = vlaneseq
    %v311 = vshrl.u32 %v310, 7
    %v312 = vsub.s32 %v309, %v311
    %v313 = vrot.slane %v299, %v312
    %v314 = vlaneseq
    %v315 = vshrl.u32 %v314, 7
    %v316 = vsub.s32 0, %v315
    %v317 = vrot.slane %v306, %v316
    %v318 = vlaneseq
    %v319 = vshrl.u32 %v318, 7
    %v320 = vsub.s32 0, %v319
    %v321 = vrot.slane %v313, %v320
    %v324 = vadd.f32 %v289, %v317
    %v325 = vadd.f32 %v290, %v321
    %v326 = vsel %vm137, %v324, -inf
    %327 = vmax.xlane.f32.xlu0 %v326
    %v328 = vpop.xlane.xlu0 %327
    %v329 = vsel %vm137, %v325, -inf
    %330 = vmax.xlane.f32.xlu0 %v329
    %v331 = vpop.xlane.xlu0 %330
    %v332 = vsub.f32 %v324, %v328
    %v333 = vsub.f32 %v325, %v331
    %v334 = vmul.f32 %v332, 1.442695
    %v335 = vpow.pop %v334
    %v336 = vmul.f32 %v333, 1.442695
    %v337 = vpow.pop %v336
    %v338 = vsel %vm137, %v335, 0.0
    %339 = vadd.xlane.f32.xlu0 %v338
    %v340 = vpop.xlane.xlu0 %339
    %v341 = vsel %vm137, %v337, 0.0
    %342 = vadd.xlane.f32.xlu0 %v341
    %v343 = vpop.xlane.xlu0 %342
    %v344 = vrcp.pop %v340
    %v345 = vrcp.pop %v343
    %v346 = vmul.f32 %v335, %v344
    %v347 = vmul.f32 %v337, %v345
    %348 = vrot.lane.b32.xlu0 %v121, 64
    %v349 = vpop.permute.xlu0 %348
    %v352 = vsel %vm137, %v346, 0
    %354 = vmatprep.subr.mxu0 0.0
    %355 = vmatpush1.msra.mxu0 0.0
    %356 = vmatprep.subr.mxu0 0.0
    %357 = vmatpush1.msra.mxu0 0.0
    %358 = vmatprep.subr.mxu0 0.0
    %359 = vmatpush1.msra.mxu0 0.0
    %360 = vmatprep.subr.mxu0 0.0
    %361 = vmatpush1.msra.mxu0 0.0
    %362 = vmatprep.subr.mxu0 0.0
    %363 = vmatpush1.msra.mxu0 0.0
    %364 = vmatprep.subr.mxu0 0.0
    %365 = vmatpush1.msra.mxu0 0.0
    %366 = vmatprep.subr.mxu0 0.0
    %367 = vmatpush1.msra.mxu0 0.0
    %368 = vmatprep.subr.mxu0 0.0
    %369 = vmatpush1.msra.mxu0 0.0
    %370 = vmatprep.subr.mxu0 0.0
    %371 = vmatpush1.msra.mxu0 0.0
    %372 = vmatprep.subr.mxu0 0.0
    %373 = vmatpush1.msra.mxu0 0.0
    %374 = vmatprep.subr.mxu0 0.0
    %375 = vmatpush1.msra.mxu0 0.0
    %376 = vmatprep.subr.mxu0 0.0
    %377 = vmatpush1.msra.mxu0 0.0
    %378 = vmatprep.subr.mxu0 0.0
    %379 = vmatpush1.msra.mxu0 0.0
    %380 = vmatprep.subr.mxu0 0.0
    %381 = vmatpush1.msra.mxu0 0.0
    %382 = vmatprep.subr.mxu0 0.0
    %383 = vmatpush1.msra.mxu0 0.0
    %384 = vmatprep.subr.mxu0 0.0
    %385 = vmatpush1.msra.mxu0 %v349
    %386 = vmatprep.subr.mxu0 0.0
    %387 = vmatpush2.msra.mxu0 0.0
    %388 = vmatprep.subr.mxu0 0.0
    %389 = vmatpush2.msra.mxu0 0.0
    %390 = vmatprep.subr.mxu0 0.0
    %391 = vmatpush2.msra.mxu0 0.0
    %392 = vmatprep.subr.mxu0 0.0
    %393 = vmatpush2.msra.mxu0 0.0
    %394 = vmatprep.subr.mxu0 0.0
    %395 = vmatpush2.msra.mxu0 0.0
    %396 = vmatprep.subr.mxu0 0.0
    %397 = vmatpush2.msra.mxu0 0.0
    %398 = vmatprep.subr.mxu0 0.0
    %399 = vmatpush2.msra.mxu0 0.0
    %400 = vmatprep.subr.mxu0 0.0
    %401 = vmatpush2.msra.mxu0 0.0
    %402 = vmatprep.subr.mxu0 0.0
    %403 = vmatpush2.msra.mxu0 0.0
    %404 = vmatprep.subr.mxu0 0.0
    %405 = vmatpush2.msra.mxu0 0.0
    %406 = vmatprep.subr.mxu0 0.0
    %407 = vmatpush2.msra.mxu0 0.0
    %408 = vmatprep.subr.mxu0 0.0
    %409 = vmatpush2.msra.mxu0 0.0
    %410 = vmatprep.subr.mxu0 0.0
    %411 = vmatpush2.msra.mxu0 0.0
    %412 = vmatprep.subr.mxu0 0.0
    %413 = vmatpush2.msra.mxu0 0.0
    %414 = vmatprep.subr.mxu0 0.0
    %415 = vmatpush2.msra.mxu0 0.0
    %416 = vmatprep.subr.mxu0 0.0
    %417 = vmatpush2.msra.mxu0 0.0
    %418 = vmatprep.mubr.f32.mxu0 0.0
    %419 = vmatmul.mubr.f32.gmra.mxu0 %v352
    %v420 = vpop.f32.mrf.mxu0
    %v421 = vadd.f32 0.0, %v420
    %v422 = vpop.f32.mrf.mxu0
    %423 = vdwg.mxu0
    %424 = vrot.lane.b32.xlu0 %v126, 64
    %v425 = vpop.permute.xlu0 %424
    %v428 = vsel %vm137, %v347, 0
    %430 = vmatprep.subr.mxu0 0.0
    %431 = vmatpush1.msra.mxu0 0.0
    %432 = vmatprep.subr.mxu0 0.0
    %433 = vmatpush1.msra.mxu0 0.0
    %434 = vmatprep.subr.mxu0 0.0
    %435 = vmatpush1.msra.mxu0 0.0
    %436 = vmatprep.subr.mxu0 0.0
    %437 = vmatpush1.msra.mxu0 0.0
    %438 = vmatprep.subr.mxu0 0.0
    %439 = vmatpush1.msra.mxu0 0.0
    %440 = vmatprep.subr.mxu0 0.0
    %441 = vmatpush1.msra.mxu0 0.0
    %442 = vmatprep.subr.mxu0 0.0
    %443 = vmatpush1.msra.mxu0 0.0
    %444 = vmatprep.subr.mxu0 0.0
    %445 = vmatpush1.msra.mxu0 0.0
    %446 = vmatprep.subr.mxu0 0.0
    %447 = vmatpush1.msra.mxu0 0.0
    %448 = vmatprep.subr.mxu0 0.0
    %449 = vmatpush1.msra.mxu0 0.0
    %450 = vmatprep.subr.mxu0 0.0
    %451 = vmatpush1.msra.mxu0 0.0
    %452 = vmatprep.subr.mxu0 0.0
    %453 = vmatpush1.msra.mxu0 0.0
    %454 = vmatprep.subr.mxu0 0.0
    %455 = vmatpush1.msra.mxu0 0.0
    %456 = vmatprep.subr.mxu0 0.0
    %457 = vmatpush1.msra.mxu0 0.0
    %458 = vmatprep.subr.mxu0 0.0
    %459 = vmatpush1.msra.mxu0 0.0
    %460 = vmatprep.subr.mxu0 0.0
    %461 = vmatpush1.msra.mxu0 %v425
    %462 = vmatprep.subr.mxu0 0.0
    %463 = vmatpush2.msra.mxu0 0.0
    %464 = vmatprep.subr.mxu0 0.0
    %465 = vmatpush2.msra.mxu0 0.0
    %466 = vmatprep.subr.mxu0 0.0
    %467 = vmatpush2.msra.mxu0 0.0
    %468 = vmatprep.subr.mxu0 0.0
    %469 = vmatpush2.msra.mxu0 0.0
    %470 = vmatprep.subr.mxu0 0.0
    %471 = vmatpush2.msra.mxu0 0.0
    %472 = vmatprep.subr.mxu0 0.0
    %473 = vmatpush2.msra.mxu0 0.0
    %474 = vmatprep.subr.mxu0 0.0
    %475 = vmatpush2.msra.mxu0 0.0
    %476 = vmatprep.subr.mxu0 0.0
    %477 = vmatpush2.msra.mxu0 0.0
    %478 = vmatprep.subr.mxu0 0.0
    %479 = vmatpush2.msra.mxu0 0.0
    %480 = vmatprep.subr.mxu0 0.0
    %481 = vmatpush2.msra.mxu0 0.0
    %482 = vmatprep.subr.mxu0 0.0
    %483 = vmatpush2.msra.mxu0 0.0
    %484 = vmatprep.subr.mxu0 0.0
    %485 = vmatpush2.msra.mxu0 0.0
    %486 = vmatprep.subr.mxu0 0.0
    %487 = vmatpush2.msra.mxu0 0.0
    %488 = vmatprep.subr.mxu0 0.0
    %489 = vmatpush2.msra.mxu0 0.0
    %490 = vmatprep.subr.mxu0 0.0
    %491 = vmatpush2.msra.mxu0 0.0
    %492 = vmatprep.subr.mxu0 0.0
    %493 = vmatpush2.msra.mxu0 0.0
    %494 = vmatprep.mubr.f32.mxu0 0.0
    %495 = vmatmul.mubr.f32.gmra.mxu0 %v428
    %v496 = vpop.f32.mrf.mxu0
    %v497 = vadd.f32 0.0, %v496
    %v498 = vpop.f32.mrf.mxu0
    %499 = vdwg.mxu0
    %500 = vrot.lane.b32.xlu0 %v121, 120
    %v501 = vpop.permute.xlu0 %500
    %502 = vrot.lane.b32.xlu0 %v121, 88
    %v503 = vpop.permute.xlu0 %502
    %v504 = vsel %vm137, %v501, 0
    %v506 = vsel %vm137, %v503, 0
    %508 = vmatprep.subr.mxu0 0.0
    %509 = vmatpush1.xpose.msra.mxu0 0.0
    %510 = vmatprep.subr.mxu0 0.0
    %511 = vmatpush1.xpose.msra.mxu0 0.0
    %512 = vmatprep.subr.mxu0 0.0
    %513 = vmatpush1.xpose.msra.mxu0 0.0
    %514 = vmatprep.subr.mxu0 0.0
    %515 = vmatpush1.xpose.msra.mxu0 0.0
    %516 = vmatprep.subr.mxu0 0.0
    %517 = vmatpush1.xpose.msra.mxu0 0.0
    %518 = vmatprep.subr.mxu0 0.0
    %519 = vmatpush1.xpose.msra.mxu0 0.0
    %520 = vmatprep.subr.mxu0 0.0
    %521 = vmatpush1.xpose.msra.mxu0 0.0
    %522 = vmatprep.subr.mxu0 0.0
    %523 = vmatpush1.xpose.msra.mxu0 0.0
    %524 = vmatprep.subr.mxu0 0.0
    %525 = vmatpush1.xpose.msra.mxu0 0.0
    %526 = vmatprep.subr.mxu0 0.0
    %527 = vmatpush1.xpose.msra.mxu0 0.0
    %528 = vmatprep.subr.mxu0 0.0
    %529 = vmatpush1.xpose.msra.mxu0 0.0
    %530 = vmatprep.subr.mxu0 0.0
    %531 = vmatpush1.xpose.msra.mxu0 0.0
    %532 = vmatprep.subr.mxu0 0.0
    %533 = vmatpush1.xpose.msra.mxu0 0.0
    %534 = vmatprep.subr.mxu0 0.0
    %535 = vmatpush1.xpose.msra.mxu0 0.0
    %536 = vmatprep.subr.mxu0 0.0
    %537 = vmatpush1.xpose.msra.mxu0 0.0
    %538 = vmatprep.subr.mxu0 0.0
    %539 = vmatpush1.xpose.msra.mxu0 %v506
    %540 = vmatprep.subr.mxu0 0.0
    %541 = vmatpush2.xpose.msra.mxu0 0.0
    %542 = vmatprep.subr.mxu0 0.0
    %543 = vmatpush2.xpose.msra.mxu0 0.0
    %544 = vmatprep.subr.mxu0 0.0
    %545 = vmatpush2.xpose.msra.mxu0 0.0
    %546 = vmatprep.subr.mxu0 0.0
    %547 = vmatpush2.xpose.msra.mxu0 0.0
    %548 = vmatprep.subr.mxu0 0.0
    %549 = vmatpush2.xpose.msra.mxu0 0.0
    %550 = vmatprep.subr.mxu0 0.0
    %551 = vmatpush2.xpose.msra.mxu0 0.0
    %552 = vmatprep.subr.mxu0 0.0
    %553 = vmatpush2.xpose.msra.mxu0 0.0
    %554 = vmatprep.subr.mxu0 0.0
    %555 = vmatpush2.xpose.msra.mxu0 0.0
    %556 = vmatprep.subr.mxu0 0.0
    %557 = vmatpush2.xpose.msra.mxu0 0.0
    %558 = vmatprep.subr.mxu0 0.0
    %559 = vmatpush2.xpose.msra.mxu0 0.0
    %560 = vmatprep.subr.mxu0 0.0
    %561 = vmatpush2.xpose.msra.mxu0 0.0
    %562 = vmatprep.subr.mxu0 0.0
    %563 = vmatpush2.xpose.msra.mxu0 0.0
    %564 = vmatprep.subr.mxu0 0.0
    %565 = vmatpush2.xpose.msra.mxu0 0.0
    %566 = vmatprep.subr.mxu0 0.0
    %567 = vmatpush2.xpose.msra.mxu0 0.0
    %568 = vmatprep.subr.mxu0 0.0
    %569 = vmatpush2.xpose.msra.mxu0 0.0
    %570 = vmatprep.subr.mxu0 0.0
    %571 = vmatpush2.xpose.msra.mxu0 0.0
    %572 = vmatprep.mubr.f32.mxu0 0.0
    %573 = vmatmul.mubr.f32.gmra.mxu0 %v504
    %v574 = vpop.f32.mrf.mxu0
    %v575 = vadd.f32 0.0, %v574
    %v576 = vpop.f32.mrf.mxu0
    %577 = vdwg.mxu0
    %578 = vrot.lane.b32.xlu0 %v126, 120
    %v579 = vpop.permute.xlu0 %578
    %580 = vrot.lane.b32.xlu0 %v126, 88
    %v581 = vpop.permute.xlu0 %580
    %v582 = vsel %vm137, %v579, 0
    %v584 = vsel %vm137, %v581, 0
    %586 = vmatprep.subr.mxu0 0.0
    %587 = vmatpush1.xpose.msra.mxu0 0.0
    %588 = vmatprep.subr.mxu0 0.0
    %589 = vmatpush1.xpose.msra.mxu0 0.0
    %590 = vmatprep.subr.mxu0 0.0
    %591 = vmatpush1.xpose.msra.mxu0 0.0
    %592 = vmatprep.subr.mxu0 0.0
    %593 = vmatpush1.xpose.msra.mxu0 0.0
    %594 = vmatprep.subr.mxu0 0.0
    %595 = vmatpush1.xpose.msra.mxu0 0.0
    %596 = vmatprep.subr.mxu0 0.0
    %597 = vmatpush1.xpose.msra.mxu0 0.0
    %598 = vmatprep.subr.mxu0 0.0
    %599 = vmatpush1.xpose.msra.mxu0 0.0
    %600 = vmatprep.subr.mxu0 0.0
    %601 = vmatpush1.xpose.msra.mxu0 0.0
    %602 = vmatprep.subr.mxu0 0.0
    %603 = vmatpush1.xpose.msra.mxu0 0.0
    %604 = vmatprep.subr.mxu0 0.0
    %605 = vmatpush1.xpose.msra.mxu0 0.0
    %606 = vmatprep.subr.mxu0 0.0
    %607 = vmatpush1.xpose.msra.mxu0 0.0
    %608 = vmatprep.subr.mxu0 0.0
    %609 = vmatpush1.xpose.msra.mxu0 0.0
    %610 = vmatprep.subr.mxu0 0.0
    %611 = vmatpush1.xpose.msra.mxu0 0.0
    %612 = vmatprep.subr.mxu0 0.0
    %613 = vmatpush1.xpose.msra.mxu0 0.0
    %614 = vmatprep.subr.mxu0 0.0
    %615 = vmatpush1.xpose.msra.mxu0 0.0
    %616 = vmatprep.subr.mxu0 0.0
    %617 = vmatpush1.xpose.msra.mxu0 %v584
    %618 = vmatprep.subr.mxu0 0.0
    %619 = vmatpush2.xpose.msra.mxu0 0.0
    %620 = vmatprep.subr.mxu0 0.0
    %621 = vmatpush2.xpose.msra.mxu0 0.0
    %622 = vmatprep.subr.mxu0 0.0
    %623 = vmatpush2.xpose.msra.mxu0 0.0
    %624 = vmatprep.subr.mxu0 0.0
    %625 = vmatpush2.xpose.msra.mxu0 0.0
    %626 = vmatprep.subr.mxu0 0.0
    %627 = vmatpush2.xpose.msra.mxu0 0.0
    %628 = vmatprep.subr.mxu0 0.0
    %629 = vmatpush2.xpose.msra.mxu0 0.0
    %630 = vmatprep.subr.mxu0 0.0
    %631 = vmatpush2.xpose.msra.mxu0 0.0
    %632 = vmatprep.subr.mxu0 0.0
    %633 = vmatpush2.xpose.msra.mxu0 0.0
    %634 = vmatprep.subr.mxu0 0.0
    %635 = vmatpush2.xpose.msra.mxu0 0.0
    %636 = vmatprep.subr.mxu0 0.0
    %637 = vmatpush2.xpose.msra.mxu0 0.0
    %638 = vmatprep.subr.mxu0 0.0
    %639 = vmatpush2.xpose.msra.mxu0 0.0
    %640 = vmatprep.subr.mxu0 0.0
    %641 = vmatpush2.xpose.msra.mxu0 0.0
    %642 = vmatprep.subr.mxu0 0.0
    %643 = vmatpush2.xpose.msra.mxu0 0.0
    %644 = vmatprep.subr.mxu0 0.0
    %645 = vmatpush2.xpose.msra.mxu0 0.0
    %646 = vmatprep.subr.mxu0 0.0
    %647 = vmatpush2.xpose.msra.mxu0 0.0
    %648 = vmatprep.subr.mxu0 0.0
    %649 = vmatpush2.xpose.msra.mxu0 0.0
    %650 = vmatprep.mubr.f32.mxu0 0.0
    %651 = vmatmul.mubr.f32.gmra.mxu0 %v582
    %v652 = vpop.f32.mrf.mxu0
    %v653 = vadd.f32 0.0, %v652
    %v654 = vpop.f32.mrf.mxu0
    %655 = vdwg.mxu0
    %v656 = vmul.f32 %v575, 0.35355338
    %v657 = vmul.f32 %v653, 0.35355338
    %v658 = vadd.f32 %v656, %v317
    %v659 = vadd.f32 %v657, %v321
    %v660 = vsel %vm137, %v658, -inf
    %661 = vmax.xlane.f32.xlu0 %v660
    %v662 = vpop.xlane.xlu0 %661
    %v663 = vsel %vm137, %v659, -inf
    %664 = vmax.xlane.f32.xlu0 %v663
    %v665 = vpop.xlane.xlu0 %664
    %v666 = vsub.f32 %v658, %v662
    %v667 = vsub.f32 %v659, %v665
    %v668 = vmul.f32 %v666, 1.442695
    %v669 = vpow.pop %v668
    %v670 = vmul.f32 %v667, 1.442695
    %v671 = vpow.pop %v670
    %v672 = vsel %vm137, %v669, 0.0
    %673 = vadd.xlane.f32.xlu0 %v672
    %v674 = vpop.xlane.xlu0 %673
    %v675 = vsel %vm137, %v671, 0.0
    %676 = vadd.xlane.f32.xlu0 %v675
    %v677 = vpop.xlane.xlu0 %676
    %v678 = vrcp.pop %v674
    %v679 = vrcp.pop %v677
    %v680 = vmul.f32 %v669, %v678
    %v681 = vmul.f32 %v671, %v679
    %682 = vrot.lane.b32.xlu0 %v121, 56
    %v683 = vpop.permute.xlu0 %682
    %v686 = vsel %vm137, %v680, 0
    %688 = vmatprep.subr.mxu0 0.0
    %689 = vmatpush1.msra.mxu0 0.0
    %690 = vmatprep.subr.mxu0 0.0
    %691 = vmatpush1.msra.mxu0 0.0
    %692 = vmatprep.subr.mxu0 0.0
    %693 = vmatpush1.msra.mxu0 0.0
    %694 = vmatprep.subr.mxu0 0.0
    %695 = vmatpush1.msra.mxu0 0.0
    %696 = vmatprep.subr.mxu0 0.0
    %697 = vmatpush1.msra.mxu0 0.0
    %698 = vmatprep.subr.mxu0 0.0
    %699 = vmatpush1.msra.mxu0 0.0
    %700 = vmatprep.subr.mxu0 0.0
    %701 = vmatpush1.msra.mxu0 0.0
    %702 = vmatprep.subr.mxu0 0.0
    %703 = vmatpush1.msra.mxu0 0.0
    %704 = vmatprep.subr.mxu0 0.0
    %705 = vmatpush1.msra.mxu0 0.0
    %706 = vmatprep.subr.mxu0 0.0
    %707 = vmatpush1.msra.mxu0 0.0
    %708 = vmatprep.subr.mxu0 0.0
    %709 = vmatpush1.msra.mxu0 0.0
    %710 = vmatprep.subr.mxu0 0.0
    %711 = vmatpush1.msra.mxu0 0.0
    %712 = vmatprep.subr.mxu0 0.0
    %713 = vmatpush1.msra.mxu0 0.0
    %714 = vmatprep.subr.mxu0 0.0
    %715 = vmatpush1.msra.mxu0 0.0
    %716 = vmatprep.subr.mxu0 0.0
    %717 = vmatpush1.msra.mxu0 0.0
    %718 = vmatprep.subr.mxu0 0.0
    %719 = vmatpush1.msra.mxu0 %v683
    %720 = vmatprep.subr.mxu0 0.0
    %721 = vmatpush2.msra.mxu0 0.0
    %722 = vmatprep.subr.mxu0 0.0
    %723 = vmatpush2.msra.mxu0 0.0
    %724 = vmatprep.subr.mxu0 0.0
    %725 = vmatpush2.msra.mxu0 0.0
    %726 = vmatprep.subr.mxu0 0.0
    %727 = vmatpush2.msra.mxu0 0.0
    %728 = vmatprep.subr.mxu0 0.0
    %729 = vmatpush2.msra.mxu0 0.0
    %730 = vmatprep.subr.mxu0 0.0
    %731 = vmatpush2.msra.mxu0 0.0
    %732 = vmatprep.subr.mxu0 0.0
    %733 = vmatpush2.msra.mxu0 0.0
    %734 = vmatprep.subr.mxu0 0.0
    %735 = vmatpush2.msra.mxu0 0.0
    %736 = vmatprep.subr.mxu0 0.0
    %737 = vmatpush2.msra.mxu0 0.0
    %738 = vmatprep.subr.mxu0 0.0
    %739 = vmatpush2.msra.mxu0 0.0
    %740 = vmatprep.subr.mxu0 0.0
    %741 = vmatpush2.msra.mxu0 0.0
    %742 = vmatprep.subr.mxu0 0.0
    %743 = vmatpush2.msra.mxu0 0.0
    %744 = vmatprep.subr.mxu0 0.0
    %745 = vmatpush2.msra.mxu0 0.0
    %746 = vmatprep.subr.mxu0 0.0
    %747 = vmatpush2.msra.mxu0 0.0
    %748 = vmatprep.subr.mxu0 0.0
    %749 = vmatpush2.msra.mxu0 0.0
    %750 = vmatprep.subr.mxu0 0.0
    %751 = vmatpush2.msra.mxu0 0.0
    %752 = vmatprep.mubr.f32.mxu0 0.0
    %753 = vmatmul.mubr.f32.gmra.mxu0 %v686
    %v754 = vpop.f32.mrf.mxu0
    %v755 = vadd.f32 0.0, %v754
    %v756 = vpop.f32.mrf.mxu0
    %757 = vdwg.mxu0
    %758 = vrot.lane.b32.xlu0 %v126, 56
    %v759 = vpop.permute.xlu0 %758
    %v762 = vsel %vm137, %v681, 0
    %764 = vmatprep.subr.mxu0 0.0
    %765 = vmatpush1.msra.mxu0 0.0
    %766 = vmatprep.subr.mxu0 0.0
    %767 = vmatpush1.msra.mxu0 0.0
    %768 = vmatprep.subr.mxu0 0.0
    %769 = vmatpush1.msra.mxu0 0.0
    %770 = vmatprep.subr.mxu0 0.0
    %771 = vmatpush1.msra.mxu0 0.0
    %772 = vmatprep.subr.mxu0 0.0
    %773 = vmatpush1.msra.mxu0 0.0
    %774 = vmatprep.subr.mxu0 0.0
    %775 = vmatpush1.msra.mxu0 0.0
    %776 = vmatprep.subr.mxu0 0.0
    %777 = vmatpush1.msra.mxu0 0.0
    %778 = vmatprep.subr.mxu0 0.0
    %779 = vmatpush1.msra.mxu0 0.0
    %780 = vmatprep.subr.mxu0 0.0
    %781 = vmatpush1.msra.mxu0 0.0
    %782 = vmatprep.subr.mxu0 0.0
    %783 = vmatpush1.msra.mxu0 0.0
    %784 = vmatprep.subr.mxu0 0.0
    %785 = vmatpush1.msra.mxu0 0.0
    %786 = vmatprep.subr.mxu0 0.0
    %787 = vmatpush1.msra.mxu0 0.0
    %788 = vmatprep.subr.mxu0 0.0
    %789 = vmatpush1.msra.mxu0 0.0
    %790 = vmatprep.subr.mxu0 0.0
    %791 = vmatpush1.msra.mxu0 0.0
    %792 = vmatprep.subr.mxu0 0.0
    %793 = vmatpush1.msra.mxu0 0.0
    %794 = vmatprep.subr.mxu0 0.0
    %795 = vmatpush1.msra.mxu0 %v759
    %796 = vmatprep.subr.mxu0 0.0
    %797 = vmatpush2.msra.mxu0 0.0
    %798 = vmatprep.subr.mxu0 0.0
    %799 = vmatpush2.msra.mxu0 0.0
    %800 = vmatprep.subr.mxu0 0.0
    %801 = vmatpush2.msra.mxu0 0.0
    %802 = vmatprep.subr.mxu0 0.0
    %803 = vmatpush2.msra.mxu0 0.0
    %804 = vmatprep.subr.mxu0 0.0
    %805 = vmatpush2.msra.mxu0 0.0
    %806 = vmatprep.subr.mxu0 0.0
    %807 = vmatpush2.msra.mxu0 0.0
    %808 = vmatprep.subr.mxu0 0.0
    %809 = vmatpush2.msra.mxu0 0.0
    %810 = vmatprep.subr.mxu0 0.0
    %811 = vmatpush2.msra.mxu0 0.0
    %812 = vmatprep.subr.mxu0 0.0
    %813 = vmatpush2.msra.mxu0 0.0
    %814 = vmatprep.subr.mxu0 0.0
    %815 = vmatpush2.msra.mxu0 0.0
    %816 = vmatprep.subr.mxu0 0.0
    %817 = vmatpush2.msra.mxu0 0.0
    %818 = vmatprep.subr.mxu0 0.0
    %819 = vmatpush2.msra.mxu0 0.0
    %820 = vmatprep.subr.mxu0 0.0
    %821 = vmatpush2.msra.mxu0 0.0
    %822 = vmatprep.subr.mxu0 0.0
    %823 = vmatpush2.msra.mxu0 0.0
    %824 = vmatprep.subr.mxu0 0.0
    %825 = vmatpush2.msra.mxu0 0.0
    %826 = vmatprep.subr.mxu0 0.0
    %827 = vmatpush2.msra.mxu0 0.0
    %828 = vmatprep.mubr.f32.mxu0 0.0
    %829 = vmatmul.mubr.f32.gmra.mxu0 %v762
    %v830 = vpop.f32.mrf.mxu0
    %v831 = vadd.f32 0.0, %v830
    %v832 = vpop.f32.mrf.mxu0
    %833 = vdwg.mxu0
    %v835 = vsel %vm137, %v755, 0
    %v838 = vsel %vm137, %v831, 0
    %840 = vmatprep.subr.mxu0 0.0
    %841 = vmatpush1.msra.mxu0 0.0
    %842 = vmatprep.subr.mxu0 0.0
    %843 = vmatpush1.msra.mxu0 0.0
    %844 = vmatprep.subr.mxu0 0.0
    %845 = vmatpush1.msra.mxu0 0.0
    %846 = vmatprep.subr.mxu0 0.0
    %847 = vmatpush1.msra.mxu0 0.0
    %848 = vmatprep.subr.mxu0 0.0
    %849 = vmatpush1.msra.mxu0 0.0
    %850 = vmatprep.subr.mxu0 0.0
    %851 = vmatpush1.msra.mxu0 0.0
    %852 = vmatprep.subr.mxu0 0.0
    %853 = vmatpush1.msra.mxu0 0.0
    %854 = vmatprep.subr.mxu0 0.0
    %855 = vmatpush1.msra.mxu0 0.0
    %856 = vmatprep.subr.mxu0 0.0
    %857 = vmatpush1.msra.mxu0 0.0
    %858 = vmatprep.subr.mxu0 0.0
    %859 = vmatpush1.msra.mxu0 0.0
    %860 = vmatprep.subr.mxu0 0.0
    %861 = vmatpush1.msra.mxu0 0.0
    %862 = vmatprep.subr.mxu0 0.0
    %863 = vmatpush1.msra.mxu0 0.0
    %864 = vmatprep.subr.mxu0 0.0
    %865 = vmatpush1.msra.mxu0 0.0
    %866 = vmatprep.subr.mxu0 0.0
    %867 = vmatpush1.msra.mxu0 0.0
    %868 = vmatprep.subr.mxu0 0.0
    %869 = vmatpush1.msra.mxu0 0.0
    %870 = vmatprep.subr.mxu0 0.0
    %871 = vmatpush1.msra.mxu0 %v131
    %872 = vmatprep.subr.mxu0 0.0
    %873 = vmatpush2.msra.mxu0 0.0
    %874 = vmatprep.subr.mxu0 0.0
    %875 = vmatpush2.msra.mxu0 0.0
    %876 = vmatprep.subr.mxu0 0.0
    %877 = vmatpush2.msra.mxu0 0.0
    %878 = vmatprep.subr.mxu0 0.0
    %879 = vmatpush2.msra.mxu0 0.0
    %880 = vmatprep.subr.mxu0 0.0
    %881 = vmatpush2.msra.mxu0 0.0
    %882 = vmatprep.subr.mxu0 0.0
    %883 = vmatpush2.msra.mxu0 0.0
    %884 = vmatprep.subr.mxu0 0.0
    %885 = vmatpush2.msra.mxu0 0.0
    %886 = vmatprep.subr.mxu0 0.0
    %887 = vmatpush2.msra.mxu0 0.0
    %888 = vmatprep.subr.mxu0 0.0
    %889 = vmatpush2.msra.mxu0 0.0
    %890 = vmatprep.subr.mxu0 0.0
    %891 = vmatpush2.msra.mxu0 0.0
    %892 = vmatprep.subr.mxu0 0.0
    %893 = vmatpush2.msra.mxu0 0.0
    %894 = vmatprep.subr.mxu0 0.0
    %895 = vmatpush2.msra.mxu0 0.0
    %896 = vmatprep.subr.mxu0 0.0
    %897 = vmatpush2.msra.mxu0 0.0
    %898 = vmatprep.subr.mxu0 0.0
    %899 = vmatpush2.msra.mxu0 0.0
    %900 = vmatprep.subr.mxu0 0.0
    %901 = vmatpush2.msra.mxu0 0.0
    %902 = vmatprep.subr.mxu0 0.0
    %903 = vmatpush2.msra.mxu0 0.0
    %904 = vmatprep.mubr.f32.mxu0 0.0
    %905 = vmatmul.mubr.f32.gmra.mxu0 %v835
    %v906 = vpop.f32.mrf.mxu0
    %v907 = vadd.f32 0.0, %v906
    %v908 = vpop.f32.mrf.mxu0
    %909 = vmatprep.mubr.f32.mxu0 0.0
    %910 = vmatmul.mubr.f32.gmra.mxu0 %v838
    %v911 = vpop.f32.mrf.mxu0
    %v912 = vadd.f32 0.0, %v911
    %v913 = vpop.f32.mrf.mxu0
    %914 = vdwg.mxu0
    %v916 = vsel %vm137, %v421, 0
    %v919 = vsel %vm137, %v497, 0
    %921 = vmatprep.subr.mxu0 0.0
    %922 = vmatpush1.msra.mxu0 0.0
    %923 = vmatprep.subr.mxu0 0.0
    %924 = vmatpush1.msra.mxu0 0.0
    %925 = vmatprep.subr.mxu0 0.0
    %926 = vmatpush1.msra.mxu0 0.0
    %927 = vmatprep.subr.mxu0 0.0
    %928 = vmatpush1.msra.mxu0 0.0
    %929 = vmatprep.subr.mxu0 0.0
    %930 = vmatpush1.msra.mxu0 0.0
    %931 = vmatprep.subr.mxu0 0.0
    %932 = vmatpush1.msra.mxu0 0.0
    %933 = vmatprep.subr.mxu0 0.0
    %934 = vmatpush1.msra.mxu0 0.0
    %935 = vmatprep.subr.mxu0 0.0
    %936 = vmatpush1.msra.mxu0 0.0
    %937 = vmatprep.subr.mxu0 0.0
    %938 = vmatpush1.msra.mxu0 0.0
    %939 = vmatprep.subr.mxu0 0.0
    %940 = vmatpush1.msra.mxu0 0.0
    %941 = vmatprep.subr.mxu0 0.0
    %942 = vmatpush1.msra.mxu0 0.0
    %943 = vmatprep.subr.mxu0 0.0
    %944 = vmatpush1.msra.mxu0 0.0
    %945 = vmatprep.subr.mxu0 0.0
    %946 = vmatpush1.msra.mxu0 0.0
    %947 = vmatprep.subr.mxu0 0.0
    %948 = vmatpush1.msra.mxu0 0.0
    %949 = vmatprep.subr.mxu0 0.0
    %950 = vmatpush1.msra.mxu0 0.0
    %951 = vmatprep.subr.mxu0 0.0
    %952 = vmatpush1.msra.mxu0 %v130
    %953 = vmatprep.subr.mxu0 0.0
    %954 = vmatpush2.msra.mxu0 0.0
    %955 = vmatprep.subr.mxu0 0.0
    %956 = vmatpush2.msra.mxu0 0.0
    %957 = vmatprep.subr.mxu0 0.0
    %958 = vmatpush2.msra.mxu0 0.0
    %959 = vmatprep.subr.mxu0 0.0
    %960 = vmatpush2.msra.mxu0 0.0
    %961 = vmatprep.subr.mxu0 0.0
    %962 = vmatpush2.msra.mxu0 0.0
    %963 = vmatprep.subr.mxu0 0.0
    %964 = vmatpush2.msra.mxu0 0.0
    %965 = vmatprep.subr.mxu0 0.0
    %966 = vmatpush2.msra.mxu0 0.0
    %967 = vmatprep.subr.mxu0 0.0
    %968 = vmatpush2.msra.mxu0 0.0
    %969 = vmatprep.subr.mxu0 0.0
    %970 = vmatpush2.msra.mxu0 0.0
    %971 = vmatprep.subr.mxu0 0.0
    %972 = vmatpush2.msra.mxu0 0.0
    %973 = vmatprep.subr.mxu0 0.0
    %974 = vmatpush2.msra.mxu0 0.0
    %975 = vmatprep.subr.mxu0 0.0
    %976 = vmatpush2.msra.mxu0 0.0
    %977 = vmatprep.subr.mxu0 0.0
    %978 = vmatpush2.msra.mxu0 0.0
    %979 = vmatprep.subr.mxu0 0.0
    %980 = vmatpush2.msra.mxu0 0.0
    %981 = vmatprep.subr.mxu0 0.0
    %982 = vmatpush2.msra.mxu0 0.0
    %983 = vmatprep.subr.mxu0 0.0
    %984 = vmatpush2.msra.mxu0 0.0
    %985 = vmatprep.mubr.f32.mxu0 0.0
    %986 = vmatmul.mubr.f32.gmra.mxu0 %v916
    %v987 = vpop.f32.mrf.mxu0
    %v988 = vadd.f32 %v907, %v987
    %v989 = vpop.f32.mrf.mxu0
    %990 = vmatprep.mubr.f32.mxu0 0.0
    %991 = vmatmul.mubr.f32.gmra.mxu0 %v919
    %v992 = vpop.f32.mrf.mxu0
    %v993 = vadd.f32 %v912, %v992
    %v994 = vpop.f32.mrf.mxu0
    %995 = vdwg.mxu0
    %996 = vrot.lane.b32.xlu0 %v121, 112
    %v997 = vpop.permute.xlu0 %996
    %998 = vrot.lane.b32.xlu0 %v121, 80
    %v999 = vpop.permute.xlu0 %998
    %v1000 = vsel %vm137, %v997, 0
    %v1002 = vsel %vm137, %v999, 0
    %1004 = vmatprep.subr.mxu0 0.0
    %1005 = vmatpush1.xpose.msra.mxu0 0.0
    %1006 = vmatprep.subr.mxu0 0.0
    %1007 = vmatpush1.xpose.msra.mxu0 0.0
    %1008 = vmatprep.subr.mxu0 0.0
    %1009 = vmatpush1.xpose.msra.mxu0 0.0
    %1010 = vmatprep.subr.mxu0 0.0
    %1011 = vmatpush1.xpose.msra.mxu0 0.0
    %1012 = vmatprep.subr.mxu0 0.0
    %1013 = vmatpush1.xpose.msra.mxu0 0.0
    %1014 = vmatprep.subr.mxu0 0.0
    %1015 = vmatpush1.xpose.msra.mxu0 0.0
    %1016 = vmatprep.subr.mxu0 0.0
    %1017 = vmatpush1.xpose.msra.mxu0 0.0
    %1018 = vmatprep.subr.mxu0 0.0
    %1019 = vmatpush1.xpose.msra.mxu0 0.0
    %1020 = vmatprep.subr.mxu0 0.0
    %1021 = vmatpush1.xpose.msra.mxu0 0.0
    %1022 = vmatprep.subr.mxu0 0.0
    %1023 = vmatpush1.xpose.msra.mxu0 0.0
    %1024 = vmatprep.subr.mxu0 0.0
    %1025 = vmatpush1.xpose.msra.mxu0 0.0
    %1026 = vmatprep.subr.mxu0 0.0
    %1027 = vmatpush1.xpose.msra.mxu0 0.0
    %1028 = vmatprep.subr.mxu0 0.0
    %1029 = vmatpush1.xpose.msra.mxu0 0.0
    %1030 = vmatprep.subr.mxu0 0.0
    %1031 = vmatpush1.xpose.msra.mxu0 0.0
    %1032 = vmatprep.subr.mxu0 0.0
    %1033 = vmatpush1.xpose.msra.mxu0 0.0
    %1034 = vmatprep.subr.mxu0 0.0
    %1035 = vmatpush1.xpose.msra.mxu0 %v1002
    %1036 = vmatprep.subr.mxu0 0.0
    %1037 = vmatpush2.xpose.msra.mxu0 0.0
    %1038 = vmatprep.subr.mxu0 0.0
    %1039 = vmatpush2.xpose.msra.mxu0 0.0
    %1040 = vmatprep.subr.mxu0 0.0
    %1041 = vmatpush2.xpose.msra.mxu0 0.0
    %1042 = vmatprep.subr.mxu0 0.0
    %1043 = vmatpush2.xpose.msra.mxu0 0.0
    %1044 = vmatprep.subr.mxu0 0.0
    %1045 = vmatpush2.xpose.msra.mxu0 0.0
    %1046 = vmatprep.subr.mxu0 0.0
    %1047 = vmatpush2.xpose.msra.mxu0 0.0
    %1048 = vmatprep.subr.mxu0 0.0
    %1049 = vmatpush2.xpose.msra.mxu0 0.0
    %1050 = vmatprep.subr.mxu0 0.0
    %1051 = vmatpush2.xpose.msra.mxu0 0.0
    %1052 = vmatprep.subr.mxu0 0.0
    %1053 = vmatpush2.xpose.msra.mxu0 0.0
    %1054 = vmatprep.subr.mxu0 0.0
    %1055 = vmatpush2.xpose.msra.mxu0 0.0
    %1056 = vmatprep.subr.mxu0 0.0
    %1057 = vmatpush2.xpose.msra.mxu0 0.0
    %1058 = vmatprep.subr.mxu0 0.0
    %1059 = vmatpush2.xpose.msra.mxu0 0.0
    %1060 = vmatprep.subr.mxu0 0.0
    %1061 = vmatpush2.xpose.msra.mxu0 0.0
    %1062 = vmatprep.subr.mxu0 0.0
    %1063 = vmatpush2.xpose.msra.mxu0 0.0
    %1064 = vmatprep.subr.mxu0 0.0
    %1065 = vmatpush2.xpose.msra.mxu0 0.0
    %1066 = vmatprep.subr.mxu0 0.0
    %1067 = vmatpush2.xpose.msra.mxu0 0.0
    %1068 = vmatprep.mubr.f32.mxu0 0.0
    %1069 = vmatmul.mubr.f32.gmra.mxu0 %v1000
    %v1070 = vpop.f32.mrf.mxu0
    %v1071 = vadd.f32 0.0, %v1070
    %v1072 = vpop.f32.mrf.mxu0
    %1073 = vdwg.mxu0
    %1074 = vrot.lane.b32.xlu0 %v126, 112
    %v1075 = vpop.permute.xlu0 %1074
    %1076 = vrot.lane.b32.xlu0 %v126, 80
    %v1077 = vpop.permute.xlu0 %1076
    %v1078 = vsel %vm137, %v1075, 0
    %v1080 = vsel %vm137, %v1077, 0
    %1082 = vmatprep.subr.mxu0 0.0
    %1083 = vmatpush1.xpose.msra.mxu0 0.0
    %1084 = vmatprep.subr.mxu0 0.0
    %1085 = vmatpush1.xpose.msra.mxu0 0.0
    %1086 = vmatprep.subr.mxu0 0.0
    %1087 = vmatpush1.xpose.msra.mxu0 0.0
    %1088 = vmatprep.subr.mxu0 0.0
    %1089 = vmatpush1.xpose.msra.mxu0 0.0
    %1090 = vmatprep.subr.mxu0 0.0
    %1091 = vmatpush1.xpose.msra.mxu0 0.0
    %1092 = vmatprep.subr.mxu0 0.0
    %1093 = vmatpush1.xpose.msra.mxu0 0.0
    %1094 = vmatprep.subr.mxu0 0.0
    %1095 = vmatpush1.xpose.msra.mxu0 0.0
    %1096 = vmatprep.subr.mxu0 0.0
    %1097 = vmatpush1.xpose.msra.mxu0 0.0
    %1098 = vmatprep.subr.mxu0 0.0
    %1099 = vmatpush1.xpose.msra.mxu0 0.0
    %1100 = vmatprep.subr.mxu0 0.0
    %1101 = vmatpush1.xpose.msra.mxu0 0.0
    %1102 = vmatprep.subr.mxu0 0.0
    %1103 = vmatpush1.xpose.msra.mxu0 0.0
    %1104 = vmatprep.subr.mxu0 0.0
    %1105 = vmatpush1.xpose.msra.mxu0 0.0
    %1106 = vmatprep.subr.mxu0 0.0
    %1107 = vmatpush1.xpose.msra.mxu0 0.0
    %1108 = vmatprep.subr.mxu0 0.0
    %1109 = vmatpush1.xpose.msra.mxu0 0.0
    %1110 = vmatprep.subr.mxu0 0.0
    %1111 = vmatpush1.xpose.msra.mxu0 0.0
    %1112 = vmatprep.subr.mxu0 0.0
    %1113 = vmatpush1.xpose.msra.mxu0 %v1080
    %1114 = vmatprep.subr.mxu0 0.0
    %1115 = vmatpush2.xpose.msra.mxu0 0.0
    %1116 = vmatprep.subr.mxu0 0.0
    %1117 = vmatpush2.xpose.msra.mxu0 0.0
    %1118 = vmatprep.subr.mxu0 0.0
    %1119 = vmatpush2.xpose.msra.mxu0 0.0
    %1120 = vmatprep.subr.mxu0 0.0
    %1121 = vmatpush2.xpose.msra.mxu0 0.0
    %1122 = vmatprep.subr.mxu0 0.0
    %1123 = vmatpush2.xpose.msra.mxu0 0.0
    %1124 = vmatprep.subr.mxu0 0.0
    %1125 = vmatpush2.xpose.msra.mxu0 0.0
    %1126 = vmatprep.subr.mxu0 0.0
    %1127 = vmatpush2.xpose.msra.mxu0 0.0
    %1128 = vmatprep.subr.mxu0 0.0
    %1129 = vmatpush2.xpose.msra.mxu0 0.0
    %1130 = vmatprep.subr.mxu0 0.0
    %1131 = vmatpush2.xpose.msra.mxu0 0.0
    %1132 = vmatprep.subr.mxu0 0.0
    %1133 = vmatpush2.xpose.msra.mxu0 0.0
    %1134 = vmatprep.subr.mxu0 0.0
    %1135 = vmatpush2.xpose.msra.mxu0 0.0
    %1136 = vmatprep.subr.mxu0 0.0
    %1137 = vmatpush2.xpose.msra.mxu0 0.0
    %1138 = vmatprep.subr.mxu0 0.0
    %1139 = vmatpush2.xpose.msra.mxu0 0.0
    %1140 = vmatprep.subr.mxu0 0.0
    %1141 = vmatpush2.xpose.msra.mxu0 0.0
    %1142 = vmatprep.subr.mxu0 0.0
    %1143 = vmatpush2.xpose.msra.mxu0 0.0
    %1144 = vmatprep.subr.mxu0 0.0
    %1145 = vmatpush2.xpose.msra.mxu0 0.0
    %1146 = vmatprep.mubr.f32.mxu0 0.0
    %1147 = vmatmul.mubr.f32.gmra.mxu0 %v1078
    %v1148 = vpop.f32.mrf.mxu0
    %v1149 = vadd.f32 0.0, %v1148
    %v1150 = vpop.f32.mrf.mxu0
    %1151 = vdwg.mxu0
    %v1152 = vmul.f32 %v1071, 0.35355338
    %v1153 = vmul.f32 %v1149, 0.35355338
    %v1154 = vadd.f32 %v1152, %v317
    %v1155 = vadd.f32 %v1153, %v321
    %v1156 = vsel %vm137, %v1154, -inf
    %1157 = vmax.xlane.f32.xlu0 %v1156
    %v1158 = vpop.xlane.xlu0 %1157
    %v1159 = vsel %vm137, %v1155, -inf
    %1160 = vmax.xlane.f32.xlu0 %v1159
    %v1161 = vpop.xlane.xlu0 %1160
    %v1162 = vsub.f32 %v1154, %v1158
    %v1163 = vsub.f32 %v1155, %v1161
    %v1164 = vmul.f32 %v1162, 1.442695
    %v1165 = vpow.pop %v1164
    %v1166 = vmul.f32 %v1163, 1.442695
    %v1167 = vpow.pop %v1166
    %v1168 = vsel %vm137, %v1165, 0.0
    %1169 = vadd.xlane.f32.xlu0 %v1168
    %v1170 = vpop.xlane.xlu0 %1169
    %v1171 = vsel %vm137, %v1167, 0.0
    %1172 = vadd.xlane.f32.xlu0 %v1171
    %v1173 = vpop.xlane.xlu0 %1172
    %v1174 = vrcp.pop %v1170
    %v1175 = vrcp.pop %v1173
    %v1176 = vmul.f32 %v1165, %v1174
    %v1177 = vmul.f32 %v1167, %v1175
    %1178 = vrot.lane.b32.xlu0 %v121, 48
    %v1179 = vpop.permute.xlu0 %1178
    %v1182 = vsel %vm137, %v1176, 0
    %1184 = vmatprep.subr.mxu0 0.0
    %1185 = vmatpush1.msra.mxu0 0.0
    %1186 = vmatprep.subr.mxu0 0.0
    %1187 = vmatpush1.msra.mxu0 0.0
    %1188 = vmatprep.subr.mxu0 0.0
    %1189 = vmatpush1.msra.mxu0 0.0
    %1190 = vmatprep.subr.mxu0 0.0
    %1191 = vmatpush1.msra.mxu0 0.0
    %1192 = vmatprep.subr.mxu0 0.0
    %1193 = vmatpush1.msra.mxu0 0.0
    %1194 = vmatprep.subr.mxu0 0.0
    %1195 = vmatpush1.msra.mxu0 0.0
    %1196 = vmatprep.subr.mxu0 0.0
    %1197 = vmatpush1.msra.mxu0 0.0
    %1198 = vmatprep.subr.mxu0 0.0
    %1199 = vmatpush1.msra.mxu0 0.0
    %1200 = vmatprep.subr.mxu0 0.0
    %1201 = vmatpush1.msra.mxu0 0.0
    %1202 = vmatprep.subr.mxu0 0.0
    %1203 = vmatpush1.msra.mxu0 0.0
    %1204 = vmatprep.subr.mxu0 0.0
    %1205 = vmatpush1.msra.mxu0 0.0
    %1206 = vmatprep.subr.mxu0 0.0
    %1207 = vmatpush1.msra.mxu0 0.0
    %1208 = vmatprep.subr.mxu0 0.0
    %1209 = vmatpush1.msra.mxu0 0.0
    %1210 = vmatprep.subr.mxu0 0.0
    %1211 = vmatpush1.msra.mxu0 0.0
    %1212 = vmatprep.subr.mxu0 0.0
    %1213 = vmatpush1.msra.mxu0 0.0
    %1214 = vmatprep.subr.mxu0 0.0
    %1215 = vmatpush1.msra.mxu0 %v1179
    %1216 = vmatprep.subr.mxu0 0.0
    %1217 = vmatpush2.msra.mxu0 0.0
    %1218 = vmatprep.subr.mxu0 0.0
    %1219 = vmatpush2.msra.mxu0 0.0
    %1220 = vmatprep.subr.mxu0 0.0
    %1221 = vmatpush2.msra.mxu0 0.0
    %1222 = vmatprep.subr.mxu0 0.0
    %1223 = vmatpush2.msra.mxu0 0.0
    %1224 = vmatprep.subr.mxu0 0.0
    %1225 = vmatpush2.msra.mxu0 0.0
    %1226 = vmatprep.subr.mxu0 0.0
    %1227 = vmatpush2.msra.mxu0 0.0
    %1228 = vmatprep.subr.mxu0 0.0
    %1229 = vmatpush2.msra.mxu0 0.0
    %1230 = vmatprep.subr.mxu0 0.0
    %1231 = vmatpush2.msra.mxu0 0.0
    %1232 = vmatprep.subr.mxu0 0.0
    %1233 = vmatpush2.msra.mxu0 0.0
    %1234 = vmatprep.subr.mxu0 0.0
    %1235 = vmatpush2.msra.mxu0 0.0
    %1236 = vmatprep.subr.mxu0 0.0
    %1237 = vmatpush2.msra.mxu0 0.0
    %1238 = vmatprep.subr.mxu0 0.0
    %1239 = vmatpush2.msra.mxu0 0.0
    %1240 = vmatprep.subr.mxu0 0.0
    %1241 = vmatpush2.msra.mxu0 0.0
    %1242 = vmatprep.subr.mxu0 0.0
    %1243 = vmatpush2.msra.mxu0 0.0
    %1244 = vmatprep.subr.mxu0 0.0
    %1245 = vmatpush2.msra.mxu0 0.0
    %1246 = vmatprep.subr.mxu0 0.0
    %1247 = vmatpush2.msra.mxu0 0.0
    %1248 = vmatprep.mubr.f32.mxu0 0.0
    %1249 = vmatmul.mubr.f32.gmra.mxu0 %v1182
    %v1250 = vpop.f32.mrf.mxu0
    %v1251 = vadd.f32 0.0, %v1250
    %v1252 = vpop.f32.mrf.mxu0
    %1253 = vdwg.mxu0
    %1254 = vrot.lane.b32.xlu0 %v126, 48
    %v1255 = vpop.permute.xlu0 %1254
    %v1258 = vsel %vm137, %v1177, 0
    %1260 = vmatprep.subr.mxu0 0.0
    %1261 = vmatpush1.msra.mxu0 0.0
    %1262 = vmatprep.subr.mxu0 0.0
    %1263 = vmatpush1.msra.mxu0 0.0
    %1264 = vmatprep.subr.mxu0 0.0
    %1265 = vmatpush1.msra.mxu0 0.0
    %1266 = vmatprep.subr.mxu0 0.0
    %1267 = vmatpush1.msra.mxu0 0.0
    %1268 = vmatprep.subr.mxu0 0.0
    %1269 = vmatpush1.msra.mxu0 0.0
    %1270 = vmatprep.subr.mxu0 0.0
    %1271 = vmatpush1.msra.mxu0 0.0
    %1272 = vmatprep.subr.mxu0 0.0
    %1273 = vmatpush1.msra.mxu0 0.0
    %1274 = vmatprep.subr.mxu0 0.0
    %1275 = vmatpush1.msra.mxu0 0.0
    %1276 = vmatprep.subr.mxu0 0.0
    %1277 = vmatpush1.msra.mxu0 0.0
    %1278 = vmatprep.subr.mxu0 0.0
    %1279 = vmatpush1.msra.mxu0 0.0
    %1280 = vmatprep.subr.mxu0 0.0
    %1281 = vmatpush1.msra.mxu0 0.0
    %1282 = vmatprep.subr.mxu0 0.0
    %1283 = vmatpush1.msra.mxu0 0.0
    %1284 = vmatprep.subr.mxu0 0.0
    %1285 = vmatpush1.msra.mxu0 0.0
    %1286 = vmatprep.subr.mxu0 0.0
    %1287 = vmatpush1.msra.mxu0 0.0
    %1288 = vmatprep.subr.mxu0 0.0
    %1289 = vmatpush1.msra.mxu0 0.0
    %1290 = vmatprep.subr.mxu0 0.0
    %1291 = vmatpush1.msra.mxu0 %v1255
    %1292 = vmatprep.subr.mxu0 0.0
    %1293 = vmatpush2.msra.mxu0 0.0
    %1294 = vmatprep.subr.mxu0 0.0
    %1295 = vmatpush2.msra.mxu0 0.0
    %1296 = vmatprep.subr.mxu0 0.0
    %1297 = vmatpush2.msra.mxu0 0.0
    %1298 = vmatprep.subr.mxu0 0.0
    %1299 = vmatpush2.msra.mxu0 0.0
    %1300 = vmatprep.subr.mxu0 0.0
    %1301 = vmatpush2.msra.mxu0 0.0
    %1302 = vmatprep.subr.mxu0 0.0
    %1303 = vmatpush2.msra.mxu0 0.0
    %1304 = vmatprep.subr.mxu0 0.0
    %1305 = vmatpush2.msra.mxu0 0.0
    %1306 = vmatprep.subr.mxu0 0.0
    %1307 = vmatpush2.msra.mxu0 0.0
    %1308 = vmatprep.subr.mxu0 0.0
    %1309 = vmatpush2.msra.mxu0 0.0
    %1310 = vmatprep.subr.mxu0 0.0
    %1311 = vmatpush2.msra.mxu0 0.0
    %1312 = vmatprep.subr.mxu0 0.0
    %1313 = vmatpush2.msra.mxu0 0.0
    %1314 = vmatprep.subr.mxu0 0.0
    %1315 = vmatpush2.msra.mxu0 0.0
    %1316 = vmatprep.subr.mxu0 0.0
    %1317 = vmatpush2.msra.mxu0 0.0
    %1318 = vmatprep.subr.mxu0 0.0
    %1319 = vmatpush2.msra.mxu0 0.0
    %1320 = vmatprep.subr.mxu0 0.0
    %1321 = vmatpush2.msra.mxu0 0.0
    %1322 = vmatprep.subr.mxu0 0.0
    %1323 = vmatpush2.msra.mxu0 0.0
    %1324 = vmatprep.mubr.f32.mxu0 0.0
    %1325 = vmatmul.mubr.f32.gmra.mxu0 %v1258
    %v1326 = vpop.f32.mrf.mxu0
    %v1327 = vadd.f32 0.0, %v1326
    %v1328 = vpop.f32.mrf.mxu0
    %1329 = vdwg.mxu0
    %v1331 = vsel %vm137, %v1251, 0
    %v1334 = vsel %vm137, %v1327, 0
    %1336 = vmatprep.subr.mxu0 0.0
    %1337 = vmatpush1.msra.mxu0 0.0
    %1338 = vmatprep.subr.mxu0 0.0
    %1339 = vmatpush1.msra.mxu0 0.0
    %1340 = vmatprep.subr.mxu0 0.0
    %1341 = vmatpush1.msra.mxu0 0.0
    %1342 = vmatprep.subr.mxu0 0.0
    %1343 = vmatpush1.msra.mxu0 0.0
    %1344 = vmatprep.subr.mxu0 0.0
    %1345 = vmatpush1.msra.mxu0 0.0
    %1346 = vmatprep.subr.mxu0 0.0
    %1347 = vmatpush1.msra.mxu0 0.0
    %1348 = vmatprep.subr.mxu0 0.0
    %1349 = vmatpush1.msra.mxu0 0.0
    %1350 = vmatprep.subr.mxu0 0.0
    %1351 = vmatpush1.msra.mxu0 0.0
    %1352 = vmatprep.subr.mxu0 0.0
    %1353 = vmatpush1.msra.mxu0 0.0
    %1354 = vmatprep.subr.mxu0 0.0
    %1355 = vmatpush1.msra.mxu0 0.0
    %1356 = vmatprep.subr.mxu0 0.0
    %1357 = vmatpush1.msra.mxu0 0.0
    %1358 = vmatprep.subr.mxu0 0.0
    %1359 = vmatpush1.msra.mxu0 0.0
    %1360 = vmatprep.subr.mxu0 0.0
    %1361 = vmatpush1.msra.mxu0 0.0
    %1362 = vmatprep.subr.mxu0 0.0
    %1363 = vmatpush1.msra.mxu0 0.0
    %1364 = vmatprep.subr.mxu0 0.0
    %1365 = vmatpush1.msra.mxu0 0.0
    %1366 = vmatprep.subr.mxu0 0.0
    %1367 = vmatpush1.msra.mxu0 %v132
    %1368 = vmatprep.subr.mxu0 0.0
    %1369 = vmatpush2.msra.mxu0 0.0
    %1370 = vmatprep.subr.mxu0 0.0
    %1371 = vmatpush2.msra.mxu0 0.0
    %1372 = vmatprep.subr.mxu0 0.0
    %1373 = vmatpush2.msra.mxu0 0.0
    %1374 = vmatprep.subr.mxu0 0.0
    %1375 = vmatpush2.msra.mxu0 0.0
    %1376 = vmatprep.subr.mxu0 0.0
    %1377 = vmatpush2.msra.mxu0 0.0
    %1378 = vmatprep.subr.mxu0 0.0
    %1379 = vmatpush2.msra.mxu0 0.0
    %1380 = vmatprep.subr.mxu0 0.0
    %1381 = vmatpush2.msra.mxu0 0.0
    %1382 = vmatprep.subr.mxu0 0.0
    %1383 = vmatpush2.msra.mxu0 0.0
    %1384 = vmatprep.subr.mxu0 0.0
    %1385 = vmatpush2.msra.mxu0 0.0
    %1386 = vmatprep.subr.mxu0 0.0
    %1387 = vmatpush2.msra.mxu0 0.0
    %1388 = vmatprep.subr.mxu0 0.0
    %1389 = vmatpush2.msra.mxu0 0.0
    %1390 = vmatprep.subr.mxu0 0.0
    %1391 = vmatpush2.msra.mxu0 0.0
    %1392 = vmatprep.subr.mxu0 0.0
    %1393 = vmatpush2.msra.mxu0 0.0
    %1394 = vmatprep.subr.mxu0 0.0
    %1395 = vmatpush2.msra.mxu0 0.0
    %1396 = vmatprep.subr.mxu0 0.0
    %1397 = vmatpush2.msra.mxu0 0.0
    %1398 = vmatprep.subr.mxu0 0.0
    %1399 = vmatpush2.msra.mxu0 0.0
    %1400 = vmatprep.mubr.f32.mxu0 0.0
    %1401 = vmatmul.mubr.f32.gmra.mxu0 %v1331
    %v1402 = vpop.f32.mrf.mxu0
    %v1403 = vadd.f32 0.0, %v1402
    %v1404 = vpop.f32.mrf.mxu0
    %1405 = vmatprep.mubr.f32.mxu0 0.0
    %1406 = vmatmul.mubr.f32.gmra.mxu0 %v1334
    %v1407 = vpop.f32.mrf.mxu0
    %v1408 = vadd.f32 0.0, %v1407
    %v1409 = vpop.f32.mrf.mxu0
    %1410 = vdwg.mxu0
    %v1411 = vadd.f32 %v988, %v1403
    %v1412 = vadd.f32 %v993, %v1408
    %1413 = vrot.lane.b32.xlu0 %v121, 104
    %v1414 = vpop.permute.xlu0 %1413
    %1415 = vrot.lane.b32.xlu0 %v121, 72
    %v1416 = vpop.permute.xlu0 %1415
    %v1417 = vsel %vm137, %v1414, 0
    %v1419 = vsel %vm137, %v1416, 0
    %1421 = vmatprep.subr.mxu0 0.0
    %1422 = vmatpush1.xpose.msra.mxu0 0.0
    %1423 = vmatprep.subr.mxu0 0.0
    %1424 = vmatpush1.xpose.msra.mxu0 0.0
    %1425 = vmatprep.subr.mxu0 0.0
    %1426 = vmatpush1.xpose.msra.mxu0 0.0
    %1427 = vmatprep.subr.mxu0 0.0
    %1428 = vmatpush1.xpose.msra.mxu0 0.0
    %1429 = vmatprep.subr.mxu0 0.0
    %1430 = vmatpush1.xpose.msra.mxu0 0.0
    %1431 = vmatprep.subr.mxu0 0.0
    %1432 = vmatpush1.xpose.msra.mxu0 0.0
    %1433 = vmatprep.subr.mxu0 0.0
    %1434 = vmatpush1.xpose.msra.mxu0 0.0
    %1435 = vmatprep.subr.mxu0 0.0
    %1436 = vmatpush1.xpose.msra.mxu0 0.0
    %1437 = vmatprep.subr.mxu0 0.0
    %1438 = vmatpush1.xpose.msra.mxu0 0.0
    %1439 = vmatprep.subr.mxu0 0.0
    %1440 = vmatpush1.xpose.msra.mxu0 0.0
    %1441 = vmatprep.subr.mxu0 0.0
    %1442 = vmatpush1.xpose.msra.mxu0 0.0
    %1443 = vmatprep.subr.mxu0 0.0
    %1444 = vmatpush1.xpose.msra.mxu0 0.0
    %1445 = vmatprep.subr.mxu0 0.0
    %1446 = vmatpush1.xpose.msra.mxu0 0.0
    %1447 = vmatprep.subr.mxu0 0.0
    %1448 = vmatpush1.xpose.msra.mxu0 0.0
    %1449 = vmatprep.subr.mxu0 0.0
    %1450 = vmatpush1.xpose.msra.mxu0 0.0
    %1451 = vmatprep.subr.mxu0 0.0
    %1452 = vmatpush1.xpose.msra.mxu0 %v1419
    %1453 = vmatprep.subr.mxu0 0.0
    %1454 = vmatpush2.xpose.msra.mxu0 0.0
    %1455 = vmatprep.subr.mxu0 0.0
    %1456 = vmatpush2.xpose.msra.mxu0 0.0
    %1457 = vmatprep.subr.mxu0 0.0
    %1458 = vmatpush2.xpose.msra.mxu0 0.0
    %1459 = vmatprep.subr.mxu0 0.0
    %1460 = vmatpush2.xpose.msra.mxu0 0.0
    %1461 = vmatprep.subr.mxu0 0.0
    %1462 = vmatpush2.xpose.msra.mxu0 0.0
    %1463 = vmatprep.subr.mxu0 0.0
    %1464 = vmatpush2.xpose.msra.mxu0 0.0
    %1465 = vmatprep.subr.mxu0 0.0
    %1466 = vmatpush2.xpose.msra.mxu0 0.0
    %1467 = vmatprep.subr.mxu0 0.0
    %1468 = vmatpush2.xpose.msra.mxu0 0.0
    %1469 = vmatprep.subr.mxu0 0.0
    %1470 = vmatpush2.xpose.msra.mxu0 0.0
    %1471 = vmatprep.subr.mxu0 0.0
    %1472 = vmatpush2.xpose.msra.mxu0 0.0
    %1473 = vmatprep.subr.mxu0 0.0
    %1474 = vmatpush2.xpose.msra.mxu0 0.0
    %1475 = vmatprep.subr.mxu0 0.0
    %1476 = vmatpush2.xpose.msra.mxu0 0.0
    %1477 = vmatprep.subr.mxu0 0.0
    %1478 = vmatpush2.xpose.msra.mxu0 0.0
    %1479 = vmatprep.subr.mxu0 0.0
    %1480 = vmatpush2.xpose.msra.mxu0 0.0
    %1481 = vmatprep.subr.mxu0 0.0
    %1482 = vmatpush2.xpose.msra.mxu0 0.0
    %1483 = vmatprep.subr.mxu0 0.0
    %1484 = vmatpush2.xpose.msra.mxu0 0.0
    %1485 = vmatprep.mubr.f32.mxu0 0.0
    %1486 = vmatmul.mubr.f32.gmra.mxu0 %v1417
    %v1487 = vpop.f32.mrf.mxu0
    %v1488 = vadd.f32 0.0, %v1487
    %v1489 = vpop.f32.mrf.mxu0
    %1490 = vdwg.mxu0
    %1491 = vrot.lane.b32.xlu0 %v126, 104
    %v1492 = vpop.permute.xlu0 %1491
    %1493 = vrot.lane.b32.xlu0 %v126, 72
    %v1494 = vpop.permute.xlu0 %1493
    %v1495 = vsel %vm137, %v1492, 0
    %v1497 = vsel %vm137, %v1494, 0
    %1499 = vmatprep.subr.mxu0 0.0
    %1500 = vmatpush1.xpose.msra.mxu0 0.0
    %1501 = vmatprep.subr.mxu0 0.0
    %1502 = vmatpush1.xpose.msra.mxu0 0.0
    %1503 = vmatprep.subr.mxu0 0.0
    %1504 = vmatpush1.xpose.msra.mxu0 0.0
    %1505 = vmatprep.subr.mxu0 0.0
    %1506 = vmatpush1.xpose.msra.mxu0 0.0
    %1507 = vmatprep.subr.mxu0 0.0
    %1508 = vmatpush1.xpose.msra.mxu0 0.0
    %1509 = vmatprep.subr.mxu0 0.0
    %1510 = vmatpush1.xpose.msra.mxu0 0.0
    %1511 = vmatprep.subr.mxu0 0.0
    %1512 = vmatpush1.xpose.msra.mxu0 0.0
    %1513 = vmatprep.subr.mxu0 0.0
    %1514 = vmatpush1.xpose.msra.mxu0 0.0
    %1515 = vmatprep.subr.mxu0 0.0
    %1516 = vmatpush1.xpose.msra.mxu0 0.0
    %1517 = vmatprep.subr.mxu0 0.0
    %1518 = vmatpush1.xpose.msra.mxu0 0.0
    %1519 = vmatprep.subr.mxu0 0.0
    %1520 = vmatpush1.xpose.msra.mxu0 0.0
    %1521 = vmatprep.subr.mxu0 0.0
    %1522 = vmatpush1.xpose.msra.mxu0 0.0
    %1523 = vmatprep.subr.mxu0 0.0
    %1524 = vmatpush1.xpose.msra.mxu0 0.0
    %1525 = vmatprep.subr.mxu0 0.0
    %1526 = vmatpush1.xpose.msra.mxu0 0.0
    %1527 = vmatprep.subr.mxu0 0.0
    %1528 = vmatpush1.xpose.msra.mxu0 0.0
    %1529 = vmatprep.subr.mxu0 0.0
    %1530 = vmatpush1.xpose.msra.mxu0 %v1497
    %1531 = vmatprep.subr.mxu0 0.0
    %1532 = vmatpush2.xpose.msra.mxu0 0.0
    %1533 = vmatprep.subr.mxu0 0.0
    %1534 = vmatpush2.xpose.msra.mxu0 0.0
    %1535 = vmatprep.subr.mxu0 0.0
    %1536 = vmatpush2.xpose.msra.mxu0 0.0
    %1537 = vmatprep.subr.mxu0 0.0
    %1538 = vmatpush2.xpose.msra.mxu0 0.0
    %1539 = vmatprep.subr.mxu0 0.0
    %1540 = vmatpush2.xpose.msra.mxu0 0.0
    %1541 = vmatprep.subr.mxu0 0.0
    %1542 = vmatpush2.xpose.msra.mxu0 0.0
    %1543 = vmatprep.subr.mxu0 0.0
    %1544 = vmatpush2.xpose.msra.mxu0 0.0
    %1545 = vmatprep.subr.mxu0 0.0
    %1546 = vmatpush2.xpose.msra.mxu0 0.0
    %1547 = vmatprep.subr.mxu0 0.0
    %1548 = vmatpush2.xpose.msra.mxu0 0.0
    %1549 = vmatprep.subr.mxu0 0.0
    %1550 = vmatpush2.xpose.msra.mxu0 0.0
    %1551 = vmatprep.subr.mxu0 0.0
    %1552 = vmatpush2.xpose.msra.mxu0 0.0
    %1553 = vmatprep.subr.mxu0 0.0
    %1554 = vmatpush2.xpose.msra.mxu0 0.0
    %1555 = vmatprep.subr.mxu0 0.0
    %1556 = vmatpush2.xpose.msra.mxu0 0.0
    %1557 = vmatprep.subr.mxu0 0.0
    %1558 = vmatpush2.xpose.msra.mxu0 0.0
    %1559 = vmatprep.subr.mxu0 0.0
    %1560 = vmatpush2.xpose.msra.mxu0 0.0
    %1561 = vmatprep.subr.mxu0 0.0
    %1562 = vmatpush2.xpose.msra.mxu0 0.0
    %1563 = vmatprep.mubr.f32.mxu0 0.0
    %1564 = vmatmul.mubr.f32.gmra.mxu0 %v1495
    %v1565 = vpop.f32.mrf.mxu0
    %v1566 = vadd.f32 0.0, %v1565
    %v1567 = vpop.f32.mrf.mxu0
    %1568 = vdwg.mxu0
    %v1569 = vmul.f32 %v1488, 0.35355338
    %v1570 = vmul.f32 %v1566, 0.35355338
    %v1571 = vadd.f32 %v1569, %v317
    %v1572 = vadd.f32 %v1570, %v321
    %v1573 = vsel %vm137, %v1571, -inf
    %1574 = vmax.xlane.f32.xlu0 %v1573
    %v1575 = vpop.xlane.xlu0 %1574
    %v1576 = vsel %vm137, %v1572, -inf
    %1577 = vmax.xlane.f32.xlu0 %v1576
    %v1578 = vpop.xlane.xlu0 %1577
    %v1579 = vsub.f32 %v1571, %v1575
    %v1580 = vsub.f32 %v1572, %v1578
    %v1581 = vmul.f32 %v1579, 1.442695
    %v1582 = vpow.pop %v1581
    %v1583 = vmul.f32 %v1580, 1.442695
    %v1584 = vpow.pop %v1583
    %v1585 = vsel %vm137, %v1582, 0.0
    %1586 = vadd.xlane.f32.xlu0 %v1585
    %v1587 = vpop.xlane.xlu0 %1586
    %v1588 = vsel %vm137, %v1584, 0.0
    %1589 = vadd.xlane.f32.xlu0 %v1588
    %v1590 = vpop.xlane.xlu0 %1589
    %v1591 = vrcp.pop %v1587
    %v1592 = vrcp.pop %v1590
    %v1593 = vmul.f32 %v1582, %v1591
    %v1594 = vmul.f32 %v1584, %v1592
    %1595 = vrot.lane.b32.xlu0 %v121, 40
    %v1596 = vpop.permute.xlu0 %1595
    %v1599 = vsel %vm137, %v1593, 0
    %1601 = vmatprep.subr.mxu0 0.0
    %1602 = vmatpush1.msra.mxu0 0.0
    %1603 = vmatprep.subr.mxu0 0.0
    %1604 = vmatpush1.msra.mxu0 0.0
    %1605 = vmatprep.subr.mxu0 0.0
    %1606 = vmatpush1.msra.mxu0 0.0
    %1607 = vmatprep.subr.mxu0 0.0
    %1608 = vmatpush1.msra.mxu0 0.0
    %1609 = vmatprep.subr.mxu0 0.0
    %1610 = vmatpush1.msra.mxu0 0.0
    %1611 = vmatprep.subr.mxu0 0.0
    %1612 = vmatpush1.msra.mxu0 0.0
    %1613 = vmatprep.subr.mxu0 0.0
    %1614 = vmatpush1.msra.mxu0 0.0
    %1615 = vmatprep.subr.mxu0 0.0
    %1616 = vmatpush1.msra.mxu0 0.0
    %1617 = vmatprep.subr.mxu0 0.0
    %1618 = vmatpush1.msra.mxu0 0.0
    %1619 = vmatprep.subr.mxu0 0.0
    %1620 = vmatpush1.msra.mxu0 0.0
    %1621 = vmatprep.subr.mxu0 0.0
    %1622 = vmatpush1.msra.mxu0 0.0
    %1623 = vmatprep.subr.mxu0 0.0
    %1624 = vmatpush1.msra.mxu0 0.0
    %1625 = vmatprep.subr.mxu0 0.0
    %1626 = vmatpush1.msra.mxu0 0.0
    %1627 = vmatprep.subr.mxu0 0.0
    %1628 = vmatpush1.msra.mxu0 0.0
    %1629 = vmatprep.subr.mxu0 0.0
    %1630 = vmatpush1.msra.mxu0 0.0
    %1631 = vmatprep.subr.mxu0 0.0
    %1632 = vmatpush1.msra.mxu0 %v1596
    %1633 = vmatprep.subr.mxu0 0.0
    %1634 = vmatpush2.msra.mxu0 0.0
    %1635 = vmatprep.subr.mxu0 0.0
    %1636 = vmatpush2.msra.mxu0 0.0
    %1637 = vmatprep.subr.mxu0 0.0
    %1638 = vmatpush2.msra.mxu0 0.0
    %1639 = vmatprep.subr.mxu0 0.0
    %1640 = vmatpush2.msra.mxu0 0.0
    %1641 = vmatprep.subr.mxu0 0.0
    %1642 = vmatpush2.msra.mxu0 0.0
    %1643 = vmatprep.subr.mxu0 0.0
    %1644 = vmatpush2.msra.mxu0 0.0
    %1645 = vmatprep.subr.mxu0 0.0
    %1646 = vmatpush2.msra.mxu0 0.0
    %1647 = vmatprep.subr.mxu0 0.0
    %1648 = vmatpush2.msra.mxu0 0.0
    %1649 = vmatprep.subr.mxu0 0.0
    %1650 = vmatpush2.msra.mxu0 0.0
    %1651 = vmatprep.subr.mxu0 0.0
    %1652 = vmatpush2.msra.mxu0 0.0
    %1653 = vmatprep.subr.mxu0 0.0
    %1654 = vmatpush2.msra.mxu0 0.0
    %1655 = vmatprep.subr.mxu0 0.0
    %1656 = vmatpush2.msra.mxu0 0.0
    %1657 = vmatprep.subr.mxu0 0.0
    %1658 = vmatpush2.msra.mxu0 0.0
    %1659 = vmatprep.subr.mxu0 0.0
    %1660 = vmatpush2.msra.mxu0 0.0
    %1661 = vmatprep.subr.mxu0 0.0
    %1662 = vmatpush2.msra.mxu0 0.0
    %1663 = vmatprep.subr.mxu0 0.0
    %1664 = vmatpush2.msra.mxu0 0.0
    %1665 = vmatprep.mubr.f32.mxu0 0.0
    %1666 = vmatmul.mubr.f32.gmra.mxu0 %v1599
    %v1667 = vpop.f32.mrf.mxu0
    %v1668 = vadd.f32 0.0, %v1667
    %v1669 = vpop.f32.mrf.mxu0
    %1670 = vdwg.mxu0
    %1671 = vrot.lane.b32.xlu0 %v126, 40
    %v1672 = vpop.permute.xlu0 %1671
    %v1675 = vsel %vm137, %v1594, 0
    %1677 = vmatprep.subr.mxu0 0.0
    %1678 = vmatpush1.msra.mxu0 0.0
    %1679 = vmatprep.subr.mxu0 0.0
    %1680 = vmatpush1.msra.mxu0 0.0
    %1681 = vmatprep.subr.mxu0 0.0
    %1682 = vmatpush1.msra.mxu0 0.0
    %1683 = vmatprep.subr.mxu0 0.0
    %1684 = vmatpush1.msra.mxu0 0.0
    %1685 = vmatprep.subr.mxu0 0.0
    %1686 = vmatpush1.msra.mxu0 0.0
    %1687 = vmatprep.subr.mxu0 0.0
    %1688 = vmatpush1.msra.mxu0 0.0
    %1689 = vmatprep.subr.mxu0 0.0
    %1690 = vmatpush1.msra.mxu0 0.0
    %1691 = vmatprep.subr.mxu0 0.0
    %1692 = vmatpush1.msra.mxu0 0.0
    %1693 = vmatprep.subr.mxu0 0.0
    %1694 = vmatpush1.msra.mxu0 0.0
    %1695 = vmatprep.subr.mxu0 0.0
    %1696 = vmatpush1.msra.mxu0 0.0
    %1697 = vmatprep.subr.mxu0 0.0
    %1698 = vmatpush1.msra.mxu0 0.0
    %1699 = vmatprep.subr.mxu0 0.0
    %1700 = vmatpush1.msra.mxu0 0.0
    %1701 = vmatprep.subr.mxu0 0.0
    %1702 = vmatpush1.msra.mxu0 0.0
    %1703 = vmatprep.subr.mxu0 0.0
    %1704 = vmatpush1.msra.mxu0 0.0
    %1705 = vmatprep.subr.mxu0 0.0
    %1706 = vmatpush1.msra.mxu0 0.0
    %1707 = vmatprep.subr.mxu0 0.0
    %1708 = vmatpush1.msra.mxu0 %v1672
    %1709 = vmatprep.subr.mxu0 0.0
    %1710 = vmatpush2.msra.mxu0 0.0
    %1711 = vmatprep.subr.mxu0 0.0
    %1712 = vmatpush2.msra.mxu0 0.0
    %1713 = vmatprep.subr.mxu0 0.0
    %1714 = vmatpush2.msra.mxu0 0.0
    %1715 = vmatprep.subr.mxu0 0.0
    %1716 = vmatpush2.msra.mxu0 0.0
    %1717 = vmatprep.subr.mxu0 0.0
    %1718 = vmatpush2.msra.mxu0 0.0
    %1719 = vmatprep.subr.mxu0 0.0
    %1720 = vmatpush2.msra.mxu0 0.0
    %1721 = vmatprep.subr.mxu0 0.0
    %1722 = vmatpush2.msra.mxu0 0.0
    %1723 = vmatprep.subr.mxu0 0.0
    %1724 = vmatpush2.msra.mxu0 0.0
    %1725 = vmatprep.subr.mxu0 0.0
    %1726 = vmatpush2.msra.mxu0 0.0
    %1727 = vmatprep.subr.mxu0 0.0
    %1728 = vmatpush2.msra.mxu0 0.0
    %1729 = vmatprep.subr.mxu0 0.0
    %1730 = vmatpush2.msra.mxu0 0.0
    %1731 = vmatprep.subr.mxu0 0.0
    %1732 = vmatpush2.msra.mxu0 0.0
    %1733 = vmatprep.subr.mxu0 0.0
    %1734 = vmatpush2.msra.mxu0 0.0
    %1735 = vmatprep.subr.mxu0 0.0
    %1736 = vmatpush2.msra.mxu0 0.0
    %1737 = vmatprep.subr.mxu0 0.0
    %1738 = vmatpush2.msra.mxu0 0.0
    %1739 = vmatprep.subr.mxu0 0.0
    %1740 = vmatpush2.msra.mxu0 0.0
    %1741 = vmatprep.mubr.f32.mxu0 0.0
    %1742 = vmatmul.mubr.f32.gmra.mxu0 %v1675
    %v1743 = vpop.f32.mrf.mxu0
    %v1744 = vadd.f32 0.0, %v1743
    %v1745 = vpop.f32.mrf.mxu0
    %1746 = vdwg.mxu0
    %v1748 = vsel %vm137, %v1668, 0
    %v1751 = vsel %vm137, %v1744, 0
    %1753 = vmatprep.subr.mxu0 0.0
    %1754 = vmatpush1.msra.mxu0 0.0
    %1755 = vmatprep.subr.mxu0 0.0
    %1756 = vmatpush1.msra.mxu0 0.0
    %1757 = vmatprep.subr.mxu0 0.0
    %1758 = vmatpush1.msra.mxu0 0.0
    %1759 = vmatprep.subr.mxu0 0.0
    %1760 = vmatpush1.msra.mxu0 0.0
    %1761 = vmatprep.subr.mxu0 0.0
    %1762 = vmatpush1.msra.mxu0 0.0
    %1763 = vmatprep.subr.mxu0 0.0
    %1764 = vmatpush1.msra.mxu0 0.0
    %1765 = vmatprep.subr.mxu0 0.0
    %1766 = vmatpush1.msra.mxu0 0.0
    %1767 = vmatprep.subr.mxu0 0.0
    %1768 = vmatpush1.msra.mxu0 0.0
    %1769 = vmatprep.subr.mxu0 0.0
    %1770 = vmatpush1.msra.mxu0 0.0
    %1771 = vmatprep.subr.mxu0 0.0
    %1772 = vmatpush1.msra.mxu0 0.0
    %1773 = vmatprep.subr.mxu0 0.0
    %1774 = vmatpush1.msra.mxu0 0.0
    %1775 = vmatprep.subr.mxu0 0.0
    %1776 = vmatpush1.msra.mxu0 0.0
    %1777 = vmatprep.subr.mxu0 0.0
    %1778 = vmatpush1.msra.mxu0 0.0
    %1779 = vmatprep.subr.mxu0 0.0
    %1780 = vmatpush1.msra.mxu0 0.0
    %1781 = vmatprep.subr.mxu0 0.0
    %1782 = vmatpush1.msra.mxu0 0.0
    %1783 = vmatprep.subr.mxu0 0.0
    %1784 = vmatpush1.msra.mxu0 %v133
    %1785 = vmatprep.subr.mxu0 0.0
    %1786 = vmatpush2.msra.mxu0 0.0
    %1787 = vmatprep.subr.mxu0 0.0
    %1788 = vmatpush2.msra.mxu0 0.0
    %1789 = vmatprep.subr.mxu0 0.0
    %1790 = vmatpush2.msra.mxu0 0.0
    %1791 = vmatprep.subr.mxu0 0.0
    %1792 = vmatpush2.msra.mxu0 0.0
    %1793 = vmatprep.subr.mxu0 0.0
    %1794 = vmatpush2.msra.mxu0 0.0
    %1795 = vmatprep.subr.mxu0 0.0
    %1796 = vmatpush2.msra.mxu0 0.0
    %1797 = vmatprep.subr.mxu0 0.0
    %1798 = vmatpush2.msra.mxu0 0.0
    %1799 = vmatprep.subr.mxu0 0.0
    %1800 = vmatpush2.msra.mxu0 0.0
    %1801 = vmatprep.subr.mxu0 0.0
    %1802 = vmatpush2.msra.mxu0 0.0
    %1803 = vmatprep.subr.mxu0 0.0
    %1804 = vmatpush2.msra.mxu0 0.0
    %1805 = vmatprep.subr.mxu0 0.0
    %1806 = vmatpush2.msra.mxu0 0.0
    %1807 = vmatprep.subr.mxu0 0.0
    %1808 = vmatpush2.msra.mxu0 0.0
    %1809 = vmatprep.subr.mxu0 0.0
    %1810 = vmatpush2.msra.mxu0 0.0
    %1811 = vmatprep.subr.mxu0 0.0
    %1812 = vmatpush2.msra.mxu0 0.0
    %1813 = vmatprep.subr.mxu0 0.0
    %1814 = vmatpush2.msra.mxu0 0.0
    %1815 = vmatprep.subr.mxu0 0.0
    %1816 = vmatpush2.msra.mxu0 0.0
    %1817 = vmatprep.mubr.f32.mxu0 0.0
    %1818 = vmatmul.mubr.f32.gmra.mxu0 %v1748
    %v1819 = vpop.f32.mrf.mxu0
    %v1820 = vadd.f32 0.0, %v1819
    %v1821 = vpop.f32.mrf.mxu0
    %1822 = vmatprep.mubr.f32.mxu0 0.0
    %1823 = vmatmul.mubr.f32.gmra.mxu0 %v1751
    %v1824 = vpop.f32.mrf.mxu0
    %v1825 = vadd.f32 0.0, %v1824
    %v1826 = vpop.f32.mrf.mxu0
    %1827 = vdwg.mxu0
    %v1828 = vadd.f32 %v1411, %v1820
    %v1829 = vadd.f32 %v1412, %v1825
    %v1830 = vlaneseq
    %v1831 = vshrl.u32 %v1830, 7
    %v1832 = vsub.s32 0, %v1831
    %v1833 = vrot.slane %v129, %v1832
    %v1834 = vadd.f32 %v1828, %v1833
    %v1835 = vadd.f32 %v1829, %v1833
    %v1836 = vadd.f32 %v34, %v1834
    %v1837 = vadd.f32 %v35, %v1835
    %v1838 = vsel %vm47, %v1836, 0.0
    %1839 = vadd.xlane.f32.xlu0 %v1838
    %v1840 = vpop.xlane.xlu0 %1839
    %v1841 = vsel %vm47, %v1837, 0.0
    %1842 = vadd.xlane.f32.xlu0 %v1841
    %v1843 = vpop.xlane.xlu0 %1842
    %v1844 = vrcp.pop 32.0
    %v1845 = vmul.f32 %v1840, %v1844
    %v1846 = vmul.f32 %v1843, %v1844
    %v1847 = vsub.f32 %v1836, %v1845
    %v1848 = vsub.f32 %v1837, %v1846
    %v1849 = vmul.f32 %v1847, %v1847
    %v1850 = vmul.f32 %v1848, %v1848
    %v1851 = vsel %vm47, %v1849, 0.0
    %1852 = vadd.xlane.f32.xlu0 %v1851
    %v1853 = vpop.xlane.xlu0 %1852
    %v1854 = vsel %vm47, %v1850, 0.0
    %1855 = vadd.xlane.f32.xlu0 %v1854
    %v1856 = vpop.xlane.xlu0 %1855
    %v1857 = vmul.f32 %v1853, %v1844
    %v1858 = vmul.f32 %v1856, %v1844
    %v1859 = vadd.f32 %v1857, 1e-12
    %v1860 = vadd.f32 %v1858, 1e-12
    %v1861 = vrsqrt.pop %v1859
    %v1862 = vrsqrt.pop %v1860
    %v1863 = vmul.f32 %v1847, %v1861
    %v1864 = vmul.f32 %v1848, %v1862
    %v1865 = vlaneseq
    %v1866 = vshrl.u32 %v1865, 7
    %v1867 = vsub.s32 1, %v1866
    %v1868 = vrot.slane %v129, %v1867
    %v1869 = vmul.f32 %v1863, %v1868
    %v1870 = vmul.f32 %v1864, %v1868
    %v1871 = vlaneseq
    %v1872 = vshrl.u32 %v1871, 7
    %v1873 = vsub.s32 2, %v1872
    %v1874 = vrot.slane %v129, %v1873
    %v1875 = vadd.f32 %v1869, %v1874
    %v1876 = vadd.f32 %v1870, %v1874
    %v1877 = vld [vmem:[%s6] sm:$0xff]
    %v1878 = vld [vmem:[%s6 + $0x8] sm:$0xff]
    %v1879 = vld [vmem:[%s6 + $0x10] sm:$0xff]
    %v1880 = vld [vmem:[%s6 + $0x18] sm:$0xff]
    %v1881 = vld [vmem:[%s7] sm:$0x1]
    %v1883 = vlaneseq
    %v1884 = vshrl.u32 %v1883, 7
    %v1885 = vsub.s32 0, %v1884
    %v1886 = vrot.slane %v1881, %v1885
    %v1889 = vsel %vm47, %v1875, 0
    %v1892 = vsel %vm47, %v1876, 0
    %1894 = vmatprep.subr.mxu0 0.0
    %1895 = vmatpush1.msra.mxu0 0.0
    %1896 = vmatprep.subr.mxu0 0.0
    %1897 = vmatpush1.msra.mxu0 0.0
    %1898 = vmatprep.subr.mxu0 0.0
    %1899 = vmatpush1.msra.mxu0 0.0
    %1900 = vmatprep.subr.mxu0 0.0
    %1901 = vmatpush1.msra.mxu0 0.0
    %1902 = vmatprep.subr.mxu0 0.0
    %1903 = vmatpush1.msra.mxu0 0.0
    %1904 = vmatprep.subr.mxu0 0.0
    %1905 = vmatpush1.msra.mxu0 0.0
    %1906 = vmatprep.subr.mxu0 0.0
    %1907 = vmatpush1.msra.mxu0 0.0
    %1908 = vmatprep.subr.mxu0 0.0
    %1909 = vmatpush1.msra.mxu0 0.0
    %1910 = vmatprep.subr.mxu0 0.0
    %1911 = vmatpush1.msra.mxu0 0.0
    %1912 = vmatprep.subr.mxu0 0.0
    %1913 = vmatpush1.msra.mxu0 0.0
    %1914 = vmatprep.subr.mxu0 0.0
    %1915 = vmatpush1.msra.mxu0 0.0
    %1916 = vmatprep.subr.mxu0 0.0
    %1917 = vmatpush1.msra.mxu0 0.0
    %1918 = vmatprep.subr.mxu0 0.0
    %1919 = vmatpush1.msra.mxu0 %v1880
    %1920 = vmatprep.subr.mxu0 0.0
    %1921 = vmatpush1.msra.mxu0 %v1879
    %1922 = vmatprep.subr.mxu0 0.0
    %1923 = vmatpush1.msra.mxu0 %v1878
    %1924 = vmatprep.subr.mxu0 0.0
    %1925 = vmatpush1.msra.mxu0 %v1877
    %1926 = vmatprep.subr.mxu0 0.0
    %1927 = vmatpush2.msra.mxu0 0.0
    %1928 = vmatprep.subr.mxu0 0.0
    %1929 = vmatpush2.msra.mxu0 0.0
    %1930 = vmatprep.subr.mxu0 0.0
    %1931 = vmatpush2.msra.mxu0 0.0
    %1932 = vmatprep.subr.mxu0 0.0
    %1933 = vmatpush2.msra.mxu0 0.0
    %1934 = vmatprep.subr.mxu0 0.0
    %1935 = vmatpush2.msra.mxu0 0.0
    %1936 = vmatprep.subr.mxu0 0.0
    %1937 = vmatpush2.msra.mxu0 0.0
    %1938 = vmatprep.subr.mxu0 0.0
    %1939 = vmatpush2.msra.mxu0 0.0
    %1940 = vmatprep.subr.mxu0 0.0
    %1941 = vmatpush2.msra.mxu0 0.0
    %1942 = vmatprep.subr.mxu0 0.0
    %1943 = vmatpush2.msra.mxu0 0.0
    %1944 = vmatprep.subr.mxu0 0.0
    %1945 = vmatpush2.msra.mxu0 0.0
    %1946 = vmatprep.subr.mxu0 0.0
    %1947 = vmatpush2.msra.mxu0 0.0
    %1948 = vmatprep.subr.mxu0 0.0
    %1949 = vmatpush2.msra.mxu0 0.0
    %1950 = vmatprep.subr.mxu0 0.0
    %1951 = vmatpush2.msra.mxu0 0.0
    %1952 = vmatprep.subr.mxu0 0.0
    %1953 = vmatpush2.msra.mxu0 0.0
    %1954 = vmatprep.subr.mxu0 0.0
    %1955 = vmatpush2.msra.mxu0 0.0
    %1956 = vmatprep.subr.mxu0 0.0
    %1957 = vmatpush2.msra.mxu0 0.0
    %1958 = vmatprep.mubr.f32.mxu0 0.0
    %1959 = vmatmul.mubr.f32.gmra.mxu0 %v1889
    %v1960 = vpop.f32.mrf.mxu0
    %v1961 = vadd.f32 %v1886, %v1960
    %v1962 = vpop.f32.mrf.mxu0
    %1963 = vmatprep.mubr.f32.mxu0 0.0
    %1964 = vmatmul.mubr.f32.gmra.mxu0 %v1892
    %v1965 = vpop.f32.mrf.mxu0
    %v1966 = vadd.f32 %v1886, %v1965
    %v1967 = vpop.f32.mrf.mxu0
    %1968 = vdwg.mxu0
    %v1969 = vmul.f32 %v1961, 0.5
    %v1970 = vmul.f32 %v1966, 0.5
    %v1971 = vmul.f32 %v1961, 0.044715
    %v1972 = vmul.f32 %v1966, 0.044715
    %v1973 = vmul.f32 %v1971, %v1961
    %v1974 = vmul.f32 %v1972, %v1966
    %v1975 = vmul.f32 %v1973, %v1961
    %v1976 = vmul.f32 %v1974, %v1966
    %v1977 = vadd.f32 %v1961, %v1975
    %v1978 = vadd.f32 %v1966, %v1976
    %v1979 = vmul.f32 %v1977, 0.7978846
    %v1980 = vmul.f32 %v1978, 0.7978846
    %v1981 = vtanh.pop %v1979
    %v1982 = vtanh.pop %v1980
    %v1983 = vadd.f32 %v1981, 1.0
    %v1984 = vadd.f32 %v1982, 1.0
    %v1985 = vmul.f32 %v1969, %v1983
    %v1986 = vmul.f32 %v1970, %v1984
    %v1987 = vld [vmem:[%s8] sm:$0xff]
    %v1988 = vld [vmem:[%s8 + $0x8] sm:$0xff]
    %v1989 = vld [vmem:[%s8 + $0x10] sm:$0xff]
    %v1990 = vld [vmem:[%s8 + $0x18] sm:$0xff]
    %v1991 = vld [vmem:[%s8 + $0x20] sm:$0xff]
    %v1992 = vld [vmem:[%s8 + $0x28] sm:$0xff]
    %v1993 = vld [vmem:[%s8 + $0x30] sm:$0xff]
    %v1994 = vld [vmem:[%s8 + $0x38] sm:$0xff]
    %v1995 = vlaneseq
    %v1996 = vshrl.u32 %v1995, 7
    %v1997 = vsub.s32 3, %v1996
    %v1998 = vrot.slane %v129, %v1997
    %vm1999 = vcmask 523264
    %v2001 = vsel %vm1999, %v1985, 0
    %v2004 = vsel %vm1999, %v1986, 0
    %2006 = vmatprep.subr.mxu0 0.0
    %2007 = vmatpush1.msra.mxu0 0.0
    %2008 = vmatprep.subr.mxu0 0.0
    %2009 = vmatpush1.msra.mxu0 0.0
    %2010 = vmatprep.subr.mxu0 0.0
    %2011 = vmatpush1.msra.mxu0 0.0
    %2012 = vmatprep.subr.mxu0 0.0
    %2013 = vmatpush1.msra.mxu0 0.0
    %2014 = vmatprep.subr.mxu0 0.0
    %2015 = vmatpush1.msra.mxu0 0.0
    %2016 = vmatprep.subr.mxu0 0.0
    %2017 = vmatpush1.msra.mxu0 0.0
    %2018 = vmatprep.subr.mxu0 0.0
    %2019 = vmatpush1.msra.mxu0 0.0
    %2020 = vmatprep.subr.mxu0 0.0
    %2021 = vmatpush1.msra.mxu0 0.0
    %2022 = vmatprep.subr.mxu0 0.0
    %2023 = vmatpush1.msra.mxu0 %v1994
    %2024 = vmatprep.subr.mxu0 0.0
    %2025 = vmatpush1.msra.mxu0 %v1993
    %2026 = vmatprep.subr.mxu0 0.0
    %2027 = vmatpush1.msra.mxu0 %v1992
    %2028 = vmatprep.subr.mxu0 0.0
    %2029 = vmatpush1.msra.mxu0 %v1991
    %2030 = vmatprep.subr.mxu0 0.0
    %2031 = vmatpush1.msra.mxu0 %v1990
    %2032 = vmatprep.subr.mxu0 0.0
    %2033 = vmatpush1.msra.mxu0 %v1989
    %2034 = vmatprep.subr.mxu0 0.0
    %2035 = vmatpush1.msra.mxu0 %v1988
    %2036 = vmatprep.subr.mxu0 0.0
    %2037 = vmatpush1.msra.mxu0 %v1987
    %2038 = vmatprep.subr.mxu0 0.0
    %2039 = vmatpush2.msra.mxu0 0.0
    %2040 = vmatprep.subr.mxu0 0.0
    %2041 = vmatpush2.msra.mxu0 0.0
    %2042 = vmatprep.subr.mxu0 0.0
    %2043 = vmatpush2.msra.mxu0 0.0
    %2044 = vmatprep.subr.mxu0 0.0
    %2045 = vmatpush2.msra.mxu0 0.0
    %2046 = vmatprep.subr.mxu0 0.0
    %2047 = vmatpush2.msra.mxu0 0.0
    %2048 = vmatprep.subr.mxu0 0.0
    %2049 = vmatpush2.msra.mxu0 0.0
    %2050 = vmatprep.subr.mxu0 0.0
    %2051 = vmatpush2.msra.mxu0 0.0
    %2052 = vmatprep.subr.mxu0 0.0
    %2053 = vmatpush2.msra.mxu0 0.0
    %2054 = vmatprep.subr.mxu0 0.0
    %2055 = vmatpush2.msra.mxu0 0.0
    %2056 = vmatprep.subr.mxu0 0.0
    %2057 = vmatpush2.msra.mxu0 0.0
    %2058 = vmatprep.subr.mxu0 0.0
    %2059 = vmatpush2.msra.mxu0 0.0
    %2060 = vmatprep.subr.mxu0 0.0
    %2061 = vmatpush2.msra.mxu0 0.0
    %2062 = vmatprep.subr.mxu0 0.0
    %2063 = vmatpush2.msra.mxu0 0.0
    %2064 = vmatprep.subr.mxu0 0.0
    %2065 = vmatpush2.msra.mxu0 0.0
    %2066 = vmatprep.subr.mxu0 0.0
    %2067 = vmatpush2.msra.mxu0 0.0
    %2068 = vmatprep.subr.mxu0 0.0
    %2069 = vmatpush2.msra.mxu0 0.0
    %2070 = vmatprep.mubr.f32.mxu0 0.0
    %2071 = vmatmul.mubr.f32.gmra.mxu0 %v2001
    %v2072 = vpop.f32.mrf.mxu0
    %v2073 = vadd.f32 %v1998, %v2072
    %v2074 = vpop.f32.mrf.mxu0
    %2075 = vmatprep.mubr.f32.mxu0 0.0
    %2076 = vmatmul.mubr.f32.gmra.mxu0 %v2004
    %v2077 = vpop.f32.mrf.mxu0
    %v2078 = vadd.f32 %v1998, %v2077
    %v2079 = vpop.f32.mrf.mxu0
    %2080 = vdwg.mxu0
    %v2081 = vadd.f32 %v1875, %v2073
    %v2082 = vadd.f32 %v1876, %v2078
    %v2083 = vsel %vm47, %v2081, 0.0
    %2084 = vadd.xlane.f32.xlu0 %v2083
    %v2085 = vpop.xlane.xlu0 %2084
    %v2086 = vsel %vm47, %v2082, 0.0
    %2087 = vadd.xlane.f32.xlu0 %v2086
    %v2088 = vpop.xlane.xlu0 %2087
    %v2089 = vmul.f32 %v2085, %v1844
    %v2090 = vmul.f32 %v2088, %v1844
    %v2091 = vsub.f32 %v2081, %v2089
    %v2092 = vsub.f32 %v2082, %v2090
    %v2093 = vmul.f32 %v2091, %v2091
    %v2094 = vmul.f32 %v2092, %v2092
    %v2095 = vsel %vm47, %v2093, 0.0
    %2096 = vadd.xlane.f32.xlu0 %v2095
    %v2097 = vpop.xlane.xlu0 %2096
    %v2098 = vsel %vm47, %v2094, 0.0
    %2099 = vadd.xlane.f32.xlu0 %v2098
    %v2100 = vpop.xlane.xlu0 %2099
    %v2101 = vmul.f32 %v2097, %v1844
    %v2102 = vmul.f32 %v2100, %v1844
    %v2103 = vadd.f32 %v2101, 1e-12
    %v2104 = vadd.f32 %v2102, 1e-12
    %v2105 = vrsqrt.pop %v2103
    %v2106 = vrsqrt.pop %v2104
    %v2107 = vmul.f32 %v2091, %v2105
    %v2108 = vmul.f32 %v2092, %v2106
    %v2109 = vlaneseq
    %v2110 = vshrl.u32 %v2109, 7
    %v2111 = vsub.s32 4, %v2110
    %v2112 = vrot.slane %v129, %v2111
    %v2113 = vmul.f32 %v2107, %v2112
    %v2114 = vmul.f32 %v2108, %v2112
    %v2115 = vlaneseq
    %v2116 = vshrl.u32 %v2115, 7
    %v2117 = vsub.s32 5, %v2116
    %v2118 = vrot.slane %v129, %v2117
    %v2119 = vadd.f32 %v2113, %v2118
    %v2120 = vadd.f32 %v2114, %v2118
    %s2121 = scalar_lea.vmem %s2, 32
    %v2122 = vld [vmem:[%s2121] sm:$0xff]
    %v2123 = vld [vmem:[%s2121 + $0x8] sm:$0xff]
    %v2124 = vld [vmem:[%s2121 + $0x10] sm:$0xff]
    %v2125 = vld [vmem:[%s2121 + $0x18] sm:$0xff]
    %s2126 = scalar_lea.vmem %s3, 1
    %v2127 = vld [vmem:[%s2126] sm:$0x1]
    %v2129 = vlaneseq
    %v2130 = vshrl.u32 %v2129, 7
    %v2131 = vsub.s32 0, %v2130
    %v2132 = vrot.slane %v2127, %v2131
    %v2135 = vsel %vm47, %v2119, 0
    %v2138 = vsel %vm47, %v2120, 0
    %2140 = vmatprep.subr.mxu0 0.0
    %2141 = vmatpush1.msra.mxu0 0.0
    %2142 = vmatprep.subr.mxu0 0.0
    %2143 = vmatpush1.msra.mxu0 0.0
    %2144 = vmatprep.subr.mxu0 0.0
    %2145 = vmatpush1.msra.mxu0 0.0
    %2146 = vmatprep.subr.mxu0 0.0
    %2147 = vmatpush1.msra.mxu0 0.0
    %2148 = vmatprep.subr.mxu0 0.0
    %2149 = vmatpush1.msra.mxu0 0.0
    %2150 = vmatprep.subr.mxu0 0.0
    %2151 = vmatpush1.msra.mxu0 0.0
    %2152 = vmatprep.subr.mxu0 0.0
    %2153 = vmatpush1.msra.mxu0 0.0
    %2154 = vmatprep.subr.mxu0 0.0
    %2155 = vmatpush1.msra.mxu0 0.0
    %2156 = vmatprep.subr.mxu0 0.0
    %2157 = vmatpush1.msra.mxu0 0.0
    %2158 = vmatprep.subr.mxu0 0.0
    %2159 = vmatpush1.msra.mxu0 0.0
    %2160 = vmatprep.subr.mxu0 0.0
    %2161 = vmatpush1.msra.mxu0 0.0
    %2162 = vmatprep.subr.mxu0 0.0
    %2163 = vmatpush1.msra.mxu0 0.0
    %2164 = vmatprep.subr.mxu0 0.0
    %2165 = vmatpush1.msra.mxu0 %v2125
    %2166 = vmatprep.subr.mxu0 0.0
    %2167 = vmatpush1.msra.mxu0 %v2124
    %2168 = vmatprep.subr.mxu0 0.0
    %2169 = vmatpush1.msra.mxu0 %v2123
    %2170 = vmatprep.subr.mxu0 0.0
    %2171 = vmatpush1.msra.mxu0 %v2122
    %2172 = vmatprep.subr.mxu0 0.0
    %2173 = vmatpush2.msra.mxu0 0.0
    %2174 = vmatprep.subr.mxu0 0.0
    %2175 = vmatpush2.msra.mxu0 0.0
    %2176 = vmatprep.subr.mxu0 0.0
    %2177 = vmatpush2.msra.mxu0 0.0
    %2178 = vmatprep.subr.mxu0 0.0
    %2179 = vmatpush2.msra.mxu0 0.0
    %2180 = vmatprep.subr.mxu0 0.0
    %2181 = vmatpush2.msra.mxu0 0.0
    %2182 = vmatprep.subr.mxu0 0.0
    %2183 = vmatpush2.msra.mxu0 0.0
    %2184 = vmatprep.subr.mxu0 0.0
    %2185 = vmatpush2.msra.mxu0 0.0
    %2186 = vmatprep.subr.mxu0 0.0
    %2187 = vmatpush2.msra.mxu0 0.0
    %2188 = vmatprep.subr.mxu0 0.0
    %2189 = vmatpush2.msra.mxu0 0.0
    %2190 = vmatprep.subr.mxu0 0.0
    %2191 = vmatpush2.msra.mxu0 0.0
    %2192 = vmatprep.subr.mxu0 0.0
    %2193 = vmatpush2.msra.mxu0 0.0
    %2194 = vmatprep.subr.mxu0 0.0
    %2195 = vmatpush2.msra.mxu0 0.0
    %2196 = vmatprep.subr.mxu0 0.0
    %2197 = vmatpush2.msra.mxu0 0.0
    %2198 = vmatprep.subr.mxu0 0.0
    %2199 = vmatpush2.msra.mxu0 0.0
    %2200 = vmatprep.subr.mxu0 0.0
    %2201 = vmatpush2.msra.mxu0 0.0
    %2202 = vmatprep.subr.mxu0 0.0
    %2203 = vmatpush2.msra.mxu0 0.0
    %2204 = vmatprep.mubr.f32.mxu0 0.0
    %2205 = vmatmul.mubr.f32.gmra.mxu0 %v2135
    %v2206 = vpop.f32.mrf.mxu0
    %v2207 = vadd.f32 %v2132, %v2206
    %v2208 = vpop.f32.mrf.mxu0
    %2209 = vmatprep.mubr.f32.mxu0 0.0
    %2210 = vmatmul.mubr.f32.gmra.mxu0 %v2138
    %v2211 = vpop.f32.mrf.mxu0
    %v2212 = vadd.f32 %v2132, %v2211
    %v2213 = vpop.f32.mrf.mxu0
    %2214 = vdwg.mxu0
    %s2215 = scalar_lea.vmem %s5, 8
    %v2216 = vld [vmem:[%s2215] sm:$0x3f]
    %s2217 = scalar_lea.vmem %s4, 32
    %v2218 = vld [vmem:[%s2217] sm:$0xff]
    %v2219 = vld [vmem:[%s2217 + $0x8] sm:$0xff]
    %v2220 = vld [vmem:[%s2217 + $0x10] sm:$0xff]
    %v2221 = vld [vmem:[%s2217 + $0x18] sm:$0xff]
    %2223 = vrot.lane.b32.xlu0 %v2207, 96
    %v2224 = vpop.permute.xlu0 %2223
    %v2225 = vsel %vm137, %v2207, 0
    %v2227 = vsel %vm137, %v2224, 0
    %2229 = vmatprep.subr.mxu0 0.0
    %2230 = vmatpush1.xpose.msra.mxu0 0.0
    %2231 = vmatprep.subr.mxu0 0.0
    %2232 = vmatpush1.xpose.msra.mxu0 0.0
    %2233 = vmatprep.subr.mxu0 0.0
    %2234 = vmatpush1.xpose.msra.mxu0 0.0
    %2235 = vmatprep.subr.mxu0 0.0
    %2236 = vmatpush1.xpose.msra.mxu0 0.0
    %2237 = vmatprep.subr.mxu0 0.0
    %2238 = vmatpush1.xpose.msra.mxu0 0.0
    %2239 = vmatprep.subr.mxu0 0.0
    %2240 = vmatpush1.xpose.msra.mxu0 0.0
    %2241 = vmatprep.subr.mxu0 0.0
    %2242 = vmatpush1.xpose.msra.mxu0 0.0
    %2243 = vmatprep.subr.mxu0 0.0
    %2244 = vmatpush1.xpose.msra.mxu0 0.0
    %2245 = vmatprep.subr.mxu0 0.0
    %2246 = vmatpush1.xpose.msra.mxu0 0.0
    %2247 = vmatprep.subr.mxu0 0.0
    %2248 = vmatpush1.xpose.msra.mxu0 0.0
    %2249 = vmatprep.subr.mxu0 0.0
    %2250 = vmatpush1.xpose.msra.mxu0 0.0
    %2251 = vmatprep.subr.mxu0 0.0
    %2252 = vmatpush1.xpose.msra.mxu0 0.0
    %2253 = vmatprep.subr.mxu0 0.0
    %2254 = vmatpush1.xpose.msra.mxu0 0.0
    %2255 = vmatprep.subr.mxu0 0.0
    %2256 = vmatpush1.xpose.msra.mxu0 0.0
    %2257 = vmatprep.subr.mxu0 0.0
    %2258 = vmatpush1.xpose.msra.mxu0 0.0
    %2259 = vmatprep.subr.mxu0 0.0
    %2260 = vmatpush1.xpose.msra.mxu0 %v2227
    %2261 = vmatprep.subr.mxu0 0.0
    %2262 = vmatpush2.xpose.msra.mxu0 0.0
    %2263 = vmatprep.subr.mxu0 0.0
    %2264 = vmatpush2.xpose.msra.mxu0 0.0
    %2265 = vmatprep.subr.mxu0 0.0
    %2266 = vmatpush2.xpose.msra.mxu0 0.0
    %2267 = vmatprep.subr.mxu0 0.0
    %2268 = vmatpush2.xpose.msra.mxu0 0.0
    %2269 = vmatprep.subr.mxu0 0.0
    %2270 = vmatpush2.xpose.msra.mxu0 0.0
    %2271 = vmatprep.subr.mxu0 0.0
    %2272 = vmatpush2.xpose.msra.mxu0 0.0
    %2273 = vmatprep.subr.mxu0 0.0
    %2274 = vmatpush2.xpose.msra.mxu0 0.0
    %2275 = vmatprep.subr.mxu0 0.0
    %2276 = vmatpush2.xpose.msra.mxu0 0.0
    %2277 = vmatprep.subr.mxu0 0.0
    %2278 = vmatpush2.xpose.msra.mxu0 0.0
    %2279 = vmatprep.subr.mxu0 0.0
    %2280 = vmatpush2.xpose.msra.mxu0 0.0
    %2281 = vmatprep.subr.mxu0 0.0
    %2282 = vmatpush2.xpose.msra.mxu0 0.0
    %2283 = vmatprep.subr.mxu0 0.0
    %2284 = vmatpush2.xpose.msra.mxu0 0.0
    %2285 = vmatprep.subr.mxu0 0.0
    %2286 = vmatpush2.xpose.msra.mxu0 0.0
    %2287 = vmatprep.subr.mxu0 0.0
    %2288 = vmatpush2.xpose.msra.mxu0 0.0
    %2289 = vmatprep.subr.mxu0 0.0
    %2290 = vmatpush2.xpose.msra.mxu0 0.0
    %2291 = vmatprep.subr.mxu0 0.0
    %2292 = vmatpush2.xpose.msra.mxu0 0.0
    %2293 = vmatprep.mubr.f32.mxu0 0.0
    %2294 = vmatmul.mubr.f32.gmra.mxu0 %v2225
    %v2295 = vpop.f32.mrf.mxu0
    %v2296 = vadd.f32 0.0, %v2295
    %v2297 = vpop.f32.mrf.mxu0
    %2298 = vdwg.mxu0
    %2300 = vrot.lane.b32.xlu0 %v2212, 96
    %v2301 = vpop.permute.xlu0 %2300
    %v2302 = vsel %vm137, %v2212, 0
    %v2304 = vsel %vm137, %v2301, 0
    %2306 = vmatprep.subr.mxu0 0.0
    %2307 = vmatpush1.xpose.msra.mxu0 0.0
    %2308 = vmatprep.subr.mxu0 0.0
    %2309 = vmatpush1.xpose.msra.mxu0 0.0
    %2310 = vmatprep.subr.mxu0 0.0
    %2311 = vmatpush1.xpose.msra.mxu0 0.0
    %2312 = vmatprep.subr.mxu0 0.0
    %2313 = vmatpush1.xpose.msra.mxu0 0.0
    %2314 = vmatprep.subr.mxu0 0.0
    %2315 = vmatpush1.xpose.msra.mxu0 0.0
    %2316 = vmatprep.subr.mxu0 0.0
    %2317 = vmatpush1.xpose.msra.mxu0 0.0
    %2318 = vmatprep.subr.mxu0 0.0
    %2319 = vmatpush1.xpose.msra.mxu0 0.0
    %2320 = vmatprep.subr.mxu0 0.0
    %2321 = vmatpush1.xpose.msra.mxu0 0.0
    %2322 = vmatprep.subr.mxu0 0.0
    %2323 = vmatpush1.xpose.msra.mxu0 0.0
    %2324 = vmatprep.subr.mxu0 0.0
    %2325 = vmatpush1.xpose.msra.mxu0 0.0
    %2326 = vmatprep.subr.mxu0 0.0
    %2327 = vmatpush1.xpose.msra.mxu0 0.0
    %2328 = vmatprep.subr.mxu0 0.0
    %2329 = vmatpush1.xpose.msra.mxu0 0.0
    %2330 = vmatprep.subr.mxu0 0.0
    %2331 = vmatpush1.xpose.msra.mxu0 0.0
    %2332 = vmatprep.subr.mxu0 0.0
    %2333 = vmatpush1.xpose.msra.mxu0 0.0
    %2334 = vmatprep.subr.mxu0 0.0
    %2335 = vmatpush1.xpose.msra.mxu0 0.0
    %2336 = vmatprep.subr.mxu0 0.0
    %2337 = vmatpush1.xpose.msra.mxu0 %v2304
    %2338 = vmatprep.subr.mxu0 0.0
    %2339 = vmatpush2.xpose.msra.mxu0 0.0
    %2340 = vmatprep.subr.mxu0 0.0
    %2341 = vmatpush2.xpose.msra.mxu0 0.0
    %2342 = vmatprep.subr.mxu0 0.0
    %2343 = vmatpush2.xpose.msra.mxu0 0.0
    %2344 = vmatprep.subr.mxu0 0.0
    %2345 = vmatpush2.xpose.msra.mxu0 0.0
    %2346 = vmatprep.subr.mxu0 0.0
    %2347 = vmatpush2.xpose.msra.mxu0 0.0
    %2348 = vmatprep.subr.mxu0 0.0
    %2349 = vmatpush2.xpose.msra.mxu0 0.0
    %2350 = vmatprep.subr.mxu0 0.0
    %2351 = vmatpush2.xpose.msra.mxu0 0.0
    %2352 = vmatprep.subr.mxu0 0.0
    %2353 = vmatpush2.xpose.msra.mxu0 0.0
    %2354 = vmatprep.subr.mxu0 0.0
    %2355 = vmatpush2.xpose.msra.mxu0 0.0
    %2356 = vmatprep.subr.mxu0 0.0
    %2357 = vmatpush2.xpose.msra.mxu0 0.0
    %2358 = vmatprep.subr.mxu0 0.0
    %2359 = vmatpush2.xpose.msra.mxu0 0.0
    %2360 = vmatprep.subr.mxu0 0.0
    %2361 = vmatpush2.xpose.msra.mxu0 0.0
    %2362 = vmatprep.subr.mxu0 0.0
    %2363 = vmatpush2.xpose.msra.mxu0 0.0
    %2364 = vmatprep.subr.mxu0 0.0
    %2365 = vmatpush2.xpose.msra.mxu0 0.0
    %2366 = vmatprep.subr.mxu0 0.0
    %2367 = vmatpush2.xpose.msra.mxu0 0.0
    %2368 = vmatprep.subr.mxu0 0.0
    %2369 = vmatpush2.xpose.msra.mxu0 0.0
    %2370 = vmatprep.mubr.f32.mxu0 0.0
    %2371 = vmatmul.mubr.f32.gmra.mxu0 %v2302
    %v2372 = vpop.f32.mrf.mxu0
    %v2373 = vadd.f32 0.0, %v2372
    %v2374 = vpop.f32.mrf.mxu0
    %2375 = vdwg.mxu0
    %v2376 = vmul.f32 %v2296, 0.35355338
    %v2377 = vmul.f32 %v2373, 0.35355338
    %v2378 = vadd.f32 %v2376, %v317
    %v2379 = vadd.f32 %v2377, %v321
    %v2380 = vsel %vm137, %v2378, -inf
    %2381 = vmax.xlane.f32.xlu0 %v2380
    %v2382 = vpop.xlane.xlu0 %2381
    %v2383 = vsel %vm137, %v2379, -inf
    %2384 = vmax.xlane.f32.xlu0 %v2383
    %v2385 = vpop.xlane.xlu0 %2384
    %v2386 = vsub.f32 %v2378, %v2382
    %v2387 = vsub.f32 %v2379, %v2385
    %v2388 = vmul.f32 %v2386, 1.442695
    %v2389 = vpow.pop %v2388
    %v2390 = vmul.f32 %v2387, 1.442695
    %v2391 = vpow.pop %v2390
    %v2392 = vsel %vm137, %v2389, 0.0
    %2393 = vadd.xlane.f32.xlu0 %v2392
    %v2394 = vpop.xlane.xlu0 %2393
    %v2395 = vsel %vm137, %v2391, 0.0
    %2396 = vadd.xlane.f32.xlu0 %v2395
    %v2397 = vpop.xlane.xlu0 %2396
    %v2398 = vrcp.pop %v2394
    %v2399 = vrcp.pop %v2397
    %v2400 = vmul.f32 %v2389, %v2398
    %v2401 = vmul.f32 %v2391, %v2399
    %2402 = vrot.lane.b32.xlu0 %v2207, 64
    %v2403 = vpop.permute.xlu0 %2402
    %v2406 = vsel %vm137, %v2400, 0
    %2408 = vmatprep.subr.mxu0 0.0
    %2409 = vmatpush1.msra.mxu0 0.0
    %2410 = vmatprep.subr.mxu0 0.0
    %2411 = vmatpush1.msra.mxu0 0.0
    %2412 = vmatprep.subr.mxu0 0.0
    %2413 = vmatpush1.msra.mxu0 0.0
    %2414 = vmatprep.subr.mxu0 0.0
    %2415 = vmatpush1.msra.mxu0 0.0
    %2416 = vmatprep.subr.mxu0 0.0
    %2417 = vmatpush1.msra.mxu0 0.0
    %2418 = vmatprep.subr.mxu0 0.0
    %2419 = vmatpush1.msra.mxu0 0.0
    %2420 = vmatprep.subr.mxu0 0.0
    %2421 = vmatpush1.msra.mxu0 0.0
    %2422 = vmatprep.subr.mxu0 0.0
    %2423 = vmatpush1.msra.mxu0 0.0
    %2424 = vmatprep.subr.mxu0 0.0
    %2425 = vmatpush1.msra.mxu0 0.0
    %2426 = vmatprep.subr.mxu0 0.0
    %2427 = vmatpush1.msra.mxu0 0.0
    %2428 = vmatprep.subr.mxu0 0.0
    %2429 = vmatpush1.msra.mxu0 0.0
    %2430 = vmatprep.subr.mxu0 0.0
    %2431 = vmatpush1.msra.mxu0 0.0
    %2432 = vmatprep.subr.mxu0 0.0
    %2433 = vmatpush1.msra.mxu0 0.0
    %2434 = vmatprep.subr.mxu0 0.0
    %2435 = vmatpush1.msra.mxu0 0.0
    %2436 = vmatprep.subr.mxu0 0.0
    %2437 = vmatpush1.msra.mxu0 0.0
    %2438 = vmatprep.subr.mxu0 0.0
    %2439 = vmatpush1.msra.mxu0 %v2403
    %2440 = vmatprep.subr.mxu0 0.0
    %2441 = vmatpush2.msra.mxu0 0.0
    %2442 = vmatprep.subr.mxu0 0.0
    %2443 = vmatpush2.msra.mxu0 0.0
    %2444 = vmatprep.subr.mxu0 0.0
    %2445 = vmatpush2.msra.mxu0 0.0
    %2446 = vmatprep.subr.mxu0 0.0
    %2447 = vmatpush2.msra.mxu0 0.0
    %2448 = vmatprep.subr.mxu0 0.0
    %2449 = vmatpush2.msra.mxu0 0.0
    %2450 = vmatprep.subr.mxu0 0.0
    %2451 = vmatpush2.msra.mxu0 0.0
    %2452 = vmatprep.subr.mxu0 0.0
    %2453 = vmatpush2.msra.mxu0 0.0
    %2454 = vmatprep.subr.mxu0 0.0
    %2455 = vmatpush2.msra.mxu0 0.0
    %2456 = vmatprep.subr.mxu0 0.0
    %2457 = vmatpush2.msra.mxu0 0.0
    %2458 = vmatprep.subr.mxu0 0.0
    %2459 = vmatpush2.msra.mxu0 0.0
    %2460 = vmatprep.subr.mxu0 0.0
    %2461 = vmatpush2.msra.mxu0 0.0
    %2462 = vmatprep.subr.mxu0 0.0
    %2463 = vmatpush2.msra.mxu0 0.0
    %2464 = vmatprep.subr.mxu0 0.0
    %2465 = vmatpush2.msra.mxu0 0.0
    %2466 = vmatprep.subr.mxu0 0.0
    %2467 = vmatpush2.msra.mxu0 0.0
    %2468 = vmatprep.subr.mxu0 0.0
    %2469 = vmatpush2.msra.mxu0 0.0
    %2470 = vmatprep.subr.mxu0 0.0
    %2471 = vmatpush2.msra.mxu0 0.0
    %2472 = vmatprep.mubr.f32.mxu0 0.0
    %2473 = vmatmul.mubr.f32.gmra.mxu0 %v2406
    %v2474 = vpop.f32.mrf.mxu0
    %v2475 = vadd.f32 0.0, %v2474
    %v2476 = vpop.f32.mrf.mxu0
    %2477 = vdwg.mxu0
    %2478 = vrot.lane.b32.xlu0 %v2212, 64
    %v2479 = vpop.permute.xlu0 %2478
    %v2482 = vsel %vm137, %v2401, 0
    %2484 = vmatprep.subr.mxu0 0.0
    %2485 = vmatpush1.msra.mxu0 0.0
    %2486 = vmatprep.subr.mxu0 0.0
    %2487 = vmatpush1.msra.mxu0 0.0
    %2488 = vmatprep.subr.mxu0 0.0
    %2489 = vmatpush1.msra.mxu0 0.0
    %2490 = vmatprep.subr.mxu0 0.0
    %2491 = vmatpush1.msra.mxu0 0.0
    %2492 = vmatprep.subr.mxu0 0.0
    %2493 = vmatpush1.msra.mxu0 0.0
    %2494 = vmatprep.subr.mxu0 0.0
    %2495 = vmatpush1.msra.mxu0 0.0
    %2496 = vmatprep.subr.mxu0 0.0
    %2497 = vmatpush1.msra.mxu0 0.0
    %2498 = vmatprep.subr.mxu0 0.0
    %2499 = vmatpush1.msra.mxu0 0.0
    %2500 = vmatprep.subr.mxu0 0.0
    %2501 = vmatpush1.msra.mxu0 0.0
    %2502 = vmatprep.subr.mxu0 0.0
    %2503 = vmatpush1.msra.mxu0 0.0
    %2504 = vmatprep.subr.mxu0 0.0
    %2505 = vmatpush1.msra.mxu0 0.0
    %2506 = vmatprep.subr.mxu0 0.0
    %2507 = vmatpush1.msra.mxu0 0.0
    %2508 = vmatprep.subr.mxu0 0.0
    %2509 = vmatpush1.msra.mxu0 0.0
    %2510 = vmatprep.subr.mxu0 0.0
    %2511 = vmatpush1.msra.mxu0 0.0
    %2512 = vmatprep.subr.mxu0 0.0
    %2513 = vmatpush1.msra.mxu0 0.0
    %2514 = vmatprep.subr.mxu0 0.0
    %2515 = vmatpush1.msra.mxu0 %v2479
    %2516 = vmatprep.subr.mxu0 0.0
    %2517 = vmatpush2.msra.mxu0 0.0
    %2518 = vmatprep.subr.mxu0 0.0
    %2519 = vmatpush2.msra.mxu0 0.0
    %2520 = vmatprep.subr.mxu0 0.0
    %2521 = vmatpush2.msra.mxu0 0.0
    %2522 = vmatprep.subr.mxu0 0.0
    %2523 = vmatpush2.msra.mxu0 0.0
    %2524 = vmatprep.subr.mxu0 0.0
    %2525 = vmatpush2.msra.mxu0 0.0
    %2526 = vmatprep.subr.mxu0 0.0
    %2527 = vmatpush2.msra.mxu0 0.0
    %2528 = vmatprep.subr.mxu0 0.0
    %2529 = vmatpush2.msra.mxu0 0.0
    %2530 = vmatprep.subr.mxu0 0.0
    %2531 = vmatpush2.msra.mxu0 0.0
    %2532 = vmatprep.subr.mxu0 0.0
    %2533 = vmatpush2.msra.mxu0 0.0
    %2534 = vmatprep.subr.mxu0 0.0
    %2535 = vmatpush2.msra.mxu0 0.0
    %2536 = vmatprep.subr.mxu0 0.0
    %2537 = vmatpush2.msra.mxu0 0.0
    %2538 = vmatprep.subr.mxu0 0.0
    %2539 = vmatpush2.msra.mxu0 0.0
    %2540 = vmatprep.subr.mxu0 0.0
    %2541 = vmatpush2.msra.mxu0 0.0
    %2542 = vmatprep.subr.mxu0 0.0
    %2543 = vmatpush2.msra.mxu0 0.0
    %2544 = vmatprep.subr.mxu0 0.0
    %2545 = vmatpush2.msra.mxu0 0.0
    %2546 = vmatprep.subr.mxu0 0.0
    %2547 = vmatpush2.msra.mxu0 0.0
    %2548 = vmatprep.mubr.f32.mxu0 0.0
    %2549 = vmatmul.mubr.f32.gmra.mxu0 %v2482
    %v2550 = vpop.f32.mrf.mxu0
    %v2551 = vadd.f32 0.0, %v2550
    %v2552 = vpop.f32.mrf.mxu0
    %2553 = vdwg.mxu0
    %2554 = vrot.lane.b32.xlu0 %v2207, 120
    %v2555 = vpop.permute.xlu0 %2554
    %2556 = vrot.lane.b32.xlu0 %v2207, 88
    %v2557 = vpop.permute.xlu0 %2556
    %v2558 = vsel %vm137, %v2555, 0
    %v2560 = vsel %vm137, %v2557, 0
    %2562 = vmatprep.subr.mxu0 0.0
    %2563 = vmatpush1.xpose.msra.mxu0 0.0
    %2564 = vmatprep.subr.mxu0 0.0
    %2565 = vmatpush1.xpose.msra.mxu0 0.0
    %2566 = vmatprep.subr.mxu0 0.0
    %2567 = vmatpush1.xpose.msra.mxu0 0.0
    %2568 = vmatprep.subr.mxu0 0.0
    %2569 = vmatpush1.xpose.msra.mxu0 0.0
    %2570 = vmatprep.subr.mxu0 0.0
    %2571 = vmatpush1.xpose.msra.mxu0 0.0
    %2572 = vmatprep.subr.mxu0 0.0
    %2573 = vmatpush1.xpose.msra.mxu0 0.0
    %2574 = vmatprep.subr.mxu0 0.0
    %2575 = vmatpush1.xpose.msra.mxu0 0.0
    %2576 = vmatprep.subr.mxu0 0.0
    %2577 = vmatpush1.xpose.msra.mxu0 0.0
    %2578 = vmatprep.subr.mxu0 0.0
    %2579 = vmatpush1.xpose.msra.mxu0 0.0
    %2580 = vmatprep.subr.mxu0 0.0
    %2581 = vmatpush1.xpose.msra.mxu0 0.0
    %2582 = vmatprep.subr.mxu0 0.0
    %2583 = vmatpush1.xpose.msra.mxu0 0.0
    %2584 = vmatprep.subr.mxu0 0.0
    %2585 = vmatpush1.xpose.msra.mxu0 0.0
    %2586 = vmatprep.subr.mxu0 0.0
    %2587 = vmatpush1.xpose.msra.mxu0 0.0
    %2588 = vmatprep.subr.mxu0 0.0
    %2589 = vmatpush1.xpose.msra.mxu0 0.0
    %2590 = vmatprep.subr.mxu0 0.0
    %2591 = vmatpush1.xpose.msra.mxu0 0.0
    %2592 = vmatprep.subr.mxu0 0.0
    %2593 = vmatpush1.xpose.msra.mxu0 %v2560
    %2594 = vmatprep.subr.mxu0 0.0
    %2595 = vmatpush2.xpose.msra.mxu0 0.0
    %2596 = vmatprep.subr.mxu0 0.0
    %2597 = vmatpush2.xpose.msra.mxu0 0.0
    %2598 = vmatprep.subr.mxu0 0.0
    %2599 = vmatpush2.xpose.msra.mxu0 0.0
    %2600 = vmatprep.subr.mxu0 0.0
    %2601 = vmatpush2.xpose.msra.mxu0 0.0
    %2602 = vmatprep.subr.mxu0 0.0
    %2603 = vmatpush2.xpose.msra.mxu0 0.0
    %2604 = vmatprep.subr.mxu0 0.0
    %2605 = vmatpush2.xpose.msra.mxu0 0.0
    %2606 = vmatprep.subr.mxu0 0.0
    %2607 = vmatpush2.xpose.msra.mxu0 0.0
    %2608 = vmatprep.subr.mxu0 0.0
    %2609 = vmatpush2.xpose.msra.mxu0 0.0
    %2610 = vmatprep.subr.mxu0 0.0
    %2611 = vmatpush2.xpose.msra.mxu0 0.0
    %2612 = vmatprep.subr.mxu0 0.0
    %2613 = vmatpush2.xpose.msra.mxu0 0.0
    %2614 = vmatprep.subr.mxu0 0.0
    %2615 = vmatpush2.xpose.msra.mxu0 0.0
    %2616 = vmatprep.subr.mxu0 0.0
    %2617 = vmatpush2.xpose.msra.mxu0 0.0
    %2618 = vmatprep.subr.mxu0 0.0
    %2619 = vmatpush2.xpose.msra.mxu0 0.0
    %2620 = vmatprep.subr.mxu0 0.0
    %2621 = vmatpush2.xpose.msra.mxu0 0.0
    %2622 = vmatprep.subr.mxu0 0.0
    %2623 = vmatpush2.xpose.msra.mxu0 0.0
    %2624 = vmatprep.subr.mxu0 0.0
    %2625 = vmatpush2.xpose.msra.mxu0 0.0
    %2626 = vmatprep.mubr.f32.mxu0 0.0
    %2627 = vmatmul.mubr.f32.gmra.mxu0 %v2558
    %v2628 = vpop.f32.mrf.mxu0
    %v2629 = vadd.f32 0.0, %v2628
    %v2630 = vpop.f32.mrf.mxu0
    %2631 = vdwg.mxu0
    %2632 = vrot.lane.b32.xlu0 %v2212, 120
    %v2633 = vpop.permute.xlu0 %2632
    %2634 = vrot.lane.b32.xlu0 %v2212, 88
    %v2635 = vpop.permute.xlu0 %2634
    %v2636 = vsel %vm137, %v2633, 0
    %v2638 = vsel %vm137, %v2635, 0
    %2640 = vmatprep.subr.mxu0 0.0
    %2641 = vmatpush1.xpose.msra.mxu0 0.0
    %2642 = vmatprep.subr.mxu0 0.0
    %2643 = vmatpush1.xpose.msra.mxu0 0.0
    %2644 = vmatprep.subr.mxu0 0.0
    %2645 = vmatpush1.xpose.msra.mxu0 0.0
    %2646 = vmatprep.subr.mxu0 0.0
    %2647 = vmatpush1.xpose.msra.mxu0 0.0
    %2648 = vmatprep.subr.mxu0 0.0
    %2649 = vmatpush1.xpose.msra.mxu0 0.0
    %2650 = vmatprep.subr.mxu0 0.0
    %2651 = vmatpush1.xpose.msra.mxu0 0.0
    %2652 = vmatprep.subr.mxu0 0.0
    %2653 = vmatpush1.xpose.msra.mxu0 0.0
    %2654 = vmatprep.subr.mxu0 0.0
    %2655 = vmatpush1.xpose.msra.mxu0 0.0
    %2656 = vmatprep.subr.mxu0 0.0
    %2657 = vmatpush1.xpose.msra.mxu0 0.0
    %2658 = vmatprep.subr.mxu0 0.0
    %2659 = vmatpush1.xpose.msra.mxu0 0.0
    %2660 = vmatprep.subr.mxu0 0.0
    %2661 = vmatpush1.xpose.msra.mxu0 0.0
    %2662 = vmatprep.subr.mxu0 0.0
    %2663 = vmatpush1.xpose.msra.mxu0 0.0
    %2664 = vmatprep.subr.mxu0 0.0
    %2665 = vmatpush1.xpose.msra.mxu0 0.0
    %2666 = vmatprep.subr.mxu0 0.0
    %2667 = vmatpush1.xpose.msra.mxu0 0.0
    %2668 = vmatprep.subr.mxu0 0.0
    %2669 = vmatpush1.xpose.msra.mxu0 0.0
    %2670 = vmatprep.subr.mxu0 0.0
    %2671 = vmatpush1.xpose.msra.mxu0 %v2638
    %2672 = vmatprep.subr.mxu0 0.0
    %2673 = vmatpush2.xpose.msra.mxu0 0.0
    %2674 = vmatprep.subr.mxu0 0.0
    %2675 = vmatpush2.xpose.msra.mxu0 0.0
    %2676 = vmatprep.subr.mxu0 0.0
    %2677 = vmatpush2.xpose.msra.mxu0 0.0
    %2678 = vmatprep.subr.mxu0 0.0
    %2679 = vmatpush2.xpose.msra.mxu0 0.0
    %2680 = vmatprep.subr.mxu0 0.0
    %2681 = vmatpush2.xpose.msra.mxu0 0.0
    %2682 = vmatprep.subr.mxu0 0.0
    %2683 = vmatpush2.xpose.msra.mxu0 0.0
    %2684 = vmatprep.subr.mxu0 0.0
    %2685 = vmatpush2.xpose.msra.mxu0 0.0
    %2686 = vmatprep.subr.mxu0 0.0
    %2687 = vmatpush2.xpose.msra.mxu0 0.0
    %2688 = vmatprep.subr.mxu0 0.0
    %2689 = vmatpush2.xpose.msra.mxu0 0.0
    %2690 = vmatprep.subr.mxu0 0.0
    %2691 = vmatpush2.xpose.msra.mxu0 0.0
    %2692 = vmatprep.subr.mxu0 0.0
    %2693 = vmatpush2.xpose.msra.mxu0 0.0
    %2694 = vmatprep.subr.mxu0 0.0
    %2695 = vmatpush2.xpose.msra.mxu0 0.0
    %2696 = vmatprep.subr.mxu0 0.0
    %2697 = vmatpush2.xpose.msra.mxu0 0.0
    %2698 = vmatprep.subr.mxu0 0.0
    %2699 = vmatpush2.xpose.msra.mxu0 0.0
    %2700 = vmatprep.subr.mxu0 0.0
    %2701 = vmatpush2.xpose.msra.mxu0 0.0
    %2702 = vmatprep.subr.mxu0 0.0
    %2703 = vmatpush2.xpose.msra.mxu0 0.0
    %2704 = vmatprep.mubr.f32.mxu0 0.0
    %2705 = vmatmul.mubr.f32.gmra.mxu0 %v2636
    %v2706 = vpop.f32.mrf.mxu0
    %v2707 = vadd.f32 0.0, %v2706
    %v2708 = vpop.f32.mrf.mxu0
    %2709 = vdwg.mxu0
    %v2710 = vmul.f32 %v2629, 0.35355338
    %v2711 = vmul.f32 %v2707, 0.35355338
    %v2712 = vadd.f32 %v2710, %v317
    %v2713 = vadd.f32 %v2711, %v321
    %v2714 = vsel %vm137, %v2712, -inf
    %2715 = vmax.xlane.f32.xlu0 %v2714
    %v2716 = vpop.xlane.xlu0 %2715
    %v2717 = vsel %vm137, %v2713, -inf
    %2718 = vmax.xlane.f32.xlu0 %v2717
    %v2719 = vpop.xlane.xlu0 %2718
    %v2720 = vsub.f32 %v2712, %v2716
    %v2721 = vsub.f32 %v2713, %v2719
    %v2722 = vmul.f32 %v2720, 1.442695
    %v2723 = vpow.pop %v2722
    %v2724 = vmul.f32 %v2721, 1.442695
    %v2725 = vpow.pop %v2724
    %v2726 = vsel %vm137, %v2723, 0.0
    %2727 = vadd.xlane.f32.xlu0 %v2726
    %v2728 = vpop.xlane.xlu0 %2727
    %v2729 = vsel %vm137, %v2725, 0.0
    %2730 = vadd.xlane.f32.xlu0 %v2729
    %v2731 = vpop.xlane.xlu0 %2730
    %v2732 = vrcp.pop %v2728
    %v2733 = vrcp.pop %v2731
    %v2734 = vmul.f32 %v2723, %v2732
    %v2735 = vmul.f32 %v2725, %v2733
    %2736 = vrot.lane.b32.xlu0 %v2207, 56
    %v2737 = vpop.permute.xlu0 %2736
    %v2740 = vsel %vm137, %v2734, 0
    %2742 = vmatprep.subr.mxu0 0.0
    %2743 = vmatpush1.msra.mxu0 0.0
    %2744 = vmatprep.subr.mxu0 0.0
    %2745 = vmatpush1.msra.mxu0 0.0
    %2746 = vmatprep.subr.mxu0 0.0
    %2747 = vmatpush1.msra.mxu0 0.0
    %2748 = vmatprep.subr.mxu0 0.0
    %2749 = vmatpush1.msra.mxu0 0.0
    %2750 = vmatprep.subr.mxu0 0.0
    %2751 = vmatpush1.msra.mxu0 0.0
    %2752 = vmatprep.subr.mxu0 0.0
    %2753 = vmatpush1.msra.mxu0 0.0
    %2754 = vmatprep.subr.mxu0 0.0
    %2755 = vmatpush1.msra.mxu0 0.0
    %2756 = vmatprep.subr.mxu0 0.0
    %2757 = vmatpush1.msra.mxu0 0.0
    %2758 = vmatprep.subr.mxu0 0.0
    %2759 = vmatpush1.msra.mxu0 0.0
    %2760 = vmatprep.subr.mxu0 0.0
    %2761 = vmatpush1.msra.mxu0 0.0
    %2762 = vmatprep.subr.mxu0 0.0
    %2763 = vmatpush1.msra.mxu0 0.0
    %2764 = vmatprep.subr.mxu0 0.0
    %2765 = vmatpush1.msra.mxu0 0.0
    %2766 = vmatprep.subr.mxu0 0.0
    %2767 = vmatpush1.msra.mxu0 0.0
    %2768 = vmatprep.subr.mxu0 0.0
    %2769 = vmatpush1.msra.mxu0 0.0
    %2770 = vmatprep.subr.mxu0 0.0
    %2771 = vmatpush1.msra.mxu0 0.0
    %2772 = vmatprep.subr.mxu0 0.0
    %2773 = vmatpush1.msra.mxu0 %v2737
    %2774 = vmatprep.subr.mxu0 0.0
    %2775 = vmatpush2.msra.mxu0 0.0
    %2776 = vmatprep.subr.mxu0 0.0
    %2777 = vmatpush2.msra.mxu0 0.0
    %2778 = vmatprep.subr.mxu0 0.0
    %2779 = vmatpush2.msra.mxu0 0.0
    %2780 = vmatprep.subr.mxu0 0.0
    %2781 = vmatpush2.msra.mxu0 0.0
    %2782 = vmatprep.subr.mxu0 0.0
    %2783 = vmatpush2.msra.mxu0 0.0
    %2784 = vmatprep.subr.mxu0 0.0
    %2785 = vmatpush2.msra.mxu0 0.0
    %2786 = vmatprep.subr.mxu0 0.0
    %2787 = vmatpush2.msra.mxu0 0.0
    %2788 = vmatprep.subr.mxu0 0.0
    %2789 = vmatpush2.msra.mxu0 0.0
    %2790 = vmatprep.subr.mxu0 0.0
    %2791 = vmatpush2.msra.mxu0 0.0
    %2792 = vmatprep.subr.mxu0 0.0
    %2793 = vmatpush2.msra.mxu0 0.0
    %2794 = vmatprep.subr.mxu0 0.0
    %2795 = vmatpush2.msra.mxu0 0.0
    %2796 = vmatprep.subr.mxu0 0.0
    %2797 = vmatpush2.msra.mxu0 0.0
    %2798 = vmatprep.subr.mxu0 0.0
    %2799 = vmatpush2.msra.mxu0 0.0
    %2800 = vmatprep.subr.mxu0 0.0
    %2801 = vmatpush2.msra.mxu0 0.0
    %2802 = vmatprep.subr.mxu0 0.0
    %2803 = vmatpush2.msra.mxu0 0.0
    %2804 = vmatprep.subr.mxu0 0.0
    %2805 = vmatpush2.msra.mxu0 0.0
    %2806 = vmatprep.mubr.f32.mxu0 0.0
    %2807 = vmatmul.mubr.f32.gmra.mxu0 %v2740
    %v2808 = vpop.f32.mrf.mxu0
    %v2809 = vadd.f32 0.0, %v2808
    %v2810 = vpop.f32.mrf.mxu0
    %2811 = vdwg.mxu0
    %2812 = vrot.lane.b32.xlu0 %v2212, 56
    %v2813 = vpop.permute.xlu0 %2812
    %v2816 = vsel %vm137, %v2735, 0
    %2818 = vmatprep.subr.mxu0 0.0
    %2819 = vmatpush1.msra.mxu0 0.0
    %2820 = vmatprep.subr.mxu0 0.0
    %2821 = vmatpush1.msra.mxu0 0.0
    %2822 = vmatprep.subr.mxu0 0.0
    %2823 = vmatpush1.msra.mxu0 0.0
    %2824 = vmatprep.subr.mxu0 0.0
    %2825 = vmatpush1.msra.mxu0 0.0
    %2826 = vmatprep.subr.mxu0 0.0
    %2827 = vmatpush1.msra.mxu0 0.0
    %2828 = vmatprep.subr.mxu0 0.0
    %2829 = vmatpush1.msra.mxu0 0.0
    %2830 = vmatprep.subr.mxu0 0.0
    %2831 = vmatpush1.msra.mxu0 0.0
    %2832 = vmatprep.subr.mxu0 0.0
    %2833 = vmatpush1.msra.mxu0 0.0
    %2834 = vmatprep.subr.mxu0 0.0
    %2835 = vmatpush1.msra.mxu0 0.0
    %2836 = vmatprep.subr.mxu0 0.0
    %2837 = vmatpush1.msra.mxu0 0.0
    %2838 = vmatprep.subr.mxu0 0.0
    %2839 = vmatpush1.msra.mxu0 0.0
    %2840 = vmatprep.subr.mxu0 0.0
    %2841 = vmatpush1.msra.mxu0 0.0
    %2842 = vmatprep.subr.mxu0 0.0
    %2843 = vmatpush1.msra.mxu0 0.0
    %2844 = vmatprep.subr.mxu0 0.0
    %2845 = vmatpush1.msra.mxu0 0.0
    %2846 = vmatprep.subr.mxu0 0.0
    %2847 = vmatpush1.msra.mxu0 0.0
    %2848 = vmatprep.subr.mxu0 0.0
    %2849 = vmatpush1.msra.mxu0 %v2813
    %2850 = vmatprep.subr.mxu0 0.0
    %2851 = vmatpush2.msra.mxu0 0.0
    %2852 = vmatprep.subr.mxu0 0.0
    %2853 = vmatpush2.msra.mxu0 0.0
    %2854 = vmatprep.subr.mxu0 0.0
    %2855 = vmatpush2.msra.mxu0 0.0
    %2856 = vmatprep.subr.mxu0 0.0
    %2857 = vmatpush2.msra.mxu0 0.0
    %2858 = vmatprep.subr.mxu0 0.0
    %2859 = vmatpush2.msra.mxu0 0.0
    %2860 = vmatprep.subr.mxu0 0.0
    %2861 = vmatpush2.msra.mxu0 0.0
    %2862 = vmatprep.subr.mxu0 0.0
    %2863 = vmatpush2.msra.mxu0 0.0
    %2864 = vmatprep.subr.mxu0 0.0
    %2865 = vmatpush2.msra.mxu0 0.0
    %2866 = vmatprep.subr.mxu0 0.0
    %2867 = vmatpush2.msra.mxu0 0.0
    %2868 = vmatprep.subr.mxu0 0.0
    %2869 = vmatpush2.msra.mxu0 0.0
    %2870 = vmatprep.subr.mxu0 0.0
    %2871 = vmatpush2.msra.mxu0 0.0
    %2872 = vmatprep.subr.mxu0 0.0
    %2873 = vmatpush2.msra.mxu0 0.0
    %2874 = vmatprep.subr.mxu0 0.0
    %2875 = vmatpush2.msra.mxu0 0.0
    %2876 = vmatprep.subr.mxu0 0.0
    %2877 = vmatpush2.msra.mxu0 0.0
    %2878 = vmatprep.subr.mxu0 0.0
    %2879 = vmatpush2.msra.mxu0 0.0
    %2880 = vmatprep.subr.mxu0 0.0
    %2881 = vmatpush2.msra.mxu0 0.0
    %2882 = vmatprep.mubr.f32.mxu0 0.0
    %2883 = vmatmul.mubr.f32.gmra.mxu0 %v2816
    %v2884 = vpop.f32.mrf.mxu0
    %v2885 = vadd.f32 0.0, %v2884
    %v2886 = vpop.f32.mrf.mxu0
    %2887 = vdwg.mxu0
    %v2889 = vsel %vm137, %v2809, 0
    %v2892 = vsel %vm137, %v2885, 0
    %2894 = vmatprep.subr.mxu0 0.0
    %2895 = vmatpush1.msra.mxu0 0.0
    %2896 = vmatprep.subr.mxu0 0.0
    %2897 = vmatpush1.msra.mxu0 0.0
    %2898 = vmatprep.subr.mxu0 0.0
    %2899 = vmatpush1.msra.mxu0 0.0
    %2900 = vmatprep.subr.mxu0 0.0
    %2901 = vmatpush1.msra.mxu0 0.0
    %2902 = vmatprep.subr.mxu0 0.0
    %2903 = vmatpush1.msra.mxu0 0.0
    %2904 = vmatprep.subr.mxu0 0.0
    %2905 = vmatpush1.msra.mxu0 0.0
    %2906 = vmatprep.subr.mxu0 0.0
    %2907 = vmatpush1.msra.mxu0 0.0
    %2908 = vmatprep.subr.mxu0 0.0
    %2909 = vmatpush1.msra.mxu0 0.0
    %2910 = vmatprep.subr.mxu0 0.0
    %2911 = vmatpush1.msra.mxu0 0.0
    %2912 = vmatprep.subr.mxu0 0.0
    %2913 = vmatpush1.msra.mxu0 0.0
    %2914 = vmatprep.subr.mxu0 0.0
    %2915 = vmatpush1.msra.mxu0 0.0
    %2916 = vmatprep.subr.mxu0 0.0
    %2917 = vmatpush1.msra.mxu0 0.0
    %2918 = vmatprep.subr.mxu0 0.0
    %2919 = vmatpush1.msra.mxu0 0.0
    %2920 = vmatprep.subr.mxu0 0.0
    %2921 = vmatpush1.msra.mxu0 0.0
    %2922 = vmatprep.subr.mxu0 0.0
    %2923 = vmatpush1.msra.mxu0 0.0
    %2924 = vmatprep.subr.mxu0 0.0
    %2925 = vmatpush1.msra.mxu0 %v2219
    %2926 = vmatprep.subr.mxu0 0.0
    %2927 = vmatpush2.msra.mxu0 0.0
    %2928 = vmatprep.subr.mxu0 0.0
    %2929 = vmatpush2.msra.mxu0 0.0
    %2930 = vmatprep.subr.mxu0 0.0
    %2931 = vmatpush2.msra.mxu0 0.0
    %2932 = vmatprep.subr.mxu0 0.0
    %2933 = vmatpush2.msra.mxu0 0.0
    %2934 = vmatprep.subr.mxu0 0.0
    %2935 = vmatpush2.msra.mxu0 0.0
    %2936 = vmatprep.subr.mxu0 0.0
    %2937 = vmatpush2.msra.mxu0 0.0
    %2938 = vmatprep.subr.mxu0 0.0
    %2939 = vmatpush2.msra.mxu0 0.0
    %2940 = vmatprep.subr.mxu0 0.0
    %2941 = vmatpush2.msra.mxu0 0.0
    %2942 = vmatprep.subr.mxu0 0.0
    %2943 = vmatpush2.msra.mxu0 0.0
    %2944 = vmatprep.subr.mxu0 0.0
    %2945 = vmatpush2.msra.mxu0 0.0
    %2946 = vmatprep.subr.mxu0 0.0
    %2947 = vmatpush2.msra.mxu0 0.0
    %2948 = vmatprep.subr.mxu0 0.0
    %2949 = vmatpush2.msra.mxu0 0.0
    %2950 = vmatprep.subr.mxu0 0.0
    %2951 = vmatpush2.msra.mxu0 0.0
    %2952 = vmatprep.subr.mxu0 0.0
    %2953 = vmatpush2.msra.mxu0 0.0
    %2954 = vmatprep.subr.mxu0 0.0
    %2955 = vmatpush2.msra.mxu0 0.0
    %2956 = vmatprep.subr.mxu0 0.0
    %2957 = vmatpush2.msra.mxu0 0.0
    %2958 = vmatprep.mubr.f32.mxu0 0.0
    %2959 = vmatmul.mubr.f32.gmra.mxu0 %v2889
    %v2960 = vpop.f32.mrf.mxu0
    %v2961 = vadd.f32 0.0, %v2960
    %v2962 = vpop.f32.mrf.mxu0
    %2963 = vmatprep.mubr.f32.mxu0 0.0
    %2964 = vmatmul.mubr.f32.gmra.mxu0 %v2892
    %v2965 = vpop.f32.mrf.mxu0
    %v2966 = vadd.f32 0.0, %v2965
    %v2967 = vpop.f32.mrf.mxu0
    %2968 = vdwg.mxu0
    %v2970 = vsel %vm137, %v2475, 0
    %v2973 = vsel %vm137, %v2551, 0
    %2975 = vmatprep.subr.mxu0 0.0
    %2976 = vmatpush1.msra.mxu0 0.0
    %2977 = vmatprep.subr.mxu0 0.0
    %2978 = vmatpush1.msra.mxu0 0.0
    %2979 = vmatprep.subr.mxu0 0.0
    %2980 = vmatpush1.msra.mxu0 0.0
    %2981 = vmatprep.subr.mxu0 0.0
    %2982 = vmatpush1.msra.mxu0 0.0
    %2983 = vmatprep.subr.mxu0 0.0
    %2984 = vmatpush1.msra.mxu0 0.0
    %2985 = vmatprep.subr.mxu0 0.0
    %2986 = vmatpush1.msra.mxu0 0.0
    %2987 = vmatprep.subr.mxu0 0.0
    %2988 = vmatpush1.msra.mxu0 0.0
    %2989 = vmatprep.subr.mxu0 0.0
    %2990 = vmatpush1.msra.mxu0 0.0
    %2991 = vmatprep.subr.mxu0 0.0
    %2992 = vmatpush1.msra.mxu0 0.0
    %2993 = vmatprep.subr.mxu0 0.0
    %2994 = vmatpush1.msra.mxu0 0.0
    %2995 = vmatprep.subr.mxu0 0.0
    %2996 = vmatpush1.msra.mxu0 0.0
    %2997 = vmatprep.subr.mxu0 0.0
    %2998 = vmatpush1.msra.mxu0 0.0
    %2999 = vmatprep.subr.mxu0 0.0
    %3000 = vmatpush1.msra.mxu0 0.0
    %3001 = vmatprep.subr.mxu0 0.0
    %3002 = vmatpush1.msra.mxu0 0.0
    %3003 = vmatprep.subr.mxu0 0.0
    %3004 = vmatpush1.msra.mxu0 0.0
    %3005 = vmatprep.subr.mxu0 0.0
    %3006 = vmatpush1.msra.mxu0 %v2218
    %3007 = vmatprep.subr.mxu0 0.0
    %3008 = vmatpush2.msra.mxu0 0.0
    %3009 = vmatprep.subr.mxu0 0.0
    %3010 = vmatpush2.msra.mxu0 0.0
    %3011 = vmatprep.subr.mxu0 0.0
    %3012 = vmatpush2.msra.mxu0 0.0
    %3013 = vmatprep.subr.mxu0 0.0
    %3014 = vmatpush2.msra.mxu0 0.0
    %3015 = vmatprep.subr.mxu0 0.0
    %3016 = vmatpush2.msra.mxu0 0.0
    %3017 = vmatprep.subr.mxu0 0.0
    %3018 = vmatpush2.msra.mxu0 0.0
    %3019 = vmatprep.subr.mxu0 0.0
    %3020 = vmatpush2.msra.mxu0 0.0
    %3021 = vmatprep.subr.mxu0 0.0
    %3022 = vmatpush2.msra.mxu0 0.0
    %3023 = vmatprep.subr.mxu0 0.0
    %3024 = vmatpush2.msra.mxu0 0.0
    %3025 = vmatprep.subr.mxu0 0.0
    %3026 = vmatpush2.msra.mxu0 0.0
    %3027 = vmatprep.subr.mxu0 0.0
    %3028 = vmatpush2.msra.mxu0 0.0
    %3029 = vmatprep.subr.mxu0 0.0
    %3030 = vmatpush2.msra.mxu0 0.0
    %3031 = vmatprep.subr.mxu0 0.0
    %3032 = vmatpush2.msra.mxu0 0.0
    %3033 = vmatprep.subr.mxu0 0.0
    %3034 = vmatpush2.msra.mxu0 0.0
    %3035 = vmatprep.subr.mxu0 0.0
    %3036 = vmatpush2.msra.mxu0 0.0
    %3037 = vmatprep.subr.mxu0 0.0
    %3038 = vmatpush2.msra.mxu0 0.0
    %3039 = vmatprep.mubr.f32.mxu0 0.0
    %3040 = vmatmul.mubr.f32.gmra.mxu0 %v2970
    %v3041 = vpop.f32.mrf.mxu0
    %v3042 = vadd.f32 %v2961, %v3041
    %v3043 = vpop.f32.mrf.mxu0
    %3044 = vmatprep.mubr.f32.mxu0 0.0
    %3045 = vmatmul.mubr.f32.gmra.mxu0 %v2973
    %v3046 = vpop.f32.mrf.mxu0
    %v3047 = vadd.f32 %v2966, %v3046
    %v3048 = vpop.f32.mrf.mxu0
    %3049 = vdwg.mxu0
    %3050 = vrot.lane.b32.xlu0 %v2207, 112
    %v3051 = vpop.permute.xlu0 %3050
    %3052 = vrot.lane.b32.xlu0 %v2207, 80
    %v3053 = vpop.permute.xlu0 %3052
    %v3054 = vsel %vm137, %v3051, 0
    %v3056 = vsel %vm137, %v3053, 0
    %3058 = vmatprep.subr.mxu0 0.0
    %3059 = vmatpush1.xpose.msra.mxu0 0.0
    %3060 = vmatprep.subr.mxu0 0.0
    %3061 = vmatpush1.xpose.msra.mxu0 0.0
    %3062 = vmatprep.subr.mxu0 0.0
    %3063 = vmatpush1.xpose.msra.mxu0 0.0
    %3064 = vmatprep.subr.mxu0 0.0
    %3065 = vmatpush1.xpose.msra.mxu0 0.0
    %3066 = vmatprep.subr.mxu0 0.0
    %3067 = vmatpush1.xpose.msra.mxu0 0.0
    %3068 = vmatprep.subr.mxu0 0.0
    %3069 = vmatpush1.xpose.msra.mxu0 0.0
    %3070 = vmatprep.subr.mxu0 0.0
    %3071 = vmatpush1.xpose.msra.mxu0 0.0
    %3072 = vmatprep.subr.mxu0 0.0
    %3073 = vmatpush1.xpose.msra.mxu0 0.0
    %3074 = vmatprep.subr.mxu0 0.0
    %3075 = vmatpush1.xpose.msra.mxu0 0.0
    %3076 = vmatprep.subr.mxu0 0.0
    %3077 = vmatpush1.xpose.msra.mxu0 0.0
    %3078 = vmatprep.subr.mxu0 0.0
    %3079 = vmatpush1.xpose.msra.mxu0 0.0
    %3080 = vmatprep.subr.mxu0 0.0
    %3081 = vmatpush1.xpose.msra.mxu0 0.0
    %3082 = vmatprep.subr.mxu0 0.0
    %3083 = vmatpush1.xpose.msra.mxu0 0.0
    %3084 = vmatprep.subr.mxu0 0.0
    %3085 = vmatpush1.xpose.msra.mxu0 0.0
    %3086 = vmatprep.subr.mxu0 0.0
    %3087 = vmatpush1.xpose.msra.mxu0 0.0
    %3088 = vmatprep.subr.mxu0 0.0
    %3089 = vmatpush1.xpose.msra.mxu0 %v3056
    %3090 = vmatprep.subr.mxu0 0.0
    %3091 = vmatpush2.xpose.msra.mxu0 0.0
    %3092 = vmatprep.subr.mxu0 0.0
    %3093 = vmatpush2.xpose.msra.mxu0 0.0
    %3094 = vmatprep.subr.mxu0 0.0
    %3095 = vmatpush2.xpose.msra.mxu0 0.0
    %3096 = vmatprep.subr.mxu0 0.0
    %3097 = vmatpush2.xpose.msra.mxu0 0.0
    %3098 = vmatprep.subr.mxu0 0.0
    %3099 = vmatpush2.xpose.msra.mxu0 0.0
    %3100 = vmatprep.subr.mxu0 0.0
    %3101 = vmatpush2.xpose.msra.mxu0 0.0
    %3102 = vmatprep.subr.mxu0 0.0
    %3103 = vmatpush2.xpose.msra.mxu0 0.0
    %3104 = vmatprep.subr.mxu0 0.0
    %3105 = vmatpush2.xpose.msra.mxu0 0.0
    %3106 = vmatprep.subr.mxu0 0.0
    %3107 = vmatpush2.xpose.msra.mxu0 0.0
    %3108 = vmatprep.subr.mxu0 0.0
    %3109 = vmatpush2.xpose.msra.mxu0 0.0
    %3110 = vmatprep.subr.mxu0 0.0
    %3111 = vmatpush2.xpose.msra.mxu0 0.0
    %3112 = vmatprep.subr.mxu0 0.0
    %3113 = vmatpush2.xpose.msra.mxu0 0.0
    %3114 = vmatprep.subr.mxu0 0.0
    %3115 = vmatpush2.xpose.msra.mxu0 0.0
    %3116 = vmatprep.subr.mxu0 0.0
    %3117 = vmatpush2.xpose.msra.mxu0 0.0
    %3118 = vmatprep.subr.mxu0 0.0
    %3119 = vmatpush2.xpose.msra.mxu0 0.0
    %3120 = vmatprep.subr.mxu0 0.0
    %3121 = vmatpush2.xpose.msra.mxu0 0.0
    %3122 = vmatprep.mubr.f32.mxu0 0.0
    %3123 = vmatmul.mubr.f32.gmra.mxu0 %v3054
    %v3124 = vpop.f32.mrf.mxu0
    %v3125 = vadd.f32 0.0, %v3124
    %v3126 = vpop.f32.mrf.mxu0
    %3127 = vdwg.mxu0
    %3128 = vrot.lane.b32.xlu0 %v2212, 112
    %v3129 = vpop.permute.xlu0 %3128
    %3130 = vrot.lane.b32.xlu0 %v2212, 80
    %v3131 = vpop.permute.xlu0 %3130
    %v3132 = vsel %vm137, %v3129, 0
    %v3134 = vsel %vm137, %v3131, 0
    %3136 = vmatprep.subr.mxu0 0.0
    %3137 = vmatpush1.xpose.msra.mxu0 0.0
    %3138 = vmatprep.subr.mxu0 0.0
    %3139 = vmatpush1.xpose.msra.mxu0 0.0
    %3140 = vmatprep.subr.mxu0 0.0
    %3141 = vmatpush1.xpose.msra.mxu0 0.0
    %3142 = vmatprep.subr.mxu0 0.0
    %3143 = vmatpush1.xpose.msra.mxu0 0.0
    %3144 = vmatprep.subr.mxu0 0.0
    %3145 = vmatpush1.xpose.msra.mxu0 0.0
    %3146 = vmatprep.subr.mxu0 0.0
    %3147 = vmatpush1.xpose.msra.mxu0 0.0
    %3148 = vmatprep.subr.mxu0 0.0
    %3149 = vmatpush1.xpose.msra.mxu0 0.0
    %3150 = vmatprep.subr.mxu0 0.0
    %3151 = vmatpush1.xpose.msra.mxu0 0.0
    %3152 = vmatprep.subr.mxu0 0.0
    %3153 = vmatpush1.xpose.msra.mxu0 0.0
    %3154 = vmatprep.subr.mxu0 0.0
    %3155 = vmatpush1.xpose.msra.mxu0 0.0
    %3156 = vmatprep.subr.mxu0 0.0
    %3157 = vmatpush1.xpose.msra.mxu0 0.0
    %3158 = vmatprep.subr.mxu0 0.0
    %3159 = vmatpush1.xpose.msra.mxu0 0.0
    %3160 = vmatprep.subr.mxu0 0.0
    %3161 = vmatpush1.xpose.msra.mxu0 0.0
    %3162 = vmatprep.subr.mxu0 0.0
    %3163 = vmatpush1.xpose.msra.mxu0 0.0
    %3164 = vmatprep.subr.mxu0 0.0
    %3165 = vmatpush1.xpose.msra.mxu0 0.0
    %3166 = vmatprep.subr.mxu0 0.0
    %3167 = vmatpush1.xpose.msra.mxu0 %v3134
    %3168 = vmatprep.subr.mxu0 0.0
    %3169 = vmatpush2.xpose.msra.mxu0 0.0
    %3170 = vmatprep.subr.mxu0 0.0
    %3171 = vmatpush2.xpose.msra.mxu0 0.0
    %3172 = vmatprep.subr.mxu0 0.0
    %3173 = vmatpush2.xpose.msra.mxu0 0.0
    %3174 = vmatprep.subr.mxu0 0.0
    %3175 = vmatpush2.xpose.msra.mxu0 0.0
    %3176 = vmatprep.subr.mxu0 0.0
    %3177 = vmatpush2.xpose.msra.mxu0 0.0
    %3178 = vmatprep.subr.mxu0 0.0
    %3179 = vmatpush2.xpose.msra.mxu0 0.0
    %3180 = vmatprep.subr.mxu0 0.0
    %3181 = vmatpush2.xpose.msra.mxu0 0.0
    %3182 = vmatprep.subr.mxu0 0.0
    %3183 = vmatpush2.xpose.msra.mxu0 0.0
    %3184 = vmatprep.subr.mxu0 0.0
    %3185 = vmatpush2.xpose.msra.mxu0 0.0
    %3186 = vmatprep.subr.mxu0 0.0
    %3187 = vmatpush2.xpose.msra.mxu0 0.0
    %3188 = vmatprep.subr.mxu0 0.0
    %3189 = vmatpush2.xpose.msra.mxu0 0.0
    %3190 = vmatprep.subr.mxu0 0.0
    %3191 = vmatpush2.xpose.msra.mxu0 0.0
    %3192 = vmatprep.subr.mxu0 0.0
    %3193 = vmatpush2.xpose.msra.mxu0 0.0
    %3194 = vmatprep.subr.mxu0 0.0
    %3195 = vmatpush2.xpose.msra.mxu0 0.0
    %3196 = vmatprep.subr.mxu0 0.0
    %3197 = vmatpush2.xpose.msra.mxu0 0.0
    %3198 = vmatprep.subr.mxu0 0.0
    %3199 = vmatpush2.xpose.msra.mxu0 0.0
    %3200 = vmatprep.mubr.f32.mxu0 0.0
    %3201 = vmatmul.mubr.f32.gmra.mxu0 %v3132
    %v3202 = vpop.f32.mrf.mxu0
    %v3203 = vadd.f32 0.0, %v3202
    %v3204 = vpop.f32.mrf.mxu0
    %3205 = vdwg.mxu0
    %v3206 = vmul.f32 %v3125, 0.35355338
    %v3207 = vmul.f32 %v3203, 0.35355338
    %v3208 = vadd.f32 %v3206, %v317
    %v3209 = vadd.f32 %v3207, %v321
    %v3210 = vsel %vm137, %v3208, -inf
    %3211 = vmax.xlane.f32.xlu0 %v3210
    %v3212 = vpop.xlane.xlu0 %3211
    %v3213 = vsel %vm137, %v3209, -inf
    %3214 = vmax.xlane.f32.xlu0 %v3213
    %v3215 = vpop.xlane.xlu0 %3214
    %v3216 = vsub.f32 %v3208, %v3212
    %v3217 = vsub.f32 %v3209, %v3215
    %v3218 = vmul.f32 %v3216, 1.442695
    %v3219 = vpow.pop %v3218
    %v3220 = vmul.f32 %v3217, 1.442695
    %v3221 = vpow.pop %v3220
    %v3222 = vsel %vm137, %v3219, 0.0
    %3223 = vadd.xlane.f32.xlu0 %v3222
    %v3224 = vpop.xlane.xlu0 %3223
    %v3225 = vsel %vm137, %v3221, 0.0
    %3226 = vadd.xlane.f32.xlu0 %v3225
    %v3227 = vpop.xlane.xlu0 %3226
    %v3228 = vrcp.pop %v3224
    %v3229 = vrcp.pop %v3227
    %v3230 = vmul.f32 %v3219, %v3228
    %v3231 = vmul.f32 %v3221, %v3229
    %3232 = vrot.lane.b32.xlu0 %v2207, 48
    %v3233 = vpop.permute.xlu0 %3232
    %v3236 = vsel %vm137, %v3230, 0
    %3238 = vmatprep.subr.mxu0 0.0
    %3239 = vmatpush1.msra.mxu0 0.0
    %3240 = vmatprep.subr.mxu0 0.0
    %3241 = vmatpush1.msra.mxu0 0.0
    %3242 = vmatprep.subr.mxu0 0.0
    %3243 = vmatpush1.msra.mxu0 0.0
    %3244 = vmatprep.subr.mxu0 0.0
    %3245 = vmatpush1.msra.mxu0 0.0
    %3246 = vmatprep.subr.mxu0 0.0
    %3247 = vmatpush1.msra.mxu0 0.0
    %3248 = vmatprep.subr.mxu0 0.0
    %3249 = vmatpush1.msra.mxu0 0.0
    %3250 = vmatprep.subr.mxu0 0.0
    %3251 = vmatpush1.msra.mxu0 0.0
    %3252 = vmatprep.subr.mxu0 0.0
    %3253 = vmatpush1.msra.mxu0 0.0
    %3254 = vmatprep.subr.mxu0 0.0
    %3255 = vmatpush1.msra.mxu0 0.0
    %3256 = vmatprep.subr.mxu0 0.0
    %3257 = vmatpush1.msra.mxu0 0.0
    %3258 = vmatprep.subr.mxu0 0.0
    %3259 = vmatpush1.msra.mxu0 0.0
    %3260 = vmatprep.subr.mxu0 0.0
    %3261 = vmatpush1.msra.mxu0 0.0
    %3262 = vmatprep.subr.mxu0 0.0
    %3263 = vmatpush1.msra.mxu0 0.0
    %3264 = vmatprep.subr.mxu0 0.0
    %3265 = vmatpush1.msra.mxu0 0.0
    %3266 = vmatprep.subr.mxu0 0.0
    %3267 = vmatpush1.msra.mxu0 0.0
    %3268 = vmatprep.subr.mxu0 0.0
    %3269 = vmatpush1.msra.mxu0 %v3233
    %3270 = vmatprep.subr.mxu0 0.0
    %3271 = vmatpush2.msra.mxu0 0.0
    %3272 = vmatprep.subr.mxu0 0.0
    %3273 = vmatpush2.msra.mxu0 0.0
    %3274 = vmatprep.subr.mxu0 0.0
    %3275 = vmatpush2.msra.mxu0 0.0
    %3276 = vmatprep.subr.mxu0 0.0
    %3277 = vmatpush2.msra.mxu0 0.0
    %3278 = vmatprep.subr.mxu0 0.0
    %3279 = vmatpush2.msra.mxu0 0.0
    %3280 = vmatprep.subr.mxu0 0.0
    %3281 = vmatpush2.msra.mxu0 0.0
    %3282 = vmatprep.subr.mxu0 0.0
    %3283 = vmatpush2.msra.mxu0 0.0
    %3284 = vmatprep.subr.mxu0 0.0
    %3285 = vmatpush2.msra.mxu0 0.0
    %3286 = vmatprep.subr.mxu0 0.0
    %3287 = vmatpush2.msra.mxu0 0.0
    %3288 = vmatprep.subr.mxu0 0.0
    %3289 = vmatpush2.msra.mxu0 0.0
    %3290 = vmatprep.subr.mxu0 0.0
    %3291 = vmatpush2.msra.mxu0 0.0
    %3292 = vmatprep.subr.mxu0 0.0
    %3293 = vmatpush2.msra.mxu0 0.0
    %3294 = vmatprep.subr.mxu0 0.0
    %3295 = vmatpush2.msra.mxu0 0.0
    %3296 = vmatprep.subr.mxu0 0.0
    %3297 = vmatpush2.msra.mxu0 0.0
    %3298 = vmatprep.subr.mxu0 0.0
    %3299 = vmatpush2.msra.mxu0 0.0
    %3300 = vmatprep.subr.mxu0 0.0
    %3301 = vmatpush2.msra.mxu0 0.0
    %3302 = vmatprep.mubr.f32.mxu0 0.0
    %3303 = vmatmul.mubr.f32.gmra.mxu0 %v3236
    %v3304 = vpop.f32.mrf.mxu0
    %v3305 = vadd.f32 0.0, %v3304
    %v3306 = vpop.f32.mrf.mxu0
    %3307 = vdwg.mxu0
    %3308 = vrot.lane.b32.xlu0 %v2212, 48
    %v3309 = vpop.permute.xlu0 %3308
    %v3312 = vsel %vm137, %v3231, 0
    %3314 = vmatprep.subr.mxu0 0.0
    %3315 = vmatpush1.msra.mxu0 0.0
    %3316 = vmatprep.subr.mxu0 0.0
    %3317 = vmatpush1.msra.mxu0 0.0
    %3318 = vmatprep.subr.mxu0 0.0
    %3319 = vmatpush1.msra.mxu0 0.0
    %3320 = vmatprep.subr.mxu0 0.0
    %3321 = vmatpush1.msra.mxu0 0.0
    %3322 = vmatprep.subr.mxu0 0.0
    %3323 = vmatpush1.msra.mxu0 0.0
    %3324 = vmatprep.subr.mxu0 0.0
    %3325 = vmatpush1.msra.mxu0 0.0
    %3326 = vmatprep.subr.mxu0 0.0
    %3327 = vmatpush1.msra.mxu0 0.0
    %3328 = vmatprep.subr.mxu0 0.0
    %3329 = vmatpush1.msra.mxu0 0.0
    %3330 = vmatprep.subr.mxu0 0.0
    %3331 = vmatpush1.msra.mxu0 0.0
    %3332 = vmatprep.subr.mxu0 0.0
    %3333 = vmatpush1.msra.mxu0 0.0
    %3334 = vmatprep.subr.mxu0 0.0
    %3335 = vmatpush1.msra.mxu0 0.0
    %3336 = vmatprep.subr.mxu0 0.0
    %3337 = vmatpush1.msra.mxu0 0.0
    %3338 = vmatprep.subr.mxu0 0.0
    %3339 = vmatpush1.msra.mxu0 0.0
    %3340 = vmatprep.subr.mxu0 0.0
    %3341 = vmatpush1.msra.mxu0 0.0
    %3342 = vmatprep.subr.mxu0 0.0
    %3343 = vmatpush1.msra.mxu0 0.0
    %3344 = vmatprep.subr.mxu0 0.0
    %3345 = vmatpush1.msra.mxu0 %v3309
    %3346 = vmatprep.subr.mxu0 0.0
    %3347 = vmatpush2.msra.mxu0 0.0
    %3348 = vmatprep.subr.mxu0 0.0
    %3349 = vmatpush2.msra.mxu0 0.0
    %3350 = vmatprep.subr.mxu0 0.0
    %3351 = vmatpush2.msra.mxu0 0.0
    %3352 = vmatprep.subr.mxu0 0.0
    %3353 = vmatpush2.msra.mxu0 0.0
    %3354 = vmatprep.subr.mxu0 0.0
    %3355 = vmatpush2.msra.mxu0 0.0
    %3356 = vmatprep.subr.mxu0 0.0
    %3357 = vmatpush2.msra.mxu0 0.0
    %3358 = vmatprep.subr.mxu0 0.0
    %3359 = vmatpush2.msra.mxu0 0.0
    %3360 = vmatprep.subr.mxu0 0.0
    %3361 = vmatpush2.msra.mxu0 0.0
    %3362 = vmatprep.subr.mxu0 0.0
    %3363 = vmatpush2.msra.mxu0 0.0
    %3364 = vmatprep.subr.mxu0 0.0
    %3365 = vmatpush2.msra.mxu0 0.0
    %3366 = vmatprep.subr.mxu0 0.0
    %3367 = vmatpush2.msra.mxu0 0.0
    %3368 = vmatprep.subr.mxu0 0.0
    %3369 = vmatpush2.msra.mxu0 0.0
    %3370 = vmatprep.subr.mxu0 0.0
    %3371 = vmatpush2.msra.mxu0 0.0
    %3372 = vmatprep.subr.mxu0 0.0
    %3373 = vmatpush2.msra.mxu0 0.0
    %3374 = vmatprep.subr.mxu0 0.0
    %3375 = vmatpush2.msra.mxu0 0.0
    %3376 = vmatprep.subr.mxu0 0.0
    %3377 = vmatpush2.msra.mxu0 0.0
    %3378 = vmatprep.mubr.f32.mxu0 0.0
    %3379 = vmatmul.mubr.f32.gmra.mxu0 %v3312
    %v3380 = vpop.f32.mrf.mxu0
    %v3381 = vadd.f32 0.0, %v3380
    %v3382 = vpop.f32.mrf.mxu0
    %3383 = vdwg.mxu0
    %v3385 = vsel %vm137, %v3305, 0
    %v3388 = vsel %vm137, %v3381, 0
    %3390 = vmatprep.subr.mxu0 0.0
    %3391 = vmatpush1.msra.mxu0 0.0
    %3392 = vmatprep.subr.mxu0 0.0
    %3393 = vmatpush1.msra.mxu0 0.0
    %3394 = vmatprep.subr.mxu0 0.0
    %3395 = vmatpush1.msra.mxu0 0.0
    %3396 = vmatprep.subr.mxu0 0.0
    %3397 = vmatpush1.msra.mxu0 0.0
    %3398 = vmatprep.subr.mxu0 0.0
    %3399 = vmatpush1.msra.mxu0 0.0
    %3400 = vmatprep.subr.mxu0 0.0
    %3401 = vmatpush1.msra.mxu0 0.0
    %3402 = vmatprep.subr.mxu0 0.0
    %3403 = vmatpush1.msra.mxu0 0.0
    %3404 = vmatprep.subr.mxu0 0.0
    %3405 = vmatpush1.msra.mxu0 0.0
    %3406 = vmatprep.subr.mxu0 0.0
    %3407 = vmatpush1.msra.mxu0 0.0
    %3408 = vmatprep.subr.mxu0 0.0
    %3409 = vmatpush1.msra.mxu0 0.0
    %3410 = vmatprep.subr.mxu0 0.0
    %3411 = vmatpush1.msra.mxu0 0.0
    %3412 = vmatprep.subr.mxu0 0.0
    %3413 = vmatpush1.msra.mxu0 0.0
    %3414 = vmatprep.subr.mxu0 0.0
    %3415 = vmatpush1.msra.mxu0 0.0
    %3416 = vmatprep.subr.mxu0 0.0
    %3417 = vmatpush1.msra.mxu0 0.0
    %3418 = vmatprep.subr.mxu0 0.0
    %3419 = vmatpush1.msra.mxu0 0.0
    %3420 = vmatprep.subr.mxu0 0.0
    %3421 = vmatpush1.msra.mxu0 %v2220
    %3422 = vmatprep.subr.mxu0 0.0
    %3423 = vmatpush2.msra.mxu0 0.0
    %3424 = vmatprep.subr.mxu0 0.0
    %3425 = vmatpush2.msra.mxu0 0.0
    %3426 = vmatprep.subr.mxu0 0.0
    %3427 = vmatpush2.msra.mxu0 0.0
    %3428 = vmatprep.subr.mxu0 0.0
    %3429 = vmatpush2.msra.mxu0 0.0
    %3430 = vmatprep.subr.mxu0 0.0
    %3431 = vmatpush2.msra.mxu0 0.0
    %3432 = vmatprep.subr.mxu0 0.0
    %3433 = vmatpush2.msra.mxu0 0.0
    %3434 = vmatprep.subr.mxu0 0.0
    %3435 = vmatpush2.msra.mxu0 0.0
    %3436 = vmatprep.subr.mxu0 0.0
    %3437 = vmatpush2.msra.mxu0 0.0
    %3438 = vmatprep.subr.mxu0 0.0
    %3439 = vmatpush2.msra.mxu0 0.0
    %3440 = vmatprep.subr.mxu0 0.0
    %3441 = vmatpush2.msra.mxu0 0.0
    %3442 = vmatprep.subr.mxu0 0.0
    %3443 = vmatpush2.msra.mxu0 0.0
    %3444 = vmatprep.subr.mxu0 0.0
    %3445 = vmatpush2.msra.mxu0 0.0
    %3446 = vmatprep.subr.mxu0 0.0
    %3447 = vmatpush2.msra.mxu0 0.0
    %3448 = vmatprep.subr.mxu0 0.0
    %3449 = vmatpush2.msra.mxu0 0.0
    %3450 = vmatprep.subr.mxu0 0.0
    %3451 = vmatpush2.msra.mxu0 0.0
    %3452 = vmatprep.subr.mxu0 0.0
    %3453 = vmatpush2.msra.mxu0 0.0
    %3454 = vmatprep.mubr.f32.mxu0 0.0
    %3455 = vmatmul.mubr.f32.gmra.mxu0 %v3385
    %v3456 = vpop.f32.mrf.mxu0
    %v3457 = vadd.f32 0.0, %v3456
    %v3458 = vpop.f32.mrf.mxu0
    %3459 = vmatprep.mubr.f32.mxu0 0.0
    %3460 = vmatmul.mubr.f32.gmra.mxu0 %v3388
    %v3461 = vpop.f32.mrf.mxu0
    %v3462 = vadd.f32 0.0, %v3461
    %v3463 = vpop.f32.mrf.mxu0
    %3464 = vdwg.mxu0
    %v3465 = vadd.f32 %v3042, %v3457
    %v3466 = vadd.f32 %v3047, %v3462
    %3467 = vrot.lane.b32.xlu0 %v2207, 104
    %v3468 = vpop.permute.xlu0 %3467
    %3469 = vrot.lane.b32.xlu0 %v2207, 72
    %v3470 = vpop.permute.xlu0 %3469
    %v3471 = vsel %vm137, %v3468, 0
    %v3473 = vsel %vm137, %v3470, 0
    %3475 = vmatprep.subr.mxu0 0.0
    %3476 = vmatpush1.xpose.msra.mxu0 0.0
    %3477 = vmatprep.subr.mxu0 0.0
    %3478 = vmatpush1.xpose.msra.mxu0 0.0
    %3479 = vmatprep.subr.mxu0 0.0
    %3480 = vmatpush1.xpose.msra.mxu0 0.0
    %3481 = vmatprep.subr.mxu0 0.0
    %3482 = vmatpush1.xpose.msra.mxu0 0.0
    %3483 = vmatprep.subr.mxu0 0.0
    %3484 = vmatpush1.xpose.msra.mxu0 0.0
    %3485 = vmatprep.subr.mxu0 0.0
    %3486 = vmatpush1.xpose.msra.mxu0 0.0
    %3487 = vmatprep.subr.mxu0 0.0
    %3488 = vmatpush1.xpose.msra.mxu0 0.0
    %3489 = vmatprep.subr.mxu0 0.0
    %3490 = vmatpush1.xpose.msra.mxu0 0.0
    %3491 = vmatprep.subr.mxu0 0.0
    %3492 = vmatpush1.xpose.msra.mxu0 0.0
    %3493 = vmatprep.subr.mxu0 0.0
    %3494 = vmatpush1.xpose.msra.mxu0 0.0
    %3495 = vmatprep.subr.mxu0 0.0
    %3496 = vmatpush1.xpose.msra.mxu0 0.0
    %3497 = vmatprep.subr.mxu0 0.0
    %3498 = vmatpush1.xpose.msra.mxu0 0.0
    %3499 = vmatprep.subr.mxu0 0.0
    %3500 = vmatpush1.xpose.msra.mxu0 0.0
    %3501 = vmatprep.subr.mxu0 0.0
    %3502 = vmatpush1.xpose.msra.mxu0 0.0
    %3503 = vmatprep.subr.mxu0 0.0
    %3504 = vmatpush1.xpose.msra.mxu0 0.0
    %3505 = vmatprep.subr.mxu0 0.0
    %3506 = vmatpush1.xpose.msra.mxu0 %v3473
    %3507 = vmatprep.subr.mxu0 0.0
    %3508 = vmatpush2.xpose.msra.mxu0 0.0
    %3509 = vmatprep.subr.mxu0 0.0
    %3510 = vmatpush2.xpose.msra.mxu0 0.0
    %3511 = vmatprep.subr.mxu0 0.0
    %3512 = vmatpush2.xpose.msra.mxu0 0.0
    %3513 = vmatprep.subr.mxu0 0.0
    %3514 = vmatpush2.xpose.msra.mxu0 0.0
    %3515 = vmatprep.subr.mxu0 0.0
    %3516 = vmatpush2.xpose.msra.mxu0 0.0
    %3517 = vmatprep.subr.mxu0 0.0
    %3518 = vmatpush2.xpose.msra.mxu0 0.0
    %3519 = vmatprep.subr.mxu0 0.0
    %3520 = vmatpush2.xpose.msra.mxu0 0.0
    %3521 = vmatprep.subr.mxu0 0.0
    %3522 = vmatpush2.xpose.msra.mxu0 0.0
    %3523 = vmatprep.subr.mxu0 0.0
    %3524 = vmatpush2.xpose.msra.mxu0 0.0
    %3525 = vmatprep.subr.mxu0 0.0
    %3526 = vmatpush2.xpose.msra.mxu0 0.0
    %3527 = vmatprep.subr.mxu0 0.0
    %3528 = vmatpush2.xpose.msra.mxu0 0.0
    %3529 = vmatprep.subr.mxu0 0.0
    %3530 = vmatpush2.xpose.msra.mxu0 0.0
    %3531 = vmatprep.subr.mxu0 0.0
    %3532 = vmatpush2.xpose.msra.mxu0 0.0
    %3533 = vmatprep.subr.mxu0 0.0
    %3534 = vmatpush2.xpose.msra.mxu0 0.0
    %3535 = vmatprep.subr.mxu0 0.0
    %3536 = vmatpush2.xpose.msra.mxu0 0.0
    %3537 = vmatprep.subr.mxu0 0.0
    %3538 = vmatpush2.xpose.msra.mxu0 0.0
    %3539 = vmatprep.mubr.f32.mxu0 0.0
    %3540 = vmatmul.mubr.f32.gmra.mxu0 %v3471
    %v3541 = vpop.f32.mrf.mxu0
    %v3542 = vadd.f32 0.0, %v3541
    %v3543 = vpop.f32.mrf.mxu0
    %3544 = vdwg.mxu0
    %3545 = vrot.lane.b32.xlu0 %v2212, 104
    %v3546 = vpop.permute.xlu0 %3545
    %3547 = vrot.lane.b32.xlu0 %v2212, 72
    %v3548 = vpop.permute.xlu0 %3547
    %v3549 = vsel %vm137, %v3546, 0
    %v3551 = vsel %vm137, %v3548, 0
    %3553 = vmatprep.subr.mxu0 0.0
    %3554 = vmatpush1.xpose.msra.mxu0 0.0
    %3555 = vmatprep.subr.mxu0 0.0
    %3556 = vmatpush1.xpose.msra.mxu0 0.0
    %3557 = vmatprep.subr.mxu0 0.0
    %3558 = vmatpush1.xpose.msra.mxu0 0.0
    %3559 = vmatprep.subr.mxu0 0.0
    %3560 = vmatpush1.xpose.msra.mxu0 0.0
    %3561 = vmatprep.subr.mxu0 0.0
    %3562 = vmatpush1.xpose.msra.mxu0 0.0
    %3563 = vmatprep.subr.mxu0 0.0
    %3564 = vmatpush1.xpose.msra.mxu0 0.0
    %3565 = vmatprep.subr.mxu0 0.0
    %3566 = vmatpush1.xpose.msra.mxu0 0.0
    %3567 = vmatprep.subr.mxu0 0.0
    %3568 = vmatpush1.xpose.msra.mxu0 0.0
    %3569 = vmatprep.subr.mxu0 0.0
    %3570 = vmatpush1.xpose.msra.mxu0 0.0
    %3571 = vmatprep.subr.mxu0 0.0
    %3572 = vmatpush1.xpose.msra.mxu0 0.0
    %3573 = vmatprep.subr.mxu0 0.0
    %3574 = vmatpush1.xpose.msra.mxu0 0.0
    %3575 = vmatprep.subr.mxu0 0.0
    %3576 = vmatpush1.xpose.msra.mxu0 0.0
    %3577 = vmatprep.subr.mxu0 0.0
    %3578 = vmatpush1.xpose.msra.mxu0 0.0
    %3579 = vmatprep.subr.mxu0 0.0
    %3580 = vmatpush1.xpose.msra.mxu0 0.0
    %3581 = vmatprep.subr.mxu0 0.0
    %3582 = vmatpush1.xpose.msra.mxu0 0.0
    %3583 = vmatprep.subr.mxu0 0.0
    %3584 = vmatpush1.xpose.msra.mxu0 %v3551
    %3585 = vmatprep.subr.mxu0 0.0
    %3586 = vmatpush2.xpose.msra.mxu0 0.0
    %3587 = vmatprep.subr.mxu0 0.0
    %3588 = vmatpush2.xpose.msra.mxu0 0.0
    %3589 = vmatprep.subr.mxu0 0.0
    %3590 = vmatpush2.xpose.msra.mxu0 0.0
    %3591 = vmatprep.subr.mxu0 0.0
    %3592 = vmatpush2.xpose.msra.mxu0 0.0
    %3593 = vmatprep.subr.mxu0 0.0
    %3594 = vmatpush2.xpose.msra.mxu0 0.0
    %3595 = vmatprep.subr.mxu0 0.0
    %3596 = vmatpush2.xpose.msra.mxu0 0.0
    %3597 = vmatprep.subr.mxu0 0.0
    %3598 = vmatpush2.xpose.msra.mxu0 0.0
    %3599 = vmatprep.subr.mxu0 0.0
    %3600 = vmatpush2.xpose.msra.mxu0 0.0
    %3601 = vmatprep.subr.mxu0 0.0
    %3602 = vmatpush2.xpose.msra.mxu0 0.0
    %3603 = vmatprep.subr.mxu0 0.0
    %3604 = vmatpush2.xpose.msra.mxu0 0.0
    %3605 = vmatprep.subr.mxu0 0.0
    %3606 = vmatpush2.xpose.msra.mxu0 0.0
    %3607 = vmatprep.subr.mxu0 0.0
    %3608 = vmatpush2.xpose.msra.mxu0 0.0
    %3609 = vmatprep.subr.mxu0 0.0
    %3610 = vmatpush2.xpose.msra.mxu0 0.0
    %3611 = vmatprep.subr.mxu0 0.0
    %3612 = vmatpush2.xpose.msra.mxu0 0.0
    %3613 = vmatprep.subr.mxu0 0.0
    %3614 = vmatpush2.xpose.msra.mxu0 0.0
    %3615 = vmatprep.subr.mxu0 0.0
    %3616 = vmatpush2.xpose.msra.mxu0 0.0
    %3617 = vmatprep.mubr.f32.mxu0 0.0
    %3618 = vmatmul.mubr.f32.gmra.mxu0 %v3549
    %v3619 = vpop.f32.mrf.mxu0
    %v3620 = vadd.f32 0.0, %v3619
    %v3621 = vpop.f32.mrf.mxu0
    %3622 = vdwg.mxu0
    %v3623 = vmul.f32 %v3542, 0.35355338
    %v3624 = vmul.f32 %v3620, 0.35355338
    %v3625 = vadd.f32 %v3623, %v317
    %v3626 = vadd.f32 %v3624, %v321
    %v3627 = vsel %vm137, %v3625, -inf
    %3628 = vmax.xlane.f32.xlu0 %v3627
    %v3629 = vpop.xlane.xlu0 %3628
    %v3630 = vsel %vm137, %v3626, -inf
    %3631 = vmax.xlane.f32.xlu0 %v3630
    %v3632 = vpop.xlane.xlu0 %3631
    %v3633 = vsub.f32 %v3625, %v3629
    %v3634 = vsub.f32 %v3626, %v3632
    %v3635 = vmul.f32 %v3633, 1.442695
    %v3636 = vpow.pop %v3635
    %v3637 = vmul.f32 %v3634, 1.442695
    %v3638 = vpow.pop %v3637
    %v3639 = vsel %vm137, %v3636, 0.0
    %3640 = vadd.xlane.f32.xlu0 %v3639
    %v3641 = vpop.xlane.xlu0 %3640
    %v3642 = vsel %vm137, %v3638, 0.0
    %3643 = vadd.xlane.f32.xlu0 %v3642
    %v3644 = vpop.xlane.xlu0 %3643
    %v3645 = vrcp.pop %v3641
    %v3646 = vrcp.pop %v3644
    %v3647 = vmul.f32 %v3636, %v3645
    %v3648 = vmul.f32 %v3638, %v3646
    %3649 = vrot.lane.b32.xlu0 %v2207, 40
    %v3650 = vpop.permute.xlu0 %3649
    %v3653 = vsel %vm137, %v3647, 0
    %3655 = vmatprep.subr.mxu0 0.0
    %3656 = vmatpush1.msra.mxu0 0.0
    %3657 = vmatprep.subr.mxu0 0.0
    %3658 = vmatpush1.msra.mxu0 0.0
    %3659 = vmatprep.subr.mxu0 0.0
    %3660 = vmatpush1.msra.mxu0 0.0
    %3661 = vmatprep.subr.mxu0 0.0
    %3662 = vmatpush1.msra.mxu0 0.0
    %3663 = vmatprep.subr.mxu0 0.0
    %3664 = vmatpush1.msra.mxu0 0.0
    %3665 = vmatprep.subr.mxu0 0.0
    %3666 = vmatpush1.msra.mxu0 0.0
    %3667 = vmatprep.subr.mxu0 0.0
    %3668 = vmatpush1.msra.mxu0 0.0
    %3669 = vmatprep.subr.mxu0 0.0
    %3670 = vmatpush1.msra.mxu0 0.0
    %3671 = vmatprep.subr.mxu0 0.0
    %3672 = vmatpush1.msra.mxu0 0.0
    %3673 = vmatprep.subr.mxu0 0.0
    %3674 = vmatpush1.msra.mxu0 0.0
    %3675 = vmatprep.subr.mxu0 0.0
    %3676 = vmatpush1.msra.mxu0 0.0
    %3677 = vmatprep.subr.mxu0 0.0
    %3678 = vmatpush1.msra.mxu0 0.0
    %3679 = vmatprep.subr.mxu0 0.0
    %3680 = vmatpush1.msra.mxu0 0.0
    %3681 = vmatprep.subr.mxu0 0.0
    %3682 = vmatpush1.msra.mxu0 0.0
    %3683 = vmatprep.subr.mxu0 0.0
    %3684 = vmatpush1.msra.mxu0 0.0
    %3685 = vmatprep.subr.mxu0 0.0
    %3686 = vmatpush1.msra.mxu0 %v3650
    %3687 = vmatprep.subr.mxu0 0.0
    %3688 = vmatpush2.msra.mxu0 0.0
    %3689 = vmatprep.subr.mxu0 0.0
    %3690 = vmatpush2.msra.mxu0 0.0
    %3691 = vmatprep.subr.mxu0 0.0
    %3692 = vmatpush2.msra.mxu0 0.0
    %3693 = vmatprep.subr.mxu0 0.0
    %3694 = vmatpush2.msra.mxu0 0.0
    %3695 = vmatprep.subr.mxu0 0.0
    %3696 = vmatpush2.msra.mxu0 0.0
    %3697 = vmatprep.subr.mxu0 0.0
    %3698 = vmatpush2.msra.mxu0 0.0
    %3699 = vmatprep.subr.mxu0 0.0
    %3700 = vmatpush2.msra.mxu0 0.0
    %3701 = vmatprep.subr.mxu0 0.0
    %3702 = vmatpush2.msra.mxu0 0.0
    %3703 = vmatprep.subr.mxu0 0.0
    %3704 = vmatpush2.msra.mxu0 0.0
    %3705 = vmatprep.subr.mxu0 0.0
    %3706 = vmatpush2.msra.mxu0 0.0
    %3707 = vmatprep.subr.mxu0 0.0
    %3708 = vmatpush2.msra.mxu0 0.0
    %3709 = vmatprep.subr.mxu0 0.0
    %3710 = vmatpush2.msra.mxu0 0.0
    %3711 = vmatprep.subr.mxu0 0.0
    %3712 = vmatpush2.msra.mxu0 0.0
    %3713 = vmatprep.subr.mxu0 0.0
    %3714 = vmatpush2.msra.mxu0 0.0
    %3715 = vmatprep.subr.mxu0 0.0
    %3716 = vmatpush2.msra.mxu0 0.0
    %3717 = vmatprep.subr.mxu0 0.0
    %3718 = vmatpush2.msra.mxu0 0.0
    %3719 = vmatprep.mubr.f32.mxu0 0.0
    %3720 = vmatmul.mubr.f32.gmra.mxu0 %v3653
    %v3721 = vpop.f32.mrf.mxu0
    %v3722 = vadd.f32 0.0, %v3721
    %v3723 = vpop.f32.mrf.mxu0
    %3724 = vdwg.mxu0
    %3725 = vrot.lane.b32.xlu0 %v2212, 40
    %v3726 = vpop.permute.xlu0 %3725
    %v3729 = vsel %vm137, %v3648, 0
    %3731 = vmatprep.subr.mxu0 0.0
    %3732 = vmatpush1.msra.mxu0 0.0
    %3733 = vmatprep.subr.mxu0 0.0
    %3734 = vmatpush1.msra.mxu0 0.0
    %3735 = vmatprep.subr.mxu0 0.0
    %3736 = vmatpush1.msra.mxu0 0.0
    %3737 = vmatprep.subr.mxu0 0.0
    %3738 = vmatpush1.msra.mxu0 0.0
    %3739 = vmatprep.subr.mxu0 0.0
    %3740 = vmatpush1.msra.mxu0 0.0
    %3741 = vmatprep.subr.mxu0 0.0
    %3742 = vmatpush1.msra.mxu0 0.0
    %3743 = vmatprep.subr.mxu0 0.0
    %3744 = vmatpush1.msra.mxu0 0.0
    %3745 = vmatprep.subr.mxu0 0.0
    %3746 = vmatpush1.msra.mxu0 0.0
    %3747 = vmatprep.subr.mxu0 0.0
    %3748 = vmatpush1.msra.mxu0 0.0
    %3749 = vmatprep.subr.mxu0 0.0
    %3750 = vmatpush1.msra.mxu0 0.0
    %3751 = vmatprep.subr.mxu0 0.0
    %3752 = vmatpush1.msra.mxu0 0.0
    %3753 = vmatprep.subr.mxu0 0.0
    %3754 = vmatpush1.msra.mxu0 0.0
    %3755 = vmatprep.subr.mxu0 0.0
    %3756 = vmatpush1.msra.mxu0 0.0
    %3757 = vmatprep.subr.mxu0 0.0
    %3758 = vmatpush1.msra.mxu0 0.0
    %3759 = vmatprep.subr.mxu0 0.0
    %3760 = vmatpush1.msra.mxu0 0.0
    %3761 = vmatprep.subr.mxu0 0.0
    %3762 = vmatpush1.msra.mxu0 %v3726
    %3763 = vmatprep.subr.mxu0 0.0
    %3764 = vmatpush2.msra.mxu0 0.0
    %3765 = vmatprep.subr.mxu0 0.0
    %3766 = vmatpush2.msra.mxu0 0.0
    %3767 = vmatprep.subr.mxu0 0.0
    %3768 = vmatpush2.msra.mxu0 0.0
    %3769 = vmatprep.subr.mxu0 0.0
    %3770 = vmatpush2.msra.mxu0 0.0
    %3771 = vmatprep.subr.mxu0 0.0
    %3772 = vmatpush2.msra.mxu0 0.0
    %3773 = vmatprep.subr.mxu0 0.0
    %3774 = vmatpush2.msra.mxu0 0.0
    %3775 = vmatprep.subr.mxu0 0.0
    %3776 = vmatpush2.msra.mxu0 0.0
    %3777 = vmatprep.subr.mxu0 0.0
    %3778 = vmatpush2.msra.mxu0 0.0
    %3779 = vmatprep.subr.mxu0 0.0
    %3780 = vmatpush2.msra.mxu0 0.0
    %3781 = vmatprep.subr.mxu0 0.0
    %3782 = vmatpush2.msra.mxu0 0.0
    %3783 = vmatprep.subr.mxu0 0.0
    %3784 = vmatpush2.msra.mxu0 0.0
    %3785 = vmatprep.subr.mxu0 0.0
    %3786 = vmatpush2.msra.mxu0 0.0
    %3787 = vmatprep.subr.mxu0 0.0
    %3788 = vmatpush2.msra.mxu0 0.0
    %3789 = vmatprep.subr.mxu0 0.0
    %3790 = vmatpush2.msra.mxu0 0.0
    %3791 = vmatprep.subr.mxu0 0.0
    %3792 = vmatpush2.msra.mxu0 0.0
    %3793 = vmatprep.subr.mxu0 0.0
    %3794 = vmatpush2.msra.mxu0 0.0
    %3795 = vmatprep.mubr.f32.mxu0 0.0
    %3796 = vmatmul.mubr.f32.gmra.mxu0 %v3729
    %v3797 = vpop.f32.mrf.mxu0
    %v3798 = vadd.f32 0.0, %v3797
    %v3799 = vpop.f32.mrf.mxu0
    %3800 = vdwg.mxu0
    %v3802 = vsel %vm137, %v3722, 0
    %v3805 = vsel %vm137, %v3798, 0
    %3807 = vmatprep.subr.mxu0 0.0
    %3808 = vmatpush1.msra.mxu0 0.0
    %3809 = vmatprep.subr.mxu0 0.0
    %3810 = vmatpush1.msra.mxu0 0.0
    %3811 = vmatprep.subr.mxu0 0.0
    %3812 = vmatpush1.msra.mxu0 0.0
    %3813 = vmatprep.subr.mxu0 0.0
    %3814 = vmatpush1.msra.mxu0 0.0
    %3815 = vmatprep.subr.mxu0 0.0
    %3816 = vmatpush1.msra.mxu0 0.0
    %3817 = vmatprep.subr.mxu0 0.0
    %3818 = vmatpush1.msra.mxu0 0.0
    %3819 = vmatprep.subr.mxu0 0.0
    %3820 = vmatpush1.msra.mxu0 0.0
    %3821 = vmatprep.subr.mxu0 0.0
    %3822 = vmatpush1.msra.mxu0 0.0
    %3823 = vmatprep.subr.mxu0 0.0
    %3824 = vmatpush1.msra.mxu0 0.0
    %3825 = vmatprep.subr.mxu0 0.0
    %3826 = vmatpush1.msra.mxu0 0.0
    %3827 = vmatprep.subr.mxu0 0.0
    %3828 = vmatpush1.msra.mxu0 0.0
    %3829 = vmatprep.subr.mxu0 0.0
    %3830 = vmatpush1.msra.mxu0 0.0
    %3831 = vmatprep.subr.mxu0 0.0
    %3832 = vmatpush1.msra.mxu0 0.0
    %3833 = vmatprep.subr.mxu0 0.0
    %3834 = vmatpush1.msra.mxu0 0.0
    %3835 = vmatprep.subr.mxu0 0.0
    %3836 = vmatpush1.msra.mxu0 0.0
    %3837 = vmatprep.subr.mxu0 0.0
    %3838 = vmatpush1.msra.mxu0 %v2221
    %3839 = vmatprep.subr.mxu0 0.0
    %3840 = vmatpush2.msra.mxu0 0.0
    %3841 = vmatprep.subr.mxu0 0.0
    %3842 = vmatpush2.msra.mxu0 0.0
    %3843 = vmatprep.subr.mxu0 0.0
    %3844 = vmatpush2.msra.mxu0 0.0
    %3845 = vmatprep.subr.mxu0 0.0
    %3846 = vmatpush2.msra.mxu0 0.0
    %3847 = vmatprep.subr.mxu0 0.0
    %3848 = vmatpush2.msra.mxu0 0.0
    %3849 = vmatprep.subr.mxu0 0.0
    %3850 = vmatpush2.msra.mxu0 0.0
    %3851 = vmatprep.subr.mxu0 0.0
    %3852 = vmatpush2.msra.mxu0 0.0
    %3853 = vmatprep.subr.mxu0 0.0
    %3854 = vmatpush2.msra.mxu0 0.0
    %3855 = vmatprep.subr.mxu0 0.0
    %3856 = vmatpush2.msra.mxu0 0.0
    %3857 = vmatprep.subr.mxu0 0.0
    %3858 = vmatpush2.msra.mxu0 0.0
    %3859 = vmatprep.subr.mxu0 0.0
    %3860 = vmatpush2.msra.mxu0 0.0
    %3861 = vmatprep.subr.mxu0 0.0
    %3862 = vmatpush2.msra.mxu0 0.0
    %3863 = vmatprep.subr.mxu0 0.0
    %3864 = vmatpush2.msra.mxu0 0.0
    %3865 = vmatprep.subr.mxu0 0.0
    %3866 = vmatpush2.msra.mxu0 0.0
    %3867 = vmatprep.subr.mxu0 0.0
    %3868 = vmatpush2.msra.mxu0 0.0
    %3869 = vmatprep.subr.mxu0 0.0
    %3870 = vmatpush2.msra.mxu0 0.0
    %3871 = vmatprep.mubr.f32.mxu0 0.0
    %3872 = vmatmul.mubr.f32.gmra.mxu0 %v3802
    %v3873 = vpop.f32.mrf.mxu0
    %v3874 = vadd.f32 0.0, %v3873
    %v3875 = vpop.f32.mrf.mxu0
    %3876 = vmatprep.mubr.f32.mxu0 0.0
    %3877 = vmatmul.mubr.f32.gmra.mxu0 %v3805
    %v3878 = vpop.f32.mrf.mxu0
    %v3879 = vadd.f32 0.0, %v3878
    %v3880 = vpop.f32.mrf.mxu0
    %3881 = vdwg.mxu0
    %v3882 = vadd.f32 %v3465, %v3874
    %v3883 = vadd.f32 %v3466, %v3879
    %v3884 = vlaneseq
    %v3885 = vshrl.u32 %v3884, 7
    %v3886 = vsub.s32 0, %v3885
    %v3887 = vrot.slane %v2216, %v3886
    %v3888 = vadd.f32 %v3882, %v3887
    %v3889 = vadd.f32 %v3883, %v3887
    %v3890 = vadd.f32 %v2119, %v3888
    %v3891 = vadd.f32 %v2120, %v3889
    %v3892 = vsel %vm47, %v3890, 0.0
    %3893 = vadd.xlane.f32.xlu0 %v3892
    %v3894 = vpop.xlane.xlu0 %3893
    %v3895 = vsel %vm47, %v3891, 0.0
    %3896 = vadd.xlane.f32.xlu0 %v3895
    %v3897 = vpop.xlane.xlu0 %3896
    %v3898 = vmul.f32 %v3894, %v1844
    %v3899 = vmul.f32 %v3897, %v1844
    %v3900 = vsub.f32 %v3890, %v3898
    %v3901 = vsub.f32 %v3891, %v3899
    %v3902 = vmul.f32 %v3900, %v3900
    %v3903 = vmul.f32 %v3901, %v3901
    %v3904 = vsel %vm47, %v3902, 0.0
    %3905 = vadd.xlane.f32.xlu0 %v3904
    %v3906 = vpop.xlane.xlu0 %3905
    %v3907 = vsel %vm47, %v3903, 0.0
    %3908 = vadd.xlane.f32.xlu0 %v3907
    %v3909 = vpop.xlane.xlu0 %3908
    %v3910 = vmul.f32 %v3906, %v1844
    %v3911 = vmul.f32 %v3909, %v1844
    %v3912 = vadd.f32 %v3910, 1e-12
    %v3913 = vadd.f32 %v3911, 1e-12
    %v3914 = vrsqrt.pop %v3912
    %v3915 = vrsqrt.pop %v3913
    %v3916 = vmul.f32 %v3900, %v3914
    %v3917 = vmul.f32 %v3901, %v3915
    %v3918 = vlaneseq
    %v3919 = vshrl.u32 %v3918, 7
    %v3920 = vsub.s32 1, %v3919
    %v3921 = vrot.slane %v2216, %v3920
    %v3922 = vmul.f32 %v3916, %v3921
    %v3923 = vmul.f32 %v3917, %v3921
    %v3924 = vlaneseq
    %v3925 = vshrl.u32 %v3924, 7
    %v3926 = vsub.s32 2, %v3925
    %v3927 = vrot.slane %v2216, %v3926
    %v3928 = vadd.f32 %v3922, %v3927
    %v3929 = vadd.f32 %v3923, %v3927
    %s3930 = scalar_lea.vmem %s6, 32
    %v3931 = vld [vmem:[%s3930] sm:$0xff]
    %v3932 = vld [vmem:[%s3930 + $0x8] sm:$0xff]
    %v3933 = vld [vmem:[%s3930 + $0x10] sm:$0xff]
    %v3934 = vld [vmem:[%s3930 + $0x18] sm:$0xff]
    %s3935 = scalar_lea.vmem %s7, 1
    %v3936 = vld [vmem:[%s3935] sm:$0x1]
    %v3938 = vlaneseq
    %v3939 = vshrl.u32 %v3938, 7
    %v3940 = vsub.s32 0, %v3939
    %v3941 = vrot.slane %v3936, %v3940
    %v3944 = vsel %vm47, %v3928, 0
    %v3947 = vsel %vm47, %v3929, 0
    %3949 = vmatprep.subr.mxu0 0.0
    %3950 = vmatpush1.msra.mxu0 0.0
    %3951 = vmatprep.subr.mxu0 0.0
    %3952 = vmatpush1.msra.mxu0 0.0
    %3953 = vmatprep.subr.mxu0 0.0
    %3954 = vmatpush1.msra.mxu0 0.0
    %3955 = vmatprep.subr.mxu0 0.0
    %3956 = vmatpush1.msra.mxu0 0.0
    %3957 = vmatprep.subr.mxu0 0.0
    %3958 = vmatpush1.msra.mxu0 0.0
    %3959 = vmatprep.subr.mxu0 0.0
    %3960 = vmatpush1.msra.mxu0 0.0
    %3961 = vmatprep.subr.mxu0 0.0
    %3962 = vmatpush1.msra.mxu0 0.0
    %3963 = vmatprep.subr.mxu0 0.0
    %3964 = vmatpush1.msra.mxu0 0.0
    %3965 = vmatprep.subr.mxu0 0.0
    %3966 = vmatpush1.msra.mxu0 0.0
    %3967 = vmatprep.subr.mxu0 0.0
    %3968 = vmatpush1.msra.mxu0 0.0
    %3969 = vmatprep.subr.mxu0 0.0
    %3970 = vmatpush1.msra.mxu0 0.0
    %3971 = vmatprep.subr.mxu0 0.0
    %3972 = vmatpush1.msra.mxu0 0.0
    %3973 = vmatprep.subr.mxu0 0.0
    %3974 = vmatpush1.msra.mxu0 %v3934
    %3975 = vmatprep.subr.mxu0 0.0
    %3976 = vmatpush1.msra.mxu0 %v3933
    %3977 = vmatprep.subr.mxu0 0.0
    %3978 = vmatpush1.msra.mxu0 %v3932
    %3979 = vmatprep.subr.mxu0 0.0
    %3980 = vmatpush1.msra.mxu0 %v3931
    %3981 = vmatprep.subr.mxu0 0.0
    %3982 = vmatpush2.msra.mxu0 0.0
    %3983 = vmatprep.subr.mxu0 0.0
    %3984 = vmatpush2.msra.mxu0 0.0
    %3985 = vmatprep.subr.mxu0 0.0
    %3986 = vmatpush2.msra.mxu0 0.0
    %3987 = vmatprep.subr.mxu0 0.0
    %3988 = vmatpush2.msra.mxu0 0.0
    %3989 = vmatprep.subr.mxu0 0.0
    %3990 = vmatpush2.msra.mxu0 0.0
    %3991 = vmatprep.subr.mxu0 0.0
    %3992 = vmatpush2.msra.mxu0 0.0
    %3993 = vmatprep.subr.mxu0 0.0
    %3994 = vmatpush2.msra.mxu0 0.0
    %3995 = vmatprep.subr.mxu0 0.0
    %3996 = vmatpush2.msra.mxu0 0.0
    %3997 = vmatprep.subr.mxu0 0.0
    %3998 = vmatpush2.msra.mxu0 0.0
    %3999 = vmatprep.subr.mxu0 0.0
    %4000 = vmatpush2.msra.mxu0 0.0
    %4001 = vmatprep.subr.mxu0 0.0
    %4002 = vmatpush2.msra.mxu0 0.0
    %4003 = vmatprep.subr.mxu0 0.0
    %4004 = vmatpush2.msra.mxu0 0.0
    %4005 = vmatprep.subr.mxu0 0.0
    %4006 = vmatpush2.msra.mxu0 0.0
    %4007 = vmatprep.subr.mxu0 0.0
    %4008 = vmatpush2.msra.mxu0 0.0
    %4009 = vmatprep.subr.mxu0 0.0
    %4010 = vmatpush2.msra.mxu0 0.0
    %4011 = vmatprep.subr.mxu0 0.0
    %4012 = vmatpush2.msra.mxu0 0.0
    %4013 = vmatprep.mubr.f32.mxu0 0.0
    %4014 = vmatmul.mubr.f32.gmra.mxu0 %v3944
    %v4015 = vpop.f32.mrf.mxu0
    %v4016 = vadd.f32 %v3941, %v4015
    %v4017 = vpop.f32.mrf.mxu0
    %4018 = vmatprep.mubr.f32.mxu0 0.0
    %4019 = vmatmul.mubr.f32.gmra.mxu0 %v3947
    %v4020 = vpop.f32.mrf.mxu0
    %v4021 = vadd.f32 %v3941, %v4020
    %v4022 = vpop.f32.mrf.mxu0
    %4023 = vdwg.mxu0
    %v4024 = vmul.f32 %v4016, 0.5
    %v4025 = vmul.f32 %v4021, 0.5
    %v4026 = vmul.f32 %v4016, 0.044715
    %v4027 = vmul.f32 %v4021, 0.044715
    %v4028 = vmul.f32 %v4026, %v4016
    %v4029 = vmul.f32 %v4027, %v4021
    %v4030 = vmul.f32 %v4028, %v4016
    %v4031 = vmul.f32 %v4029, %v4021
    %v4032 = vadd.f32 %v4016, %v4030
    %v4033 = vadd.f32 %v4021, %v4031
    %v4034 = vmul.f32 %v4032, 0.7978846
    %v4035 = vmul.f32 %v4033, 0.7978846
    %v4036 = vtanh.pop %v4034
    %v4037 = vtanh.pop %v4035
    %v4038 = vadd.f32 %v4036, 1.0
    %v4039 = vadd.f32 %v4037, 1.0
    %v4040 = vmul.f32 %v4024, %v4038
    %v4041 = vmul.f32 %v4025, %v4039
    %s4042 = scalar_lea.vmem %s8, 64
    %v4043 = vld [vmem:[%s4042] sm:$0xff]
    %v4044 = vld [vmem:[%s4042 + $0x8] sm:$0xff]
    %v4045 = vld [vmem:[%s4042 + $0x10] sm:$0xff]
    %v4046 = vld [vmem:[%s4042 + $0x18] sm:$0xff]
    %v4047 = vld [vmem:[%s4042 + $0x20] sm:$0xff]
    %v4048 = vld [vmem:[%s4042 + $0x28] sm:$0xff]
    %v4049 = vld [vmem:[%s4042 + $0x30] sm:$0xff]
    %v4050 = vld [vmem:[%s4042 + $0x38] sm:$0xff]
    %v4051 = vlaneseq
    %v4052 = vshrl.u32 %v4051, 7
    %v4053 = vsub.s32 3, %v4052
    %v4054 = vrot.slane %v2216, %v4053
    %v4056 = vsel %vm1999, %v4040, 0
    %v4059 = vsel %vm1999, %v4041, 0
    %4061 = vmatprep.subr.mxu0 0.0
    %4062 = vmatpush1.msra.mxu0 0.0
    %4063 = vmatprep.subr.mxu0 0.0
    %4064 = vmatpush1.msra.mxu0 0.0
    %4065 = vmatprep.subr.mxu0 0.0
    %4066 = vmatpush1.msra.mxu0 0.0
    %4067 = vmatprep.subr.mxu0 0.0
    %4068 = vmatpush1.msra.mxu0 0.0
    %4069 = vmatprep.subr.mxu0 0.0
    %4070 = vmatpush1.msra.mxu0 0.0
    %4071 = vmatprep.subr.mxu0 0.0
    %4072 = vmatpush1.msra.mxu0 0.0
    %4073 = vmatprep.subr.mxu0 0.0
    %4074 = vmatpush1.msra.mxu0 0.0
    %4075 = vmatprep.subr.mxu0 0.0
    %4076 = vmatpush1.msra.mxu0 0.0
    %4077 = vmatprep.subr.mxu0 0.0
    %4078 = vmatpush1.msra.mxu0 %v4050
    %4079 = vmatprep.subr.mxu0 0.0
    %4080 = vmatpush1.msra.mxu0 %v4049
    %4081 = vmatprep.subr.mxu0 0.0
    %4082 = vmatpush1.msra.mxu0 %v4048
    %4083 = vmatprep.subr.mxu0 0.0
    %4084 = vmatpush1.msra.mxu0 %v4047
    %4085 = vmatprep.subr.mxu0 0.0
    %4086 = vmatpush1.msra.mxu0 %v4046
    %4087 = vmatprep.subr.mxu0 0.0
    %4088 = vmatpush1.msra.mxu0 %v4045
    %4089 = vmatprep.subr.mxu0 0.0
    %4090 = vmatpush1.msra.mxu0 %v4044
    %4091 = vmatprep.subr.mxu0 0.0
    %4092 = vmatpush1.msra.mxu0 %v4043
    %4093 = vmatprep.subr.mxu0 0.0
    %4094 = vmatpush2.msra.mxu0 0.0
    %4095 = vmatprep.subr.mxu0 0.0
    %4096 = vmatpush2.msra.mxu0 0.0
    %4097 = vmatprep.subr.mxu0 0.0
    %4098 = vmatpush2.msra.mxu0 0.0
    %4099 = vmatprep.subr.mxu0 0.0
    %4100 = vmatpush2.msra.mxu0 0.0
    %4101 = vmatprep.subr.mxu0 0.0
    %4102 = vmatpush2.msra.mxu0 0.0
    %4103 = vmatprep.subr.mxu0 0.0
    %4104 = vmatpush2.msra.mxu0 0.0
    %4105 = vmatprep.subr.mxu0 0.0
    %4106 = vmatpush2.msra.mxu0 0.0
    %4107 = vmatprep.subr.mxu0 0.0
    %4108 = vmatpush2.msra.mxu0 0.0
    %4109 = vmatprep.subr.mxu0 0.0
    %4110 = vmatpush2.msra.mxu0 0.0
    %4111 = vmatprep.subr.mxu0 0.0
    %4112 = vmatpush2.msra.mxu0 0.0
    %4113 = vmatprep.subr.mxu0 0.0
    %4114 = vmatpush2.msra.mxu0 0.0
    %4115 = vmatprep.subr.mxu0 0.0
    %4116 = vmatpush2.msra.mxu0 0.0
    %4117 = vmatprep.subr.mxu0 0.0
    %4118 = vmatpush2.msra.mxu0 0.0
    %4119 = vmatprep.subr.mxu0 0.0
    %4120 = vmatpush2.msra.mxu0 0.0
    %4121 = vmatprep.subr.mxu0 0.0
    %4122 = vmatpush2.msra.mxu0 0.0
    %4123 = vmatprep.subr.mxu0 0.0
    %4124 = vmatpush2.msra.mxu0 0.0
    %4125 = vmatprep.mubr.f32.mxu0 0.0
    %4126 = vmatmul.mubr.f32.gmra.mxu0 %v4056
    %v4127 = vpop.f32.mrf.mxu0
    %v4128 = vadd.f32 %v4054, %v4127
    %v4129 = vpop.f32.mrf.mxu0
    %4130 = vmatprep.mubr.f32.mxu0 0.0
    %4131 = vmatmul.mubr.f32.gmra.mxu0 %v4059
    %v4132 = vpop.f32.mrf.mxu0
    %v4133 = vadd.f32 %v4054, %v4132
    %v4134 = vpop.f32.mrf.mxu0
    %4135 = vdwg.mxu0
    %v4136 = vadd.f32 %v3928, %v4128
    %v4137 = vadd.f32 %v3929, %v4133
    %v4138 = vsel %vm47, %v4136, 0.0
    %4139 = vadd.xlane.f32.xlu0 %v4138
    %v4140 = vpop.xlane.xlu0 %4139
    %v4141 = vsel %vm47, %v4137, 0.0
    %4142 = vadd.xlane.f32.xlu0 %v4141
    %v4143 = vpop.xlane.xlu0 %4142
    %v4144 = vmul.f32 %v4140, %v1844
    %v4145 = vmul.f32 %v4143, %v1844
    %v4146 = vsub.f32 %v4136, %v4144
    %v4147 = vsub.f32 %v4137, %v4145
    %v4148 = vmul.f32 %v4146, %v4146
    %v4149 = vmul.f32 %v4147, %v4147
    %v4150 = vsel %vm47, %v4148, 0.0
    %4151 = vadd.xlane.f32.xlu0 %v4150
    %v4152 = vpop.xlane.xlu0 %4151
    %v4153 = vsel %vm47, %v4149, 0.0
    %4154 = vadd.xlane.f32.xlu0 %v4153
    %v4155 = vpop.xlane.xlu0 %4154
    %v4156 = vmul.f32 %v4152, %v1844
    %v4157 = vmul.f32 %v4155, %v1844
    %v4158 = vadd.f32 %v4156, 1e-12
    %v4159 = vadd.f32 %v4157, 1e-12
    %v4160 = vrsqrt.pop %v4158
    %v4161 = vrsqrt.pop %v4159
    %v4162 = vmul.f32 %v4146, %v4160
    %v4163 = vmul.f32 %v4147, %v4161
    %v4164 = vlaneseq
    %v4165 = vshrl.u32 %v4164, 7
    %v4166 = vsub.s32 4, %v4165
    %v4167 = vrot.slane %v2216, %v4166
    %v4168 = vmul.f32 %v4162, %v4167
    %v4169 = vmul.f32 %v4163, %v4167
    %v4170 = vlaneseq
    %v4171 = vshrl.u32 %v4170, 7
    %v4172 = vsub.s32 5, %v4171
    %v4173 = vrot.slane %v2216, %v4172
    %v4174 = vadd.f32 %v4168, %v4173
    %v4175 = vadd.f32 %v4169, %v4173
    %v4178 = vrot.slane %v4175, 7
    %vm4179 = vcmask 1041409
    %v4180 = vsel %vm4179, %v4178, %v4174
    %vm4182 = vcmask 254976
    %4183 = vst.msk [vmem:[#allocation2] sm:$0x3] %vm4182, %v4180
    // Predicated region
    $region38: #{encoder_forward.1} parent=1 // pred_check
      _
    $region39: #{encoder_forward.1} parent=1 // pred_check_branch
      %4185 = sbr.rel (0) target = $region41
    $region40: #{encoder_forward.1} parent=1 // pred_region
      %s4187 = ssub.s32 32, 32
      %4188 = vsyncadd [#allocation3], %s4187
      %s4190 = sshll.u32 [#allocation2], 4
      %s4191 = int_to_ptr.vmem [resolvable:$true] %s4190
      %4193 = dma.vmem_to_hbm [thread:$0]  %s4191, 32, %s9, [#allocation3]
    $region41: #{encoder_forward.1} parent=1 // pred_fallthru
      _
    // Predicated region
    $region42: #{encoder_forward.1} parent=1 // pred_check
      _
    $region43: #{encoder_forward.1} parent=1 // pred_check_branch
      %4195 = sbr.rel (0) target = $region45
    $region44: #{encoder_forward.1} parent=1 // pred_region
      %4196 = dma.done [#allocation3], 32
    $region45: #{encoder_forward.1} parent=1 // pred_fallthru
      _
    %4197 = vsyncpa [#allocation3], 1

</llo_original>
